<compile_context>
chip_gen: v6e
topology: v6e:2x2x1
jax: 0.10.0
libtpu: 0.0.40
codegen_flags: <defaults>
</compile_context>

<pallas_src>
import functools

import jax
import jax.numpy as jnp
from jax import lax
from jax.experimental import pallas as pl
from jax.experimental.pallas import tpu as pltpu

EPS = 1e-5
N_FILTERS = 128
FC1_K = 16
N_CLASSES = 2
LANE = 128


# ----------------------------------------------------------------------------
# In-kernel helpers (traced inside the Pallas kernel body).
# ----------------------------------------------------------------------------
def _maxpool4_rows(x):
    """MaxPool1d(kernel=4, stride=4) along rows (time).

    Elementwise max of the 4 window phases (VPU), then one exact one-hot
    selection matmul picks every 4th row.  NOTE: the zero right-padding trick
    is exact only because inputs here are post-ReLU (non-negative)."""
    n, c = x.shape
    nq = n // 4
    xp = jnp.concatenate([x, jnp.zeros((8, c), x.dtype)], axis=0)
    m = jnp.maximum(jnp.maximum(xp[0:n, :], xp[1:n + 1, :]),
                    jnp.maximum(xp[2:n + 2, :], xp[3:n + 3, :]))   # m[i]=max(x[i:i+4])
    out_row = lax.broadcasted_iota(jnp.int32, (nq, n), 0)
    in_row = lax.broadcasted_iota(jnp.int32, (nq, n), 1)
    sel = (in_row == 4 * out_row).astype(jnp.float32)               # exact 0/1
    return jnp.dot(sel, m, preferred_element_type=jnp.float32)


def _conv3_taps(segp, n_out, n_valid):
    """Three k=3 tap operands for the last `n_out` rows of a Conv1d(pad=1).

    `segp` is the tail of the true conv input: rows [0, n_valid) are real data
    ending exactly at the true input's end, rows >= n_valid are zero (the
    conv's right zero padding); at least one row of true left context precedes
    the produced output range."""
    s0 = n_valid - n_out - 1
    return (segp[s0:s0 + n_out, :],
            segp[s0 + 1:s0 + 1 + n_out, :],
            segp[s0 + 2:s0 + 2 + n_out, :])


def _bn_relu(acc, s_ref, t_ref):
    return jnp.maximum(acc * s_ref[...] + t_ref[...], 0.0)


def _conv3_tail_small(segp, w_ref, s_ref, t_ref, n_out, n_valid):
    """Tail rows of Conv1d(k=3,pad=1)+BN+ReLU; w_ref (3, Cin, Cout), Cin tiny."""
    t0, t1, t2 = _conv3_taps(segp, n_out, n_valid)
    acc = jnp.dot(t0, w_ref[0], preferred_element_type=jnp.float32)
    acc = acc + jnp.dot(t1, w_ref[1], preferred_element_type=jnp.float32)
    acc = acc + jnp.dot(t2, w_ref[2], preferred_element_type=jnp.float32)
    return _bn_relu(acc, s_ref, t_ref)


def _conv3_tail_fused(segp, w_ref, s_ref, t_ref, n_out, n_valid):
    """Tail rows of Conv1d(k=3,pad=1)+BN+ReLU as ONE MXU matmul (K = 3*Cin)."""
    t0, t1, t2 = _conv3_taps(segp, n_out, n_valid)
    lhs = jnp.concatenate([t0, t1, t2], axis=1)                     # (n_out, 3*C)
    acc = jnp.dot(lhs, w_ref[...], preferred_element_type=jnp.float32)
    return _bn_relu(acc, s_ref, t_ref)


# ----------------------------------------------------------------------------
# Fused forward kernel: one grid step per batch element.
# ----------------------------------------------------------------------------
def _stream_kernel(xt_ref, b1_hbm, b2_hbm, b3_ref,
                   w1_ref, s1_ref, t1_ref,
                   w2_ref, s2_ref, t2_ref,
                   w3_ref, s3_ref, t3_ref,
                   wf1_ref, bf1_ref, wf2_ref, bf2_ref,
                   out_ref, nb1_hbm, nb2_hbm, nb3_ref,
                   ctx1, ctx2, new1_buf, new2_buf, sems,
                   *, overlap):
    ov1, ov2, ov3 = overlap, overlap // 4, overlap // 16
    b = pl.program_id(0)
    l1 = b1_hbm.shape[1]
    l2 = b2_hbm.shape[1]
    l3, nf = nb3_ref.shape
    cin = xt_ref.shape[1]
    zpad = jnp.zeros((8, nf), jnp.float32)

    # ---- untouched-head shifts: contiguous HBM->HBM DMAs, overlap everything --
    cp_h1 = pltpu.make_async_copy(b1_hbm.at[b, pl.ds(ov1, l1 - ov1), :],
                                  nb1_hbm.at[b, pl.ds(0, l1 - ov1), :],
                                  sems.at[0])
    cp_h1.start()
    cp_h2 = pltpu.make_async_copy(b2_hbm.at[b, pl.ds(ov2, l2 - ov2), :],
                                  nb2_hbm.at[b, pl.ds(0, l2 - ov2), :],
                                  sems.at[1])
    cp_h2.start()
    # ---- 8-row pooling-context tails, HBM -> VMEM scratch ----
    cp_c1 = pltpu.make_async_copy(b1_hbm.at[b, pl.ds(l1 - 8, 8), :], ctx1, sems.at[2])
    cp_c1.start()
    cp_c2 = pltpu.make_async_copy(b2_hbm.at[b, pl.ds(l2 - 8, 8), :], ctx2, sems.at[3])
    cp_c2.start()

    # ---- level 1: conv1/bn1/relu1 on the x tail only (only new1[-ov1:] used) --
    segx = jnp.concatenate([xt_ref[...], jnp.zeros((8, cin), jnp.float32)], axis=0)
    new1 = _conv3_tail_small(segx, w1_ref, s1_ref, t1_ref, ov1, ov1 + 8)  # (ov1,nf)
    new1_buf[...] = new1
    cp_n1 = pltpu.make_async_copy(new1_buf, nb1_hbm.at[b, pl.ds(l1 - ov1, ov1), :],
                                  sems.at[4])
    cp_n1.start()

    # pooled tail of nb1 (only the last ov2+2 pooled rows feed conv2's surviving
    # rows); the trailing zero block pools to zeros = conv2's right zero padding.
    cp_c1.wait()
    p1s = _maxpool4_rows(jnp.concatenate([ctx1[...], new1, zpad], axis=0))

    # ---- level 2 ----
    new2 = _conv3_tail_fused(p1s, w2_ref, s2_ref, t2_ref, ov2, ov2 + 2)   # (ov2,nf)
    new2_buf[...] = new2
    cp_n2 = pltpu.make_async_copy(new2_buf, nb2_hbm.at[b, pl.ds(l2 - ov2, ov2), :],
                                  sems.at[5])
    cp_n2.start()

    cp_c2.wait()
    p2s = _maxpool4_rows(jnp.concatenate([ctx2[...], new2, zpad], axis=0))

    # ---- level 3 (small buffer: kept in the auto VMEM pipeline) ----
    new3 = _conv3_tail_fused(p2s, w3_ref, s3_ref, t3_ref, ov3, ov3 + 2)   # (ov3,nf)
    nb3_ref[:l3 - ov3, :] = b3_ref[ov3:, :]
    nb3_ref[l3 - ov3:, :] = new3

    # ---- pool3 over the full (small) level-3 buffer, then fc1 / fc2 ----
    p3 = _maxpool4_rows(nb3_ref[...])                                     # (l4, nf)
    l4 = p3.shape[0]
    t_out = l4 - FC1_K + 1
    # fc1 as a single im2col matmul: (t_out, 16*128) @ (16*128, 128-padded)
    slab = jnp.concatenate([p3[k:k + t_out, :] for k in range(FC1_K)], axis=1)
    h = jnp.dot(slab, wf1_ref[...], preferred_element_type=jnp.float32) + bf1_ref[...]
    out_ref[...] = jnp.dot(h, wf2_ref[...],
                           preferred_element_type=jnp.float32) + bf2_ref[...]

    # ---- all manual DMAs must be complete before this grid step ends ----
    cp_h1.wait()
    cp_h2.wait()
    cp_n1.wait()
    cp_n2.wait()


# ----------------------------------------------------------------------------
# Wrapper (glue: x tail transpose, specs, vmem budget, final reshape).
# ----------------------------------------------------------------------------
def _round_up(x, m):
    return -(-x // m) * m


def _vmem_limit_bytes(kparams, tx1, l3, t_out, ov1, ov2):
    f32 = 4

    def padded(a):
        shp = (1,) * max(0, 2 - a.ndim) + tuple(int(d) for d in a.shape)
        lead = 1
        for d in shp[:-2]:
            lead *= d
        return lead * _round_up(shp[-2], 8) * _round_up(shp[-1], LANE) * f32

    weights = sum(padded(a) for a in kparams)
    blocks = (_round_up(tx1, 8) + 2 * _round_up(l3, 8) + _round_up(t_out, 8)) * LANE * f32
    scratch = (16 + ov1 + ov2) * LANE * f32
    # blocked operands are double-buffered by the pipeline; generous slack.
    est = 2 * (weights + blocks) + scratch + (8 << 20)
    return int(min(max(est, 16 << 20), 64 << 20))


def stream_forward(x_ncl, buf1_tm, buf2_tm, buf3_tm, kparams, overlap):
    """StreamNet.forward.  x is PyTorch NCL; streaming buffers are kept in
    time-major (B, L, C) layout between calls.  Returns (out (B*T, 2), new
    time-major buffers)."""
    (w1, s1, t1, w2, s2, t2, w3, s3, t3, wf1, bf1, wf2, bf2) = kparams
    b_sz, cin, l1 = x_ncl.shape
    nf = N_FILTERS
    assert l1 % 64 == 0 and overlap % 16 == 0 and l1 >= overlap + 8
    assert buf1_tm.shape == (b_sz, l1, nf)
    l2, l3, l4 = l1 // 4, l1 // 16, l1 // 64
    assert buf2_tm.shape == (b_sz, l2, nf) and buf3_tm.shape == (b_sz, l3, nf)
    t_out = l4 - FC1_K + 1
    assert t_out >= 1
    ov2 = overlap // 4
    tx1 = overlap + 8

    # Only the x tail the tail-only conv needs; NCL -> (B, time, channels).
    xt = jnp.transpose(x_ncl[:, :, l1 - tx1:], (0, 2, 1))

    def batched(rows, cols):
        return pl.BlockSpec((None, rows, cols), lambda b: (b, 0, 0))

    def shared(arr):
        nd = arr.ndim
        return pl.BlockSpec(arr.shape, lambda b, _nd=nd: (0,) * _nd)

    hbm = pl.BlockSpec(memory_space=pl.ANY)

    grid_spec = pltpu.PrefetchScalarGridSpec(
        num_scalar_prefetch=0,
        grid=(b_sz,),
        in_specs=[
            batched(tx1, cin),
            hbm, hbm,                       # buf1, buf2 stay in HBM (manual DMA)
            batched(l3, nf),                # buf3 (small) via the VMEM pipeline
            shared(w1), shared(s1), shared(t1),
            shared(w2), shared(s2), shared(t2),
            shared(w3), shared(s3), shared(t3),
            shared(wf1), shared(bf1), shared(wf2), shared(bf2),
        ],
        out_specs=[
            batched(t_out, LANE),
            hbm, hbm,                       # nb1, nb2 written by manual DMA
            batched(l3, nf),
        ],
        scratch_shapes=[
            pltpu.VMEM((8, nf), jnp.float32),        # ctx1
            pltpu.VMEM((8, nf), jnp.float32),        # ctx2
            pltpu.VMEM((overlap, nf), jnp.float32),  # new1 staging
            pltpu.VMEM((ov2, nf), jnp.float32),      # new2 staging
            pltpu.SemaphoreType.DMA((6,)),
        ],
    )

    out, nb1, nb2, nb3 = pl.pallas_call(
        functools.partial(_stream_kernel, overlap=overlap),
        grid_spec=grid_spec,
        out_shape=(
            jax.ShapeDtypeStruct((b_sz, t_out, LANE), jnp.float32),
            jax.ShapeDtypeStruct((b_sz, l1, nf), jnp.float32),
            jax.ShapeDtypeStruct((b_sz, l2, nf), jnp.float32),
            jax.ShapeDtypeStruct((b_sz, l3, nf), jnp.float32),
        ),
        compiler_params=pltpu.CompilerParams(
            dimension_semantics=("parallel",),
            vmem_limit_bytes=_vmem_limit_bytes(kparams, tx1, l3, t_out, overlap, ov2),
        ),
    )(xt, buf1_tm, buf2_tm, buf3_tm,
      w1, s1, t1, w2, s2, t2, w3, s3, t3, wf1, bf1, wf2, bf2)

    # torch: out.transpose(0,1).contiguous().view(2, B*T).t() == row b*T+t, col class
    final = out[:, :, :N_CLASSES].reshape(b_sz * t_out, N_CLASSES)
    return final, nb1, nb2, nb3


# ----------------------------------------------------------------------------
# Deterministic parameters (synthetic, PyTorch-default-style init).
# ----------------------------------------------------------------------------
def init_torch_params(key, in_channels):
    nf = N_FILTERS
    ks = iter(jax.random.split(key, 32))

    def conv(co, ci, ksz):
        bound = 1.0 / float(ci * ksz) ** 0.5
        w = jax.random.uniform(next(ks), (co, ci, ksz), jnp.float32, -bound, bound)
        b = jax.random.uniform(next(ks), (co,), jnp.float32, -bound, bound)
        return w, b

    def bn(c):
        g = 1.0 + 0.1 * jax.random.normal(next(ks), (c,), jnp.float32)
        beta = 0.1 * jax.random.normal(next(ks), (c,), jnp.float32)
        m = 0.1 * jax.random.normal(next(ks), (c,), jnp.float32)
        v = jax.random.uniform(next(ks), (c,), jnp.float32, 0.5, 1.5)
        return g, beta, m, v

    return {"conv1": conv(nf, in_channels, 3), "bn1": bn(nf),
            "conv2": conv(nf, nf, 3), "bn2": bn(nf),
            "conv3": conv(nf, nf, 3), "bn3": bn(nf),
            "fc1": conv(100, nf, 16), "fc2": conv(N_CLASSES, 100, 1)}


def fold_kernel_params(p):
    """Torch-layout params -> kernel-layout params (bias + BN folded, taps fused,
    fc channels padded to 128 lanes)."""
    def fold_bn(conv, bn):
        (w, b), (g, beta, m, v) = conv, bn
        scale = g / jnp.sqrt(v + EPS)
        shift = scale * (b - m) + beta
        return jnp.transpose(w, (2, 1, 0)), scale[None, :], shift[None, :]

    w1, s1, t1 = fold_bn(p["conv1"], p["bn1"])          # (3, cin, 128)
    w2, s2, t2 = fold_bn(p["conv2"], p["bn2"])
    w3, s3, t3 = fold_bn(p["conv3"], p["bn3"])
    nf = w2.shape[2]
    w2 = w2.reshape(3 * nf, nf)                          # taps fused along K
    w3 = w3.reshape(3 * nf, nf)

    wf1, bf1 = p["fc1"]                                  # (100, 128, 16), (100,)
    co1 = wf1.shape[0]
    wf1 = jnp.transpose(wf1, (2, 1, 0)).reshape(FC1_K * nf, co1)
    wf1 = jnp.pad(wf1, ((0, 0), (0, LANE - co1)))        # (2048, 128)
    bf1 = jnp.pad(bf1, (0, LANE - co1))[None, :]         # (1, 128)

    wf2, bf2 = p["fc2"]                                  # (2, 100, 1), (2,)
    co2 = wf2.shape[0]
    wf2 = jnp.transpose(wf2[:, :, 0])                    # (100, 2)
    wf2 = jnp.pad(wf2, ((0, LANE - co1), (0, LANE - co2)))   # (128, 128)
    bf2 = jnp.pad(bf2, (0, LANE - co2))[None, :]         # (1, 128)
    return (w1, s1, t1, w2, s2, t2, w3, s3, t3, wf1, bf1, wf2, bf2)


# ----------------------------------------------------------------------------
# Plain-JAX reference (mirrors the torch StreamNet, NCL) + init_buffer setup.
# ----------------------------------------------------------------------------
def _ref_conv1d(x, w, b, pad):
    y = lax.conv_general_dilated(x, w, window_strides=(1,), padding=[(pad, pad)],
                                 dimension_numbers=("NCH", "OIH", "NCH"))
    return y + b[None, :, None]


def _ref_bn_relu(x, bn):
    g, beta, m, v = bn
    scale = g / jnp.sqrt(v + EPS)
    return jnp.maximum(scale[None, :, None] * (x - m[None, :, None])
                       + beta[None, :, None], 0.0)


def _ref_pool4(x):
    b, c, l = x.shape
    return jnp.max(x.reshape(b, c, l // 4, 4), axis=-1)


def init_buffer(x, p):
    """Plain-JAX equivalent of StreamNet.init_buffer (streaming state setup)."""
    c1 = _ref_bn_relu(_ref_conv1d(x, *p["conv1"], pad=1), p["bn1"])
    c2 = _ref_bn_relu(_ref_conv1d(_ref_pool4(c1), *p["conv2"], pad=1), p["bn2"])
    c3 = _ref_bn_relu(_ref_conv1d(_ref_pool4(c2), *p["conv3"], pad=1), p["bn3"])
    return c1, c2, c3


def ref_forward(x, b1, b2, b3, p, overlap):
    new1 = _ref_bn_relu(_ref_conv1d(x, *p["conv1"], pad=1), p["bn1"])
    nb1 = jnp.concatenate([b1[..., overlap:], new1[..., -overlap:]], axis=-1)
    o = _ref_pool4(nb1)
    ov2 = overlap // 4
    new2 = _ref_bn_relu(_ref_conv1d(o, *p["conv2"], pad=1), p["bn2"])
    nb2 = jnp.concatenate([b2[..., ov2:], new2[..., -ov2:]], axis=-1)
    o = _ref_pool4(nb2)
    ov3 = ov2 // 4
    new3 = _ref_bn_relu(_ref_conv1d(o, *p["conv3"], pad=1), p["bn3"])
    nb3 = jnp.concatenate([b3[..., ov3:], new3[..., -ov3:]], axis=-1)
    o = _ref_pool4(nb3)
    o = _ref_conv1d(o, *p["fc1"], pad=0)
    o = _ref_conv1d(o, *p["fc2"], pad=0)
    bsz, n, t = o.shape
    o = jnp.transpose(o, (1, 0, 2)).reshape(n, bsz * t).T
    return o, nb1, nb2, nb3


# ----------------------------------------------------------------------------
if __name__ == "__main__":
    B, CIN, L, OVERLAP = 2, 4, 2048, 128   # small shapes; L/64 >= 16 required by fc1

    key = jax.random.PRNGKey(0)
    k_par, k_hist, k_x = jax.random.split(key, 3)

    params = init_torch_params(k_par, CIN)
    kparams = fold_kernel_params(params)

    # Streaming state from a previous window (the module's init_buffer()).
    x_hist = jax.random.normal(k_hist, (B, CIN, L), jnp.float32)
    buf1, buf2, buf3 = init_buffer(x_hist, params)       # NCL, as the torch module keeps them

    # One-time layout conversion: the streaming state persists time-major (B,L,C).
    b1_tm = jnp.transpose(buf1, (0, 2, 1))
    b2_tm = jnp.transpose(buf2, (0, 2, 1))
    b3_tm = jnp.transpose(buf3, (0, 2, 1))

    # New incoming window.
    x = jax.random.normal(k_x, (B, CIN, L), jnp.float32)

    out, n1_tm, n2_tm, n3_tm = stream_forward(x, b1_tm, b2_tm, b3_tm, kparams, OVERLAP)
    jax.block_until_ready((out, n1_tm, n2_tm, n3_tm))

    r_out, r1, r2, r3 = ref_forward(x, buf1, buf2, buf3, params, OVERLAP)
    checks = ((out, r_out),
              (jnp.transpose(n1_tm, (0, 2, 1)), r1),      # transpose only for the check
              (jnp.transpose(n2_tm, (0, 2, 1)), r2),
              (jnp.transpose(n3_tm, (0, 2, 1)), r3))
    for got, ref in checks:
        if not jnp.allclose(got, ref, rtol=2e-3, atol=2e-3):
            raise RuntimeError("Pallas kernel does not match JAX reference")
    print("KERNEL_OK")
</pallas_src>

<mosaic_0001>
module attributes {stable_mosaic.version = 11 : i64} {
  func.func @_stream_kernel(%arg0: i32, %arg1: memref<1x136x4xf32, #tpu.memory_space<vmem>>, %arg2: memref<2x2048x128xf32, #tpu.memory_space<any>>, %arg3: memref<2x512x128xf32, #tpu.memory_space<any>>, %arg4: memref<1x128x128xf32, #tpu.memory_space<vmem>>, %arg5: memref<3x4x128xf32, #tpu.memory_space<vmem>>, %arg6: memref<1x128xf32, #tpu.memory_space<vmem>>, %arg7: memref<1x128xf32, #tpu.memory_space<vmem>>, %arg8: memref<384x128xf32, #tpu.memory_space<vmem>>, %arg9: memref<1x128xf32, #tpu.memory_space<vmem>>, %arg10: memref<1x128xf32, #tpu.memory_space<vmem>>, %arg11: memref<384x128xf32, #tpu.memory_space<vmem>>, %arg12: memref<1x128xf32, #tpu.memory_space<vmem>>, %arg13: memref<1x128xf32, #tpu.memory_space<vmem>>, %arg14: memref<2048x128xf32, #tpu.memory_space<vmem>>, %arg15: memref<1x128xf32, #tpu.memory_space<vmem>>, %arg16: memref<128x128xf32, #tpu.memory_space<vmem>>, %arg17: memref<1x128xf32, #tpu.memory_space<vmem>>, %arg18: memref<1x17x128xf32, #tpu.memory_space<vmem>>, %arg19: memref<2x2048x128xf32, #tpu.memory_space<any>>, %arg20: memref<2x512x128xf32, #tpu.memory_space<any>>, %arg21: memref<1x128x128xf32, #tpu.memory_space<vmem>>, %arg22: memref<8x128xf32, #tpu.memory_space<vmem>>, %arg23: memref<8x128xf32, #tpu.memory_space<vmem>>, %arg24: memref<128x128xf32, #tpu.memory_space<vmem>>, %arg25: memref<32x128xf32, #tpu.memory_space<vmem>>, %arg26: memref<6x!tpu.dma_semaphore, #tpu.memory_space<semaphore_mem>>) attributes {dimension_semantics = [#tpu.dimension_semantics<parallel>], iteration_bounds = array<i64: 2>, scalar_prefetch = 0 : i64, scratch_operands = 5 : i64, tpu.core_type = #tpu.core_type<tc>, window_params = [{transform_indices = @transform_0, window_bounds = array<i64: 1, 136, 4>}, {}, {}, {transform_indices = @transform_3, window_bounds = array<i64: 1, 128, 128>}, {pipeline_mode = #tpu.pipeline_mode<synchronous>, transform_indices = @transform_4, window_bounds = array<i64: 3, 4, 128>}, {pipeline_mode = #tpu.pipeline_mode<synchronous>, transform_indices = @transform_5, window_bounds = array<i64: 1, 128>}, {pipeline_mode = #tpu.pipeline_mode<synchronous>, transform_indices = @transform_6, window_bounds = array<i64: 1, 128>}, {pipeline_mode = #tpu.pipeline_mode<synchronous>, transform_indices = @transform_7, window_bounds = array<i64: 384, 128>}, {pipeline_mode = #tpu.pipeline_mode<synchronous>, transform_indices = @transform_8, window_bounds = array<i64: 1, 128>}, {pipeline_mode = #tpu.pipeline_mode<synchronous>, transform_indices = @transform_9, window_bounds = array<i64: 1, 128>}, {pipeline_mode = #tpu.pipeline_mode<synchronous>, transform_indices = @transform_10, window_bounds = array<i64: 384, 128>}, {pipeline_mode = #tpu.pipeline_mode<synchronous>, transform_indices = @transform_11, window_bounds = array<i64: 1, 128>}, {pipeline_mode = #tpu.pipeline_mode<synchronous>, transform_indices = @transform_12, window_bounds = array<i64: 1, 128>}, {pipeline_mode = #tpu.pipeline_mode<synchronous>, transform_indices = @transform_13, window_bounds = array<i64: 2048, 128>}, {pipeline_mode = #tpu.pipeline_mode<synchronous>, transform_indices = @transform_14, window_bounds = array<i64: 1, 128>}, {pipeline_mode = #tpu.pipeline_mode<synchronous>, transform_indices = @transform_15, window_bounds = array<i64: 128, 128>}, {pipeline_mode = #tpu.pipeline_mode<synchronous>, transform_indices = @transform_16, window_bounds = array<i64: 1, 128>}, {transform_indices = @transform_17, window_bounds = array<i64: 1, 17, 128>}, {}, {}, {transform_indices = @transform_20, window_bounds = array<i64: 1, 128, 128>}]} {
    %cst = arith.constant 0.000000e+00 : f32
    %0 = vector.broadcast %cst : f32 to vector<8x128xf32>
    %c0_i32 = arith.constant 0 : i32
    %c128_i32 = arith.constant 128 : i32
    %c0_i32_0 = arith.constant 0 : i32
    %1 = tpu.memref_slice %arg2[%arg0, %c128_i32, %c0_i32_0] : memref<2x2048x128xf32, #tpu.memory_space<any>> -> memref<1x1920x128xf32, #tpu.memory_space<any>>
    %2 = tpu.memref_squeeze %1 : memref<1x1920x128xf32, #tpu.memory_space<any>> -> memref<1920x128xf32, #tpu.memory_space<any>>
    %c0_i32_1 = arith.constant 0 : i32
    %c0_i32_2 = arith.constant 0 : i32
    %3 = tpu.memref_slice %arg19[%arg0, %c0_i32_1, %c0_i32_2] : memref<2x2048x128xf32, #tpu.memory_space<any>> -> memref<1x1920x128xf32, #tpu.memory_space<any>>
    %4 = tpu.memref_squeeze %3 : memref<1x1920x128xf32, #tpu.memory_space<any>> -> memref<1920x128xf32, #tpu.memory_space<any>>
    %5 = tpu.memref_slice %arg26[%c0_i32] : memref<6x!tpu.dma_semaphore, #tpu.memory_space<semaphore_mem>> -> memref<1x!tpu.dma_semaphore, #tpu.memory_space<semaphore_mem>>
    %6 = tpu.memref_squeeze %5 : memref<1x!tpu.dma_semaphore, #tpu.memory_space<semaphore_mem>> -> memref<!tpu.dma_semaphore, #tpu.memory_space<semaphore_mem>>
    tpu.enqueue_dma source(%2 : memref<1920x128xf32, #tpu.memory_space<any>>) target(%4 : memref<1920x128xf32, #tpu.memory_space<any>>) target_semaphore(%6 : memref<!tpu.dma_semaphore, #tpu.memory_space<semaphore_mem>>)
    %c1_i32 = arith.constant 1 : i32
    %c32_i32 = arith.constant 32 : i32
    %c0_i32_3 = arith.constant 0 : i32
    %7 = tpu.memref_slice %arg3[%arg0, %c32_i32, %c0_i32_3] : memref<2x512x128xf32, #tpu.memory_space<any>> -> memref<1x480x128xf32, #tpu.memory_space<any>>
    %8 = tpu.memref_squeeze %7 : memref<1x480x128xf32, #tpu.memory_space<any>> -> memref<480x128xf32, #tpu.memory_space<any>>
    %c0_i32_4 = arith.constant 0 : i32
    %c0_i32_5 = arith.constant 0 : i32
    %9 = tpu.memref_slice %arg20[%arg0, %c0_i32_4, %c0_i32_5] : memref<2x512x128xf32, #tpu.memory_space<any>> -> memref<1x480x128xf32, #tpu.memory_space<any>>
    %10 = tpu.memref_squeeze %9 : memref<1x480x128xf32, #tpu.memory_space<any>> -> memref<480x128xf32, #tpu.memory_space<any>>
    %11 = tpu.memref_slice %arg26[%c1_i32] : memref<6x!tpu.dma_semaphore, #tpu.memory_space<semaphore_mem>> -> memref<1x!tpu.dma_semaphore, #tpu.memory_space<semaphore_mem>>
    %12 = tpu.memref_squeeze %11 : memref<1x!tpu.dma_semaphore, #tpu.memory_space<semaphore_mem>> -> memref<!tpu.dma_semaphore, #tpu.memory_space<semaphore_mem>>
    tpu.enqueue_dma source(%8 : memref<480x128xf32, #tpu.memory_space<any>>) target(%10 : memref<480x128xf32, #tpu.memory_space<any>>) target_semaphore(%12 : memref<!tpu.dma_semaphore, #tpu.memory_space<semaphore_mem>>)
    %c2_i32 = arith.constant 2 : i32
    %c2040_i32 = arith.constant 2040 : i32
    %c0_i32_6 = arith.constant 0 : i32
    %13 = tpu.memref_slice %arg2[%arg0, %c2040_i32, %c0_i32_6] : memref<2x2048x128xf32, #tpu.memory_space<any>> -> memref<1x8x128xf32, #tpu.memory_space<any>>
    %14 = tpu.memref_squeeze %13 : memref<1x8x128xf32, #tpu.memory_space<any>> -> memref<8x128xf32, #tpu.memory_space<any>>
    %15 = tpu.memref_slice %arg26[%c2_i32] : memref<6x!tpu.dma_semaphore, #tpu.memory_space<semaphore_mem>> -> memref<1x!tpu.dma_semaphore, #tpu.memory_space<semaphore_mem>>
    %16 = tpu.memref_squeeze %15 : memref<1x!tpu.dma_semaphore, #tpu.memory_space<semaphore_mem>> -> memref<!tpu.dma_semaphore, #tpu.memory_space<semaphore_mem>>
    tpu.enqueue_dma source(%14 : memref<8x128xf32, #tpu.memory_space<any>>) target(%arg22 : memref<8x128xf32, #tpu.memory_space<vmem>>) target_semaphore(%16 : memref<!tpu.dma_semaphore, #tpu.memory_space<semaphore_mem>>)
    %c3_i32 = arith.constant 3 : i32
    %c504_i32 = arith.constant 504 : i32
    %c0_i32_7 = arith.constant 0 : i32
    %17 = tpu.memref_slice %arg3[%arg0, %c504_i32, %c0_i32_7] : memref<2x512x128xf32, #tpu.memory_space<any>> -> memref<1x8x128xf32, #tpu.memory_space<any>>
    %18 = tpu.memref_squeeze %17 : memref<1x8x128xf32, #tpu.memory_space<any>> -> memref<8x128xf32, #tpu.memory_space<any>>
    %19 = tpu.memref_slice %arg26[%c3_i32] : memref<6x!tpu.dma_semaphore, #tpu.memory_space<semaphore_mem>> -> memref<1x!tpu.dma_semaphore, #tpu.memory_space<semaphore_mem>>
    %20 = tpu.memref_squeeze %19 : memref<1x!tpu.dma_semaphore, #tpu.memory_space<semaphore_mem>> -> memref<!tpu.dma_semaphore, #tpu.memory_space<semaphore_mem>>
    tpu.enqueue_dma source(%18 : memref<8x128xf32, #tpu.memory_space<any>>) target(%arg23 : memref<8x128xf32, #tpu.memory_space<vmem>>) target_semaphore(%20 : memref<!tpu.dma_semaphore, #tpu.memory_space<semaphore_mem>>)
    %c0 = arith.constant 0 : index
    %c0_8 = arith.constant 0 : index
    %c0_9 = arith.constant 0 : index
    %21 = vector.load %arg1[%c0, %c0_8, %c0_9] : memref<1x136x4xf32, #tpu.memory_space<vmem>>, vector<1x136x4xf32>
    %22 = vector.shape_cast %21 : vector<1x136x4xf32> to vector<136x4xf32>
    %cst_10 = arith.constant 0.000000e+00 : f32
    %23 = vector.broadcast %cst_10 : f32 to vector<8x4xf32>
    %24 = tpu.concatenate %22, %23 in 0 : vector<136x4xf32>, vector<8x4xf32> -> vector<144x4xf32>
    %25 = vector.extract_strided_slice %24 {offsets = [7, 0], sizes = [128, 4], strides = [1, 1]} : vector<144x4xf32> to vector<128x4xf32>
    %26 = vector.extract_strided_slice %24 {offsets = [8, 0], sizes = [128, 4], strides = [1, 1]} : vector<144x4xf32> to vector<128x4xf32>
    %27 = vector.extract_strided_slice %24 {offsets = [9, 0], sizes = [128, 4], strides = [1, 1]} : vector<144x4xf32> to vector<128x4xf32>
    %c0_11 = arith.constant 0 : index
    %c0_12 = arith.constant 0 : index
    %c0_13 = arith.constant 0 : index
    %28 = vector.load %arg5[%c0_11, %c0_12, %c0_13] : memref<3x4x128xf32, #tpu.memory_space<vmem>>, vector<1x4x128xf32>
    %29 = vector.shape_cast %28 : vector<1x4x128xf32> to vector<4x128xf32>
    %cst_14 = arith.constant dense<0.000000e+00> : vector<128x128xf32>
    %30 = tpu.matmul %25, %29, %cst_14 {dimension_numbers = #tpu.dot_dimension_numbers<[1], [0], [0], [1], [0, 0, 1, 1], [], []>} : vector<128x4xf32>, vector<4x128xf32>, vector<128x128xf32> -> vector<128x128xf32>
    %c1 = arith.constant 1 : index
    %c0_15 = arith.constant 0 : index
    %c0_16 = arith.constant 0 : index
    %31 = vector.load %arg5[%c1, %c0_15, %c0_16] : memref<3x4x128xf32, #tpu.memory_space<vmem>>, vector<1x4x128xf32>
    %32 = vector.shape_cast %31 : vector<1x4x128xf32> to vector<4x128xf32>
    %cst_17 = arith.constant dense<0.000000e+00> : vector<128x128xf32>
    %33 = tpu.matmul %26, %32, %cst_17 {dimension_numbers = #tpu.dot_dimension_numbers<[1], [0], [0], [1], [0, 0, 1, 1], [], []>} : vector<128x4xf32>, vector<4x128xf32>, vector<128x128xf32> -> vector<128x128xf32>
    %34 = arith.addf %30, %33 : vector<128x128xf32>
    %c2 = arith.constant 2 : index
    %c0_18 = arith.constant 0 : index
    %c0_19 = arith.constant 0 : index
    %35 = vector.load %arg5[%c2, %c0_18, %c0_19] : memref<3x4x128xf32, #tpu.memory_space<vmem>>, vector<1x4x128xf32>
    %36 = vector.shape_cast %35 : vector<1x4x128xf32> to vector<4x128xf32>
    %cst_20 = arith.constant dense<0.000000e+00> : vector<128x128xf32>
    %37 = tpu.matmul %27, %36, %cst_20 {dimension_numbers = #tpu.dot_dimension_numbers<[1], [0], [0], [1], [0, 0, 1, 1], [], []>} : vector<128x4xf32>, vector<4x128xf32>, vector<128x128xf32> -> vector<128x128xf32>
    %38 = arith.addf %34, %37 : vector<128x128xf32>
    %c0_21 = arith.constant 0 : index
    %c0_22 = arith.constant 0 : index
    %39 = vector.load %arg6[%c0_21, %c0_22] : memref<1x128xf32, #tpu.memory_space<vmem>>, vector<1x128xf32>
    %40 = vector.broadcast %39 : vector<1x128xf32> to vector<128x128xf32>
    %41 = arith.mulf %38, %40 : vector<128x128xf32>
    %c0_23 = arith.constant 0 : index
    %c0_24 = arith.constant 0 : index
    %42 = vector.load %arg7[%c0_23, %c0_24] : memref<1x128xf32, #tpu.memory_space<vmem>>, vector<1x128xf32>
    %43 = vector.broadcast %42 : vector<1x128xf32> to vector<128x128xf32>
    %44 = arith.addf %41, %43 : vector<128x128xf32>
    %cst_25 = arith.constant 0.000000e+00 : f32
    %45 = vector.broadcast %cst_25 : f32 to vector<128x128xf32>
    %46 = arith.maximumf %44, %45 : vector<128x128xf32>
    %c0_26 = arith.constant 0 : index
    %c0_27 = arith.constant 0 : index
    %47 = vector.load %arg24[%c0_26, %c0_27] : memref<128x128xf32, #tpu.memory_space<vmem>>, vector<128x128xf32>
    tpu.vector_store %arg24[%c0_26, %c0_27], %46 {strides = array<i32>} : memref<128x128xf32, #tpu.memory_space<vmem>>, vector<128x128xf32>,
    %c4_i32 = arith.constant 4 : i32
    %c1920_i32 = arith.constant 1920 : i32
    %c0_i32_28 = arith.constant 0 : i32
    %48 = tpu.memref_slice %arg19[%arg0, %c1920_i32, %c0_i32_28] : memref<2x2048x128xf32, #tpu.memory_space<any>> -> memref<1x128x128xf32, #tpu.memory_space<any>>
    %49 = tpu.memref_squeeze %48 : memref<1x128x128xf32, #tpu.memory_space<any>> -> memref<128x128xf32, #tpu.memory_space<any>>
    %50 = tpu.memref_slice %arg26[%c4_i32] : memref<6x!tpu.dma_semaphore, #tpu.memory_space<semaphore_mem>> -> memref<1x!tpu.dma_semaphore, #tpu.memory_space<semaphore_mem>>
    %51 = tpu.memref_squeeze %50 : memref<1x!tpu.dma_semaphore, #tpu.memory_space<semaphore_mem>> -> memref<!tpu.dma_semaphore, #tpu.memory_space<semaphore_mem>>
    tpu.enqueue_dma source(%arg24 : memref<128x128xf32, #tpu.memory_space<vmem>>) target(%49 : memref<128x128xf32, #tpu.memory_space<any>>) target_semaphore(%51 : memref<!tpu.dma_semaphore, #tpu.memory_space<semaphore_mem>>)
    %c2_i32_29 = arith.constant 2 : i32
    %c2040_i32_30 = arith.constant 2040 : i32
    %c0_i32_31 = arith.constant 0 : i32
    %52 = tpu.memref_slice %arg2[%arg0, %c2040_i32_30, %c0_i32_31] : memref<2x2048x128xf32, #tpu.memory_space<any>> -> memref<1x8x128xf32, #tpu.memory_space<any>>
    %53 = tpu.memref_squeeze %52 : memref<1x8x128xf32, #tpu.memory_space<any>> -> memref<8x128xf32, #tpu.memory_space<any>>
    %54 = tpu.memref_slice %arg26[%c2_i32_29] : memref<6x!tpu.dma_semaphore, #tpu.memory_space<semaphore_mem>> -> memref<1x!tpu.dma_semaphore, #tpu.memory_space<semaphore_mem>>
    %55 = tpu.memref_squeeze %54 : memref<1x!tpu.dma_semaphore, #tpu.memory_space<semaphore_mem>> -> memref<!tpu.dma_semaphore, #tpu.memory_space<semaphore_mem>>
    tpu.wait_dma2 semaphore(%55 : memref<!tpu.dma_semaphore, #tpu.memory_space<semaphore_mem>>) src(%53 : memref<8x128xf32, #tpu.memory_space<any>>) dst(%arg22 : memref<8x128xf32, #tpu.memory_space<vmem>>)
    %c0_32 = arith.constant 0 : index
    %c0_33 = arith.constant 0 : index
    %56 = vector.load %arg22[%c0_32, %c0_33] : memref<8x128xf32, #tpu.memory_space<vmem>>, vector<8x128xf32>
    %57 = tpu.concatenate %56, %46, %0 in 0 : vector<8x128xf32>, vector<128x128xf32>, vector<8x128xf32> -> vector<144x128xf32>
    %cst_34 = arith.constant 0.000000e+00 : f32
    %58 = vector.broadcast %cst_34 : f32 to vector<8x128xf32>
    %59 = tpu.concatenate %57, %58 in 0 : vector<144x128xf32>, vector<8x128xf32> -> vector<152x128xf32>
    %60 = vector.extract_strided_slice %59 {offsets = [0, 0], sizes = [144, 128], strides = [1, 1]} : vector<152x128xf32> to vector<144x128xf32>
    %61 = vector.extract_strided_slice %59 {offsets = [1, 0], sizes = [144, 128], strides = [1, 1]} : vector<152x128xf32> to vector<144x128xf32>
    %62 = arith.maximumf %60, %61 : vector<144x128xf32>
    %63 = vector.extract_strided_slice %59 {offsets = [2, 0], sizes = [144, 128], strides = [1, 1]} : vector<152x128xf32> to vector<144x128xf32>
    %64 = vector.extract_strided_slice %59 {offsets = [3, 0], sizes = [144, 128], strides = [1, 1]} : vector<152x128xf32> to vector<144x128xf32>
    %65 = arith.maximumf %63, %64 : vector<144x128xf32>
    %66 = arith.maximumf %62, %65 : vector<144x128xf32>
    %67 = tpu.iota {dimensions = array<i32: 0>} : vector<36x144xi32>
    %68 = tpu.iota {dimensions = array<i32: 1>} : vector<36x144xi32>
    %c4_i32_35 = arith.constant 4 : i32
    %69 = vector.broadcast %c4_i32_35 : i32 to vector<36x144xi32>
    %70 = arith.muli %69, %67 : vector<36x144xi32>
    %71 = arith.cmpi eq, %68, %70 : vector<36x144xi32>
    %72 = arith.extui %71 : vector<36x144xi1> to vector<36x144xi32>
    %73 = arith.sitofp %72 : vector<36x144xi32> to vector<36x144xf32>
    %cst_36 = arith.constant dense<0.000000e+00> : vector<36x128xf32>
    %74 = tpu.matmul %73, %66, %cst_36 {dimension_numbers = #tpu.dot_dimension_numbers<[1], [0], [0], [1], [0, 0, 1, 1], [], []>} : vector<36x144xf32>, vector<144x128xf32>, vector<36x128xf32> -> vector<36x128xf32>
    %75 = vector.extract_strided_slice %74 {offsets = [1, 0], sizes = [32, 128], strides = [1, 1]} : vector<36x128xf32> to vector<32x128xf32>
    %76 = vector.extract_strided_slice %74 {offsets = [2, 0], sizes = [32, 128], strides = [1, 1]} : vector<36x128xf32> to vector<32x128xf32>
    %77 = vector.extract_strided_slice %74 {offsets = [3, 0], sizes = [32, 128], strides = [1, 1]} : vector<36x128xf32> to vector<32x128xf32>
    %78 = tpu.concatenate %75, %76, %77 in 1 : vector<32x128xf32>, vector<32x128xf32>, vector<32x128xf32> -> vector<32x384xf32>
    %c0_37 = arith.constant 0 : index
    %c0_38 = arith.constant 0 : index
    %79 = vector.load %arg8[%c0_37, %c0_38] : memref<384x128xf32, #tpu.memory_space<vmem>>, vector<384x128xf32>
    %cst_39 = arith.constant dense<0.000000e+00> : vector<32x128xf32>
    %80 = tpu.matmul %78, %79, %cst_39 {dimension_numbers = #tpu.dot_dimension_numbers<[1], [0], [0], [1], [0, 0, 1, 1], [], []>} : vector<32x384xf32>, vector<384x128xf32>, vector<32x128xf32> -> vector<32x128xf32>
    %c0_40 = arith.constant 0 : index
    %c0_41 = arith.constant 0 : index
    %81 = vector.load %arg9[%c0_40, %c0_41] : memref<1x128xf32, #tpu.memory_space<vmem>>, vector<1x128xf32>
    %82 = vector.broadcast %81 : vector<1x128xf32> to vector<32x128xf32>
    %83 = arith.mulf %80, %82 : vector<32x128xf32>
    %c0_42 = arith.constant 0 : index
    %c0_43 = arith.constant 0 : index
    %84 = vector.load %arg10[%c0_42, %c0_43] : memref<1x128xf32, #tpu.memory_space<vmem>>, vector<1x128xf32>
    %85 = vector.broadcast %84 : vector<1x128xf32> to vector<32x128xf32>
    %86 = arith.addf %83, %85 : vector<32x128xf32>
    %cst_44 = arith.constant 0.000000e+00 : f32
    %87 = vector.broadcast %cst_44 : f32 to vector<32x128xf32>
    %88 = arith.maximumf %86, %87 : vector<32x128xf32>
    %c0_45 = arith.constant 0 : index
    %c0_46 = arith.constant 0 : index
    %89 = vector.load %arg25[%c0_45, %c0_46] : memref<32x128xf32, #tpu.memory_space<vmem>>, vector<32x128xf32>
    tpu.vector_store %arg25[%c0_45, %c0_46], %88 {strides = array<i32>} : memref<32x128xf32, #tpu.memory_space<vmem>>, vector<32x128xf32>,
    %c5_i32 = arith.constant 5 : i32
    %c480_i32 = arith.constant 480 : i32
    %c0_i32_47 = arith.constant 0 : i32
    %90 = tpu.memref_slice %arg20[%arg0, %c480_i32, %c0_i32_47] : memref<2x512x128xf32, #tpu.memory_space<any>> -> memref<1x32x128xf32, #tpu.memory_space<any>>
    %91 = tpu.memref_squeeze %90 : memref<1x32x128xf32, #tpu.memory_space<any>> -> memref<32x128xf32, #tpu.memory_space<any>>
    %92 = tpu.memref_slice %arg26[%c5_i32] : memref<6x!tpu.dma_semaphore, #tpu.memory_space<semaphore_mem>> -> memref<1x!tpu.dma_semaphore, #tpu.memory_space<semaphore_mem>>
    %93 = tpu.memref_squeeze %92 : memref<1x!tpu.dma_semaphore, #tpu.memory_space<semaphore_mem>> -> memref<!tpu.dma_semaphore, #tpu.memory_space<semaphore_mem>>
    tpu.enqueue_dma source(%arg25 : memref<32x128xf32, #tpu.memory_space<vmem>>) target(%91 : memref<32x128xf32, #tpu.memory_space<any>>) target_semaphore(%93 : memref<!tpu.dma_semaphore, #tpu.memory_space<semaphore_mem>>)
    %c3_i32_48 = arith.constant 3 : i32
    %c504_i32_49 = arith.constant 504 : i32
    %c0_i32_50 = arith.constant 0 : i32
    %94 = tpu.memref_slice %arg3[%arg0, %c504_i32_49, %c0_i32_50] : memref<2x512x128xf32, #tpu.memory_space<any>> -> memref<1x8x128xf32, #tpu.memory_space<any>>
    %95 = tpu.memref_squeeze %94 : memref<1x8x128xf32, #tpu.memory_space<any>> -> memref<8x128xf32, #tpu.memory_space<any>>
    %96 = tpu.memref_slice %arg26[%c3_i32_48] : memref<6x!tpu.dma_semaphore, #tpu.memory_space<semaphore_mem>> -> memref<1x!tpu.dma_semaphore, #tpu.memory_space<semaphore_mem>>
    %97 = tpu.memref_squeeze %96 : memref<1x!tpu.dma_semaphore, #tpu.memory_space<semaphore_mem>> -> memref<!tpu.dma_semaphore, #tpu.memory_space<semaphore_mem>>
    tpu.wait_dma2 semaphore(%97 : memref<!tpu.dma_semaphore, #tpu.memory_space<semaphore_mem>>) src(%95 : memref<8x128xf32, #tpu.memory_space<any>>) dst(%arg23 : memref<8x128xf32, #tpu.memory_space<vmem>>)
    %c0_51 = arith.constant 0 : index
    %c0_52 = arith.constant 0 : index
    %98 = vector.load %arg23[%c0_51, %c0_52] : memref<8x128xf32, #tpu.memory_space<vmem>>, vector<8x128xf32>
    %99 = tpu.concatenate %98, %88, %0 in 0 : vector<8x128xf32>, vector<32x128xf32>, vector<8x128xf32> -> vector<48x128xf32>
    %cst_53 = arith.constant 0.000000e+00 : f32
    %100 = vector.broadcast %cst_53 : f32 to vector<8x128xf32>
    %101 = tpu.concatenate %99, %100 in 0 : vector<48x128xf32>, vector<8x128xf32> -> vector<56x128xf32>
    %102 = vector.extract_strided_slice %101 {offsets = [0, 0], sizes = [48, 128], strides = [1, 1]} : vector<56x128xf32> to vector<48x128xf32>
    %103 = vector.extract_strided_slice %101 {offsets = [1, 0], sizes = [48, 128], strides = [1, 1]} : vector<56x128xf32> to vector<48x128xf32>
    %104 = arith.maximumf %102, %103 : vector<48x128xf32>
    %105 = vector.extract_strided_slice %101 {offsets = [2, 0], sizes = [48, 128], strides = [1, 1]} : vector<56x128xf32> to vector<48x128xf32>
    %106 = vector.extract_strided_slice %101 {offsets = [3, 0], sizes = [48, 128], strides = [1, 1]} : vector<56x128xf32> to vector<48x128xf32>
    %107 = arith.maximumf %105, %106 : vector<48x128xf32>
    %108 = arith.maximumf %104, %107 : vector<48x128xf32>
    %109 = tpu.iota {dimensions = array<i32: 0>} : vector<12x48xi32>
    %110 = tpu.iota {dimensions = array<i32: 1>} : vector<12x48xi32>
    %c4_i32_54 = arith.constant 4 : i32
    %111 = vector.broadcast %c4_i32_54 : i32 to vector<12x48xi32>
    %112 = arith.muli %111, %109 : vector<12x48xi32>
    %113 = arith.cmpi eq, %110, %112 : vector<12x48xi32>
    %114 = arith.extui %113 : vector<12x48xi1> to vector<12x48xi32>
    %115 = arith.sitofp %114 : vector<12x48xi32> to vector<12x48xf32>
    %cst_55 = arith.constant dense<0.000000e+00> : vector<12x128xf32>
    %116 = tpu.matmul %115, %108, %cst_55 {dimension_numbers = #tpu.dot_dimension_numbers<[1], [0], [0], [1], [0, 0, 1, 1], [], []>} : vector<12x48xf32>, vector<48x128xf32>, vector<12x128xf32> -> vector<12x128xf32>
    %117 = vector.extract_strided_slice %116 {offsets = [1, 0], sizes = [8, 128], strides = [1, 1]} : vector<12x128xf32> to vector<8x128xf32>
    %118 = vector.extract_strided_slice %116 {offsets = [2, 0], sizes = [8, 128], strides = [1, 1]} : vector<12x128xf32> to vector<8x128xf32>
    %119 = vector.extract_strided_slice %116 {offsets = [3, 0], sizes = [8, 128], strides = [1, 1]} : vector<12x128xf32> to vector<8x128xf32>
    %120 = tpu.concatenate %117, %118, %119 in 1 : vector<8x128xf32>, vector<8x128xf32>, vector<8x128xf32> -> vector<8x384xf32>
    %c0_56 = arith.constant 0 : index
    %c0_57 = arith.constant 0 : index
    %121 = vector.load %arg11[%c0_56, %c0_57] : memref<384x128xf32, #tpu.memory_space<vmem>>, vector<384x128xf32>
    %cst_58 = arith.constant dense<0.000000e+00> : vector<8x128xf32>
    %122 = tpu.matmul %120, %121, %cst_58 {dimension_numbers = #tpu.dot_dimension_numbers<[1], [0], [0], [1], [0, 0, 1, 1], [], []>} : vector<8x384xf32>, vector<384x128xf32>, vector<8x128xf32> -> vector<8x128xf32>
    %c0_59 = arith.constant 0 : index
    %c0_60 = arith.constant 0 : index
    %123 = vector.load %arg12[%c0_59, %c0_60] : memref<1x128xf32, #tpu.memory_space<vmem>>, vector<1x128xf32>
    %124 = vector.broadcast %123 : vector<1x128xf32> to vector<8x128xf32>
    %125 = arith.mulf %122, %124 : vector<8x128xf32>
    %c0_61 = arith.constant 0 : index
    %c0_62 = arith.constant 0 : index
    %126 = vector.load %arg13[%c0_61, %c0_62] : memref<1x128xf32, #tpu.memory_space<vmem>>, vector<1x128xf32>
    %127 = vector.broadcast %126 : vector<1x128xf32> to vector<8x128xf32>
    %128 = arith.addf %125, %127 : vector<8x128xf32>
    %cst_63 = arith.constant 0.000000e+00 : f32
    %129 = vector.broadcast %cst_63 : f32 to vector<8x128xf32>
    %130 = arith.maximumf %128, %129 : vector<8x128xf32>
    %c0_64 = arith.constant 0 : index
    %c8 = arith.constant 8 : index
    %c0_65 = arith.constant 0 : index
    %131 = vector.load %arg4[%c0_64, %c8, %c0_65] : memref<1x128x128xf32, #tpu.memory_space<vmem>>, vector<1x120x128xf32>
    %132 = vector.shape_cast %131 : vector<1x120x128xf32> to vector<120x128xf32>
    %c0_66 = arith.constant 0 : index
    %c0_67 = arith.constant 0 : index
    %c0_68 = arith.constant 0 : index
    %133 = vector.load %arg21[%c0_66, %c0_67, %c0_68] : memref<1x128x128xf32, #tpu.memory_space<vmem>>, vector<1x120x128xf32>
    %134 = vector.shape_cast %133 : vector<1x120x128xf32> to vector<120x128xf32>
    %135 = vector.shape_cast %132 : vector<120x128xf32> to vector<1x120x128xf32>
    tpu.vector_store %arg21[%c0_66, %c0_67, %c0_68], %135 {strides = array<i32>} : memref<1x128x128xf32, #tpu.memory_space<vmem>>, vector<1x120x128xf32>,
    %c0_69 = arith.constant 0 : index
    %c120 = arith.constant 120 : index
    %c0_70 = arith.constant 0 : index
    %136 = vector.load %arg21[%c0_69, %c120, %c0_70] : memref<1x128x128xf32, #tpu.memory_space<vmem>>, vector<1x8x128xf32>
    %137 = vector.shape_cast %136 : vector<1x8x128xf32> to vector<8x128xf32>
    %138 = vector.shape_cast %130 : vector<8x128xf32> to vector<1x8x128xf32>
    tpu.vector_store %arg21[%c0_69, %c120, %c0_70], %138 {strides = array<i32>} : memref<1x128x128xf32, #tpu.memory_space<vmem>>, vector<1x8x128xf32>,
    %c0_71 = arith.constant 0 : index
    %c0_72 = arith.constant 0 : index
    %c0_73 = arith.constant 0 : index
    %139 = vector.load %arg21[%c0_71, %c0_72, %c0_73] : memref<1x128x128xf32, #tpu.memory_space<vmem>>, vector<1x128x128xf32>
    %140 = vector.shape_cast %139 : vector<1x128x128xf32> to vector<128x128xf32>
    %cst_74 = arith.constant 0.000000e+00 : f32
    %141 = vector.broadcast %cst_74 : f32 to vector<8x128xf32>
    %142 = tpu.concatenate %140, %141 in 0 : vector<128x128xf32>, vector<8x128xf32> -> vector<136x128xf32>
    %143 = vector.extract_strided_slice %142 {offsets = [0, 0], sizes = [128, 128], strides = [1, 1]} : vector<136x128xf32> to vector<128x128xf32>
    %144 = vector.extract_strided_slice %142 {offsets = [1, 0], sizes = [128, 128], strides = [1, 1]} : vector<136x128xf32> to vector<128x128xf32>
    %145 = arith.maximumf %143, %144 : vector<128x128xf32>
    %146 = vector.extract_strided_slice %142 {offsets = [2, 0], sizes = [128, 128], strides = [1, 1]} : vector<136x128xf32> to vector<128x128xf32>
    %147 = vector.extract_strided_slice %142 {offsets = [3, 0], sizes = [128, 128], strides = [1, 1]} : vector<136x128xf32> to vector<128x128xf32>
    %148 = arith.maximumf %146, %147 : vector<128x128xf32>
    %149 = arith.maximumf %145, %148 : vector<128x128xf32>
    %150 = tpu.iota {dimensions = array<i32: 0>} : vector<32x128xi32>
    %151 = tpu.iota {dimensions = array<i32: 1>} : vector<32x128xi32>
    %c4_i32_75 = arith.constant 4 : i32
    %152 = vector.broadcast %c4_i32_75 : i32 to vector<32x128xi32>
    %153 = arith.muli %152, %150 : vector<32x128xi32>
    %154 = arith.cmpi eq, %151, %153 : vector<32x128xi32>
    %155 = arith.extui %154 : vector<32x128xi1> to vector<32x128xi32>
    %156 = arith.sitofp %155 : vector<32x128xi32> to vector<32x128xf32>
    %cst_76 = arith.constant dense<0.000000e+00> : vector<32x128xf32>
    %157 = tpu.matmul %156, %149, %cst_76 {dimension_numbers = #tpu.dot_dimension_numbers<[1], [0], [0], [1], [0, 0, 1, 1], [], []>} : vector<32x128xf32>, vector<128x128xf32>, vector<32x128xf32> -> vector<32x128xf32>
    %158 = vector.extract_strided_slice %157 {offsets = [0, 0], sizes = [17, 128], strides = [1, 1]} : vector<32x128xf32> to vector<17x128xf32>
    %159 = vector.extract_strided_slice %157 {offsets = [1, 0], sizes = [17, 128], strides = [1, 1]} : vector<32x128xf32> to vector<17x128xf32>
    %160 = vector.extract_strided_slice %157 {offsets = [2, 0], sizes = [17, 128], strides = [1, 1]} : vector<32x128xf32> to vector<17x128xf32>
    %161 = vector.extract_strided_slice %157 {offsets = [3, 0], sizes = [17, 128], strides = [1, 1]} : vector<32x128xf32> to vector<17x128xf32>
    %162 = vector.extract_strided_slice %157 {offsets = [4, 0], sizes = [17, 128], strides = [1, 1]} : vector<32x128xf32> to vector<17x128xf32>
    %163 = vector.extract_strided_slice %157 {offsets = [5, 0], sizes = [17, 128], strides = [1, 1]} : vector<32x128xf32> to vector<17x128xf32>
    %164 = vector.extract_strided_slice %157 {offsets = [6, 0], sizes = [17, 128], strides = [1, 1]} : vector<32x128xf32> to vector<17x128xf32>
    %165 = vector.extract_strided_slice %157 {offsets = [7, 0], sizes = [17, 128], strides = [1, 1]} : vector<32x128xf32> to vector<17x128xf32>
    %166 = vector.extract_strided_slice %157 {offsets = [8, 0], sizes = [17, 128], strides = [1, 1]} : vector<32x128xf32> to vector<17x128xf32>
    %167 = vector.extract_strided_slice %157 {offsets = [9, 0], sizes = [17, 128], strides = [1, 1]} : vector<32x128xf32> to vector<17x128xf32>
    %168 = vector.extract_strided_slice %157 {offsets = [10, 0], sizes = [17, 128], strides = [1, 1]} : vector<32x128xf32> to vector<17x128xf32>
    %169 = vector.extract_strided_slice %157 {offsets = [11, 0], sizes = [17, 128], strides = [1, 1]} : vector<32x128xf32> to vector<17x128xf32>
    %170 = vector.extract_strided_slice %157 {offsets = [12, 0], sizes = [17, 128], strides = [1, 1]} : vector<32x128xf32> to vector<17x128xf32>
    %171 = vector.extract_strided_slice %157 {offsets = [13, 0], sizes = [17, 128], strides = [1, 1]} : vector<32x128xf32> to vector<17x128xf32>
    %172 = vector.extract_strided_slice %157 {offsets = [14, 0], sizes = [17, 128], strides = [1, 1]} : vector<32x128xf32> to vector<17x128xf32>
    %173 = vector.extract_strided_slice %157 {offsets = [15, 0], sizes = [17, 128], strides = [1, 1]} : vector<32x128xf32> to vector<17x128xf32>
    %174 = tpu.concatenate %158, %159, %160, %161, %162, %163, %164, %165, %166, %167, %168, %169, %170, %171, %172, %173 in 1 : vector<17x128xf32>, vector<17x128xf32>, vector<17x128xf32>, vector<17x128xf32>, vector<17x128xf32>, vector<17x128xf32>, vector<17x128xf32>, vector<17x128xf32>, vector<17x128xf32>, vector<17x128xf32>, vector<17x128xf32>, vector<17x128xf32>, vector<17x128xf32>, vector<17x128xf32>, vector<17x128xf32>, vector<17x128xf32> -> vector<17x2048xf32>
    %c0_77 = arith.constant 0 : index
    %c0_78 = arith.constant 0 : index
    %175 = vector.load %arg14[%c0_77, %c0_78] : memref<2048x128xf32, #tpu.memory_space<vmem>>, vector<2048x128xf32>
    %cst_79 = arith.constant dense<0.000000e+00> : vector<17x128xf32>
    %176 = tpu.matmul %174, %175, %cst_79 {dimension_numbers = #tpu.dot_dimension_numbers<[1], [0], [0], [1], [0, 0, 1, 1], [], []>} : vector<17x2048xf32>, vector<2048x128xf32>, vector<17x128xf32> -> vector<17x128xf32>
    %c0_80 = arith.constant 0 : index
    %c0_81 = arith.constant 0 : index
    %177 = vector.load %arg15[%c0_80, %c0_81] : memref<1x128xf32, #tpu.memory_space<vmem>>, vector<1x128xf32>
    %178 = vector.broadcast %177 : vector<1x128xf32> to vector<17x128xf32>
    %179 = arith.addf %176, %178 : vector<17x128xf32>
    %c0_82 = arith.constant 0 : index
    %c0_83 = arith.constant 0 : index
    %180 = vector.load %arg16[%c0_82, %c0_83] : memref<128x128xf32, #tpu.memory_space<vmem>>, vector<128x128xf32>
    %cst_84 = arith.constant dense<0.000000e+00> : vector<17x128xf32>
    %181 = tpu.matmul %179, %180, %cst_84 {dimension_numbers = #tpu.dot_dimension_numbers<[1], [0], [0], [1], [0, 0, 1, 1], [], []>} : vector<17x128xf32>, vector<128x128xf32>, vector<17x128xf32> -> vector<17x128xf32>
    %c0_85 = arith.constant 0 : index
    %c0_86 = arith.constant 0 : index
    %182 = vector.load %arg17[%c0_85, %c0_86] : memref<1x128xf32, #tpu.memory_space<vmem>>, vector<1x128xf32>
    %183 = vector.broadcast %182 : vector<1x128xf32> to vector<17x128xf32>
    %184 = arith.addf %181, %183 : vector<17x128xf32>
    %c0_87 = arith.constant 0 : index
    %c0_88 = arith.constant 0 : index
    %c0_89 = arith.constant 0 : index
    %185 = vector.load %arg18[%c0_87, %c0_88, %c0_89] : memref<1x17x128xf32, #tpu.memory_space<vmem>>, vector<1x17x128xf32>
    %186 = vector.shape_cast %185 : vector<1x17x128xf32> to vector<17x128xf32>
    %187 = vector.shape_cast %184 : vector<17x128xf32> to vector<1x17x128xf32>
    tpu.vector_store %arg18[%c0_87, %c0_88, %c0_89], %187 {strides = array<i32>} : memref<1x17x128xf32, #tpu.memory_space<vmem>>, vector<1x17x128xf32>,
    %c0_i32_90 = arith.constant 0 : i32
    %c128_i32_91 = arith.constant 128 : i32
    %c0_i32_92 = arith.constant 0 : i32
    %188 = tpu.memref_slice %arg2[%arg0, %c128_i32_91, %c0_i32_92] : memref<2x2048x128xf32, #tpu.memory_space<any>> -> memref<1x1920x128xf32, #tpu.memory_space<any>>
    %189 = tpu.memref_squeeze %188 : memref<1x1920x128xf32, #tpu.memory_space<any>> -> memref<1920x128xf32, #tpu.memory_space<any>>
    %c0_i32_93 = arith.constant 0 : i32
    %c0_i32_94 = arith.constant 0 : i32
    %190 = tpu.memref_slice %arg19[%arg0, %c0_i32_93, %c0_i32_94] : memref<2x2048x128xf32, #tpu.memory_space<any>> -> memref<1x1920x128xf32, #tpu.memory_space<any>>
    %191 = tpu.memref_squeeze %190 : memref<1x1920x128xf32, #tpu.memory_space<any>> -> memref<1920x128xf32, #tpu.memory_space<any>>
    %192 = tpu.memref_slice %arg26[%c0_i32_90] : memref<6x!tpu.dma_semaphore, #tpu.memory_space<semaphore_mem>> -> memref<1x!tpu.dma_semaphore, #tpu.memory_space<semaphore_mem>>
    %193 = tpu.memref_squeeze %192 : memref<1x!tpu.dma_semaphore, #tpu.memory_space<semaphore_mem>> -> memref<!tpu.dma_semaphore, #tpu.memory_space<semaphore_mem>>
    tpu.wait_dma2 semaphore(%193 : memref<!tpu.dma_semaphore, #tpu.memory_space<semaphore_mem>>) src(%189 : memref<1920x128xf32, #tpu.memory_space<any>>) dst(%191 : memref<1920x128xf32, #tpu.memory_space<any>>)
    %c1_i32_95 = arith.constant 1 : i32
    %c32_i32_96 = arith.constant 32 : i32
    %c0_i32_97 = arith.constant 0 : i32
    %194 = tpu.memref_slice %arg3[%arg0, %c32_i32_96, %c0_i32_97] : memref<2x512x128xf32, #tpu.memory_space<any>> -> memref<1x480x128xf32, #tpu.memory_space<any>>
    %195 = tpu.memref_squeeze %194 : memref<1x480x128xf32, #tpu.memory_space<any>> -> memref<480x128xf32, #tpu.memory_space<any>>
    %c0_i32_98 = arith.constant 0 : i32
    %c0_i32_99 = arith.constant 0 : i32
    %196 = tpu.memref_slice %arg20[%arg0, %c0_i32_98, %c0_i32_99] : memref<2x512x128xf32, #tpu.memory_space<any>> -> memref<1x480x128xf32, #tpu.memory_space<any>>
    %197 = tpu.memref_squeeze %196 : memref<1x480x128xf32, #tpu.memory_space<any>> -> memref<480x128xf32, #tpu.memory_space<any>>
    %198 = tpu.memref_slice %arg26[%c1_i32_95] : memref<6x!tpu.dma_semaphore, #tpu.memory_space<semaphore_mem>> -> memref<1x!tpu.dma_semaphore, #tpu.memory_space<semaphore_mem>>
    %199 = tpu.memref_squeeze %198 : memref<1x!tpu.dma_semaphore, #tpu.memory_space<semaphore_mem>> -> memref<!tpu.dma_semaphore, #tpu.memory_space<semaphore_mem>>
    tpu.wait_dma2 semaphore(%199 : memref<!tpu.dma_semaphore, #tpu.memory_space<semaphore_mem>>) src(%195 : memref<480x128xf32, #tpu.memory_space<any>>) dst(%197 : memref<480x128xf32, #tpu.memory_space<any>>)
    %c4_i32_100 = arith.constant 4 : i32
    %c1920_i32_101 = arith.constant 1920 : i32
    %c0_i32_102 = arith.constant 0 : i32
    %200 = tpu.memref_slice %arg19[%arg0, %c1920_i32_101, %c0_i32_102] : memref<2x2048x128xf32, #tpu.memory_space<any>> -> memref<1x128x128xf32, #tpu.memory_space<any>>
    %201 = tpu.memref_squeeze %200 : memref<1x128x128xf32, #tpu.memory_space<any>> -> memref<128x128xf32, #tpu.memory_space<any>>
    %202 = tpu.memref_slice %arg26[%c4_i32_100] : memref<6x!tpu.dma_semaphore, #tpu.memory_space<semaphore_mem>> -> memref<1x!tpu.dma_semaphore, #tpu.memory_space<semaphore_mem>>
    %203 = tpu.memref_squeeze %202 : memref<1x!tpu.dma_semaphore, #tpu.memory_space<semaphore_mem>> -> memref<!tpu.dma_semaphore, #tpu.memory_space<semaphore_mem>>
    tpu.wait_dma2 semaphore(%203 : memref<!tpu.dma_semaphore, #tpu.memory_space<semaphore_mem>>) src(%arg24 : memref<128x128xf32, #tpu.memory_space<vmem>>) dst(%201 : memref<128x128xf32, #tpu.memory_space<any>>)
    %c5_i32_103 = arith.constant 5 : i32
    %c480_i32_104 = arith.constant 480 : i32
    %c0_i32_105 = arith.constant 0 : i32
    %204 = tpu.memref_slice %arg20[%arg0, %c480_i32_104, %c0_i32_105] : memref<2x512x128xf32, #tpu.memory_space<any>> -> memref<1x32x128xf32, #tpu.memory_space<any>>
    %205 = tpu.memref_squeeze %204 : memref<1x32x128xf32, #tpu.memory_space<any>> -> memref<32x128xf32, #tpu.memory_space<any>>
    %206 = tpu.memref_slice %arg26[%c5_i32_103] : memref<6x!tpu.dma_semaphore, #tpu.memory_space<semaphore_mem>> -> memref<1x!tpu.dma_semaphore, #tpu.memory_space<semaphore_mem>>
    %207 = tpu.memref_squeeze %206 : memref<1x!tpu.dma_semaphore, #tpu.memory_space<semaphore_mem>> -> memref<!tpu.dma_semaphore, #tpu.memory_space<semaphore_mem>>
    tpu.wait_dma2 semaphore(%207 : memref<!tpu.dma_semaphore, #tpu.memory_space<semaphore_mem>>) src(%arg25 : memref<32x128xf32, #tpu.memory_space<vmem>>) dst(%205 : memref<32x128xf32, #tpu.memory_space<any>>)
    return
  }
  func.func @transform_0(%arg0: i32) -> (i32, i32, i32) {
    %c0_i32 = arith.constant 0 : i32
    %c0_i32_0 = arith.constant 0 : i32
    %c0_i32_1 = arith.constant 0 : i32
    return %arg0, %c0_i32, %c0_i32_0 : i32, i32, i32
  }
  func.func @transform_3(%arg0: i32) -> (i32, i32, i32) {
    %c0_i32 = arith.constant 0 : i32
    %c0_i32_0 = arith.constant 0 : i32
    %c0_i32_1 = arith.constant 0 : i32
    return %arg0, %c0_i32, %c0_i32_0 : i32, i32, i32
  }
  func.func @transform_4(%arg0: i32) -> (i32, i32, i32) {
    %c0_i32 = arith.constant 0 : i32
    %c0_i32_0 = arith.constant 0 : i32
    %c0_i32_1 = arith.constant 0 : i32
    %c0_i32_2 = arith.constant 0 : i32
    return %c0_i32, %c0_i32_0, %c0_i32_1 : i32, i32, i32
  }
  func.func @transform_5(%arg0: i32) -> (i32, i32) {
    %c0_i32 = arith.constant 0 : i32
    %c0_i32_0 = arith.constant 0 : i32
    %c0_i32_1 = arith.constant 0 : i32
    return %c0_i32, %c0_i32_0 : i32, i32
  }
  func.func @transform_6(%arg0: i32) -> (i32, i32) {
    %c0_i32 = arith.constant 0 : i32
    %c0_i32_0 = arith.constant 0 : i32
    %c0_i32_1 = arith.constant 0 : i32
    return %c0_i32, %c0_i32_0 : i32, i32
  }
  func.func @transform_7(%arg0: i32) -> (i32, i32) {
    %c0_i32 = arith.constant 0 : i32
    %c0_i32_0 = arith.constant 0 : i32
    %c0_i32_1 = arith.constant 0 : i32
    return %c0_i32, %c0_i32_0 : i32, i32
  }
  func.func @transform_8(%arg0: i32) -> (i32, i32) {
    %c0_i32 = arith.constant 0 : i32
    %c0_i32_0 = arith.constant 0 : i32
    %c0_i32_1 = arith.constant 0 : i32
    return %c0_i32, %c0_i32_0 : i32, i32
  }
  func.func @transform_9(%arg0: i32) -> (i32, i32) {
    %c0_i32 = arith.constant 0 : i32
    %c0_i32_0 = arith.constant 0 : i32
    %c0_i32_1 = arith.constant 0 : i32
    return %c0_i32, %c0_i32_0 : i32, i32
  }
  func.func @transform_10(%arg0: i32) -> (i32, i32) {
    %c0_i32 = arith.constant 0 : i32
    %c0_i32_0 = arith.constant 0 : i32
    %c0_i32_1 = arith.constant 0 : i32
    return %c0_i32, %c0_i32_0 : i32, i32
  }
  func.func @transform_11(%arg0: i32) -> (i32, i32) {
    %c0_i32 = arith.constant 0 : i32
    %c0_i32_0 = arith.constant 0 : i32
    %c0_i32_1 = arith.constant 0 : i32
    return %c0_i32, %c0_i32_0 : i32, i32
  }
  func.func @transform_12(%arg0: i32) -> (i32, i32) {
    %c0_i32 = arith.constant 0 : i32
    %c0_i32_0 = arith.constant 0 : i32
    %c0_i32_1 = arith.constant 0 : i32
    return %c0_i32, %c0_i32_0 : i32, i32
  }
  func.func @transform_13(%arg0: i32) -> (i32, i32) {
    %c0_i32 = arith.constant 0 : i32
    %c0_i32_0 = arith.constant 0 : i32
    %c0_i32_1 = arith.constant 0 : i32
    return %c0_i32, %c0_i32_0 : i32, i32
  }
  func.func @transform_14(%arg0: i32) -> (i32, i32) {
    %c0_i32 = arith.constant 0 : i32
    %c0_i32_0 = arith.constant 0 : i32
    %c0_i32_1 = arith.constant 0 : i32
    return %c0_i32, %c0_i32_0 : i32, i32
  }
  func.func @transform_15(%arg0: i32) -> (i32, i32) {
    %c0_i32 = arith.constant 0 : i32
    %c0_i32_0 = arith.constant 0 : i32
    %c0_i32_1 = arith.constant 0 : i32
    return %c0_i32, %c0_i32_0 : i32, i32
  }
  func.func @transform_16(%arg0: i32) -> (i32, i32) {
    %c0_i32 = arith.constant 0 : i32
    %c0_i32_0 = arith.constant 0 : i32
    %c0_i32_1 = arith.constant 0 : i32
    return %c0_i32, %c0_i32_0 : i32, i32
  }
  func.func @transform_17(%arg0: i32) -> (i32, i32, i32) {
    %c0_i32 = arith.constant 0 : i32
    %c0_i32_0 = arith.constant 0 : i32
    %c0_i32_1 = arith.constant 0 : i32
    return %arg0, %c0_i32, %c0_i32_0 : i32, i32, i32
  }
  func.func @transform_20(%arg0: i32) -> (i32, i32, i32) {
    %c0_i32 = arith.constant 0 : i32
    %c0_i32_0 = arith.constant 0 : i32
    %c0_i32_1 = arith.constant 0 : i32
    return %arg0, %c0_i32, %c0_i32_0 : i32, i32, i32
  }
}

</mosaic_0001>

<llo_original>
// kernel: tpu_custom_call.1
$region0: #{tpu_custom_call.1}
  #allocation0 [shape = 'u32[]', space=smem, size = 0x4, offset = 0x4, fixed_abs, tag = 'smem constant byte address 0x4 - core index']
  #allocation1 [shape = 'u32[144,128]{1,0:T(1,128)}', space=vmem, size = 0x12000, scoped, tag = 'internal scratch']
  #allocation2 [shape = 'f32[8,128]{1,0:T(8,128)}', space=vmem, size = 0x1000, scoped, tag = 'scratch operand']
  #allocation3 [shape = 'f32[8,128]{1,0:T(8,128)}', space=vmem, size = 0x1000, scoped, tag = 'scratch operand']
  #allocation4 [shape = 'f32[128,128]{1,0:T(8,128)}', space=vmem, size = 0x10000, scoped, tag = 'scratch operand']
  #allocation5 [shape = 'f32[32,128]{1,0:T(8,128)}', space=vmem, size = 0x4000, scoped, tag = 'scratch operand']
  #allocation6 [shape = 's32[6]{0}', space=sflag, size = 0x18, scoped, tag = 'scratch operand']
  #allocation31 [shape = 's32[]', space=sflag, size = 0x4, offset = 0, fixed_abs, tag = 'sflag constant byte address 0x0 - dummy sync flag']
  #allocation32 [shape = 'u32[0]{0}', space=smem, size = 0, offset = 0, fixed_abs, tag = 'smem constant byte address 0x0 - null']
  #allocation33 [shape = 's32[]', space=sflag, size = 0x4, offset = 0, fixed_abs, tag = 'sflag constant byte address 0x0 - dummy sync flag']
  #allocation34 [shape = 'u32[0]{0}', space=smem, size = 0, offset = 0, fixed_abs, tag = 'smem constant byte address 0x0 - null']
  #allocation35 [shape = 's32[]', space=sflag, size = 0x4, offset = 0, fixed_abs, tag = 'sflag constant byte address 0x0 - dummy sync flag']
  #allocation36 [shape = 's32[]', space=sflag, size = 0x4, offset = 0, fixed_abs, tag = 'sflag constant byte address 0x0 - dummy sync flag']
  #allocation37 [shape = 'u32[]', space=smem, size = 0x4, offset = 0x44, fixed_abs, tag = 'smem constant byte address 0x44 - assertion arg 0']
  #allocation38 [shape = 'u32[]', space=smem, size = 0x4, offset = 0x48, fixed_abs, tag = 'smem constant byte address 0x48 - assertion arg 1']
  #allocation39 [shape = 's32[]', space=sflag, size = 0x4, offset = 0, fixed_abs, tag = 'sflag constant byte address 0x0 - dummy sync flag']
  #allocation40 [shape = 's32[]', space=sflag, size = 0x4, offset = 0, fixed_abs, tag = 'sflag constant byte address 0x0 - dummy sync flag']
  #allocation41 [shape = 's32[]', space=sflag, size = 0x4, offset = 0, fixed_abs, tag = 'sflag constant byte address 0x0 - dummy sync flag']
  #allocation42 [shape = 's32[]', space=sflag, size = 0x4, offset = 0, fixed_abs, tag = 'sflag constant byte address 0x0 - dummy sync flag']
  #allocation43 [shape = 's32[]', space=sflag, size = 0x4, offset = 0, fixed_abs, tag = 'sflag constant byte address 0x0 - dummy sync flag']
  #allocation44 [shape = 's32[]', space=sflag, size = 0x4, offset = 0, fixed_abs, tag = 'sflag constant byte address 0x0 - dummy sync flag']
  %s0 = inlined_call_operand.vmem [shape: f32[2,136,4], index: 0, kind: input, shape index: {}]
  %s1 = inlined_call_operand.hbm [shape: f32[2,2048,128], index: 1, kind: input, shape index: {}]
  %s2 = inlined_call_operand.hbm [shape: f32[2,512,128], index: 2, kind: input, shape index: {}]
  %s3 = inlined_call_operand.hbm [shape: f32[2,128,128], index: 3, kind: input, shape index: {}]
  %s4 = inlined_call_operand.hbm [shape: f32[3,4,128], index: 4, kind: input, shape index: {}]
  %s5 = inlined_call_operand.hbm [shape: f32[1,128], index: 5, kind: input, shape index: {}]
  %s6 = inlined_call_operand.hbm [shape: f32[1,128], index: 6, kind: input, shape index: {}]
  %s7 = inlined_call_operand.hbm [shape: f32[384,128], index: 7, kind: input, shape index: {}]
  %s8 = inlined_call_operand.hbm [shape: f32[1,128], index: 8, kind: input, shape index: {}]
  %s9 = inlined_call_operand.hbm [shape: f32[1,128], index: 9, kind: input, shape index: {}]
  %s10 = inlined_call_operand.hbm [shape: f32[384,128], index: 10, kind: input, shape index: {}]
  %s11 = inlined_call_operand.hbm [shape: f32[1,128], index: 11, kind: input, shape index: {}]
  %s12 = inlined_call_operand.hbm [shape: f32[1,128], index: 12, kind: input, shape index: {}]
  %s13 = inlined_call_operand.hbm [shape: f32[2048,128], index: 13, kind: input, shape index: {}]
  %s14 = inlined_call_operand.hbm [shape: f32[1,128], index: 14, kind: input, shape index: {}]
  %s15 = inlined_call_operand.hbm [shape: f32[128,128], index: 15, kind: input, shape index: {}]
  %s16 = inlined_call_operand.hbm [shape: f32[1,128], index: 16, kind: input, shape index: {}]
  %s17 = inlined_call_operand.vmem [shape: f32[2,17,128], index: 17, kind: output, shape index: {0}]
  %s18 = inlined_call_operand.hbm [shape: f32[2,2048,128], index: 18, kind: output, shape index: {1}]
  %s19 = inlined_call_operand.hbm [shape: f32[2,512,128], index: 19, kind: output, shape index: {2}]
  %s20 = inlined_call_operand.hbm [shape: f32[2,128,128], index: 20, kind: output, shape index: {3}]
  %21 = xla_tuple %s17, %s18, %s19, %s20
  %s22 = sld [smem:[#allocation0]]
  $region173: #{tpu_custom_call.1} parent=0
    _
  %s24 = ssub.s32 1, %s22
  %s25 = scalar_select 0, %s24, %s22
  $region1: #{tpu_custom_call.1} parent=0
    #allocation7 [shape = 'u8[131072]{0}', space=vmem, size = 0x20000, scoped, tag = 'input window, operand 3']
    #allocation8 [shape = 's32[2]{0}', space=sflag, size = 0x8, scoped, tag = 'scoped memory for tpu_custom_call.1']
    #allocation9 [shape = 's32[2]{0}', space=sflag, size = 0x8, scoped, tag = 'scoped memory for tpu_custom_call.1']
    #allocation10 [shape = 'u8[6144]{0}', space=vmem, size = 0x1800, scoped, tag = 'input window, operand 4, single buffered']
    #allocation11 [shape = 's32[1]{0}', space=sflag, size = 0x4, scoped, tag = 'scoped memory for tpu_custom_call.1']
    #allocation12 [shape = 'u8[512]{0}', space=vmem, size = 0x400, scoped, tag = 'input window, operand 5, single buffered']
    #allocation13 [shape = 'u8[512]{0}', space=vmem, size = 0x400, scoped, tag = 'input window, operand 6, single buffered']
    #allocation14 [shape = 's32[1]{0}', space=sflag, size = 0x4, scoped, tag = 'scoped memory for tpu_custom_call.1']
    #allocation15 [shape = 'u8[196608]{0}', space=vmem, size = 0x30000, scoped, tag = 'input window, operand 7, single buffered']
    #allocation16 [shape = 'u8[512]{0}', space=vmem, size = 0x400, scoped, tag = 'input window, operand 8, single buffered']
    #allocation17 [shape = 's32[1]{0}', space=sflag, size = 0x4, scoped, tag = 'scoped memory for tpu_custom_call.1']
    #allocation18 [shape = 'u8[512]{0}', space=vmem, size = 0x400, scoped, tag = 'input window, operand 9, single buffered']
    #allocation19 [shape = 'u8[196608]{0}', space=vmem, size = 0x30000, scoped, tag = 'input window, operand 10, single buffered']
    #allocation20 [shape = 's32[1]{0}', space=sflag, size = 0x4, scoped, tag = 'scoped memory for tpu_custom_call.1']
    #allocation21 [shape = 'u8[512]{0}', space=vmem, size = 0x400, scoped, tag = 'input window, operand 11, single buffered']
    #allocation22 [shape = 'u8[512]{0}', space=vmem, size = 0x400, scoped, tag = 'input window, operand 12, single buffered']
    #allocation23 [shape = 's32[1]{0}', space=sflag, size = 0x4, scoped, tag = 'scoped memory for tpu_custom_call.1']
    #allocation24 [shape = 'u8[1048576]{0}', space=vmem, size = 0x100000, scoped, tag = 'input window, operand 13, single buffered']
    #allocation25 [shape = 'u8[512]{0}', space=vmem, size = 0x400, scoped, tag = 'input window, operand 14, single buffered']
    #allocation26 [shape = 's32[1]{0}', space=sflag, size = 0x4, scoped, tag = 'scoped memory for tpu_custom_call.1']
    #allocation27 [shape = 'u8[65536]{0}', space=vmem, size = 0x10000, scoped, tag = 'input window, operand 15, single buffered']
    #allocation28 [shape = 'u8[512]{0}', space=vmem, size = 0x400, scoped, tag = 'input window, operand 16, single buffered']
    #allocation29 [shape = 's32[1]{0}', space=sflag, size = 0x4, scoped, tag = 'scoped memory for tpu_custom_call.1']
    #allocation30 [shape = 'u8[131072]{0}', space=vmem, size = 0x20000, scoped, tag = 'output window, operand 3']
    %26 = vsyncpa [#allocation8], 0
    %s27 = scalar_lea.sflag [#allocation8], 1
    %28 = vsyncpa %s27, 0
    %29 = vsyncpa [#allocation11], 0
    %30 = vsyncpa [#allocation14], 0
    %31 = vsyncpa [#allocation17], 0
    %32 = vsyncpa [#allocation20], 0
    %33 = vsyncpa [#allocation23], 0
    %34 = vsyncpa [#allocation26], 0
    %35 = vsyncpa [#allocation29], 0
    %36 = vsyncpa [#allocation9], 0
    %s37 = scalar_lea.sflag [#allocation9], 1
    %38 = vsyncpa %s37, 0
    loop: start=0, step=1, limit=4
    $region2: #{tpu_custom_call.1} parent=1 // loop_pre_header
      _
    $region3: #{tpu_custom_call.1} parent=1 // loop_header
      %s40 = sphi 0, %s44
      %p41 = scmp.ge.s32.totalorder %s40, 4
      %s50 = sphi 0, %s52
      %s53 = sphi 0, %s50
      %s54 = sphi 0, %s53
      %s70 = sphi 0, %s54
      %s76 = sphi 0, %s78
      %s79 = sphi 0, %s76
      %s80 = sphi 0, %s79
      %s96 = sphi 0, %s80
      %s100 = sphi 0, %s100
      %s102 = sphi 0, %s100
      %s103 = sphi 0, %s102
      %s117 = sphi 0, %s103
      %s121 = sphi 0, %s121
      %s123 = sphi 0, %s121
      %s124 = sphi 0, %s123
      %s138 = sphi 0, %s124
      %s142 = sphi 0, %s142
      %s144 = sphi 0, %s142
      %s145 = sphi 0, %s144
      %s159 = sphi 0, %s145
      %s163 = sphi 0, %s163
      %s165 = sphi 0, %s163
      %s166 = sphi 0, %s165
      %s180 = sphi 0, %s166
      %s184 = sphi 0, %s184
      %s186 = sphi 0, %s184
      %s187 = sphi 0, %s186
      %s201 = sphi 0, %s187
      %s205 = sphi 0, %s205
      %s207 = sphi 0, %s205
      %s208 = sphi 0, %s207
      %s222 = sphi 0, %s208
      %s226 = sphi 0, %s226
      %s228 = sphi 0, %s226
      %s229 = sphi 0, %s228
      %s243 = sphi 0, %s229
      %s247 = sphi 0, %s247
      %s249 = sphi 0, %s247
      %s250 = sphi 0, %s249
      %s264 = sphi 0, %s250
      %s268 = sphi 0, %s268
      %s270 = sphi 0, %s268
      %s271 = sphi 0, %s270
      %s285 = sphi 0, %s271
      %s289 = sphi 0, %s289
      %s291 = sphi 0, %s289
      %s292 = sphi 0, %s291
      %s306 = sphi 0, %s292
      %s310 = sphi 0, %s310
      %s312 = sphi 0, %s310
      %s313 = sphi 0, %s312
      %s327 = sphi 0, %s313
      %s331 = sphi 0, %s331
      %s333 = sphi 0, %s331
      %s334 = sphi 0, %s333
      %s348 = sphi 0, %s334
      %s352 = sphi 0, %s352
      %s354 = sphi 0, %s352
      %s355 = sphi 0, %s354
      %s369 = sphi 0, %s355
      %s375 = sphi 0, %s377
      %s378 = sphi 0, %s375
      %s379 = sphi 0, %s378
      %s395 = sphi 0, %s379
      %s401 = sphi 0, %s403
      %s404 = sphi 0, %s401
      %s405 = sphi 0, %s404
      %s421 = sphi 0, %s405
    $region4: #{tpu_custom_call.1} parent=1 // loop_header_branch
      %43 = sbr.rel (%p41) target = $region8
    $region5: #{tpu_custom_call.1} parent=1 // loop_body
      %s45 = ssub.s32 %s40, 1
      %s46 = ssub.s32 %s40, 2
      %s47 = sadd.s32 %s40, 1
      %s48 = ssub.s32 %s40, %s47
      %p49 = scmp.eq.s32.totalorder %s48, 0
      %s51 = sadd.s32 %s50, 1
      %s52 = scalar_select %p49, %s50, %s51
      %p55 = pneg %p49
      %p56 = scmp.eq.s32.totalorder %s40, 1
      %p57 = por %p55, %p56
      %p58 = scmp.ne.s32.totalorder %s50, %s53
      %p59 = scmp.eq.s32.totalorder %s40, 0
      %p60 = por %p58, %p59
      %p61 = scmp.ne.s32.totalorder %s50, %s53
      %p62 = scmp.eq.s32.totalorder %s45, 1
      %p63 = por %p61, %p62
      %p64 = scmp.ne.s32.totalorder %s53, %s54
      %p65 = scmp.eq.s32.totalorder %s45, 0
      %p66 = por %p64, %p65
      %p67 = scmp.ne.s32.totalorder %s53, %s54
      %p68 = scmp.eq.s32.totalorder %s46, 1
      %p69 = por %p67, %p68
      %p71 = scmp.ne.s32.totalorder %s54, %s70
      %p72 = scmp.eq.s32.totalorder %s46, 0
      %p73 = por %p71, %p72
      %s74 = ssub.s32 %s40, %s47
      %p75 = scmp.eq.s32.totalorder %s74, 0
      %s77 = sadd.s32 %s76, 1
      %s78 = scalar_select %p75, %s76, %s77
      %p81 = pneg %p75
      %p82 = scmp.eq.s32.totalorder %s40, 1
      %p83 = por %p81, %p82
      %p84 = scmp.ne.s32.totalorder %s76, %s79
      %p85 = scmp.eq.s32.totalorder %s40, 0
      %p86 = por %p84, %p85
      %p87 = scmp.ne.s32.totalorder %s76, %s79
      %p88 = scmp.eq.s32.totalorder %s45, 1
      %p89 = por %p87, %p88
      %p90 = scmp.ne.s32.totalorder %s79, %s80
      %p91 = scmp.eq.s32.totalorder %s45, 0
      %p92 = por %p90, %p91
      %p93 = scmp.ne.s32.totalorder %s79, %s80
      %p94 = scmp.eq.s32.totalorder %s46, 1
      %p95 = por %p93, %p94
      %p97 = scmp.ne.s32.totalorder %s80, %s96
      %p98 = scmp.eq.s32.totalorder %s46, 0
      %p99 = por %p97, %p98
      %s101 = sadd.s32 %s100, 1
      %p104 = scmp.eq.s32.totalorder %s40, 1
      %p105 = scmp.ne.s32.totalorder %s100, %s102
      %p106 = scmp.eq.s32.totalorder %s40, 0
      %p107 = por %p105, %p106
      %p108 = scmp.ne.s32.totalorder %s100, %s102
      %p109 = scmp.eq.s32.totalorder %s45, 1
      %p110 = por %p108, %p109
      %p111 = scmp.ne.s32.totalorder %s102, %s103
      %p112 = scmp.eq.s32.totalorder %s45, 0
      %p113 = por %p111, %p112
      %p114 = scmp.ne.s32.totalorder %s102, %s103
      %p115 = scmp.eq.s32.totalorder %s46, 1
      %p116 = por %p114, %p115
      %p118 = scmp.ne.s32.totalorder %s103, %s117
      %p119 = scmp.eq.s32.totalorder %s46, 0
      %p120 = por %p118, %p119
      %s122 = sadd.s32 %s121, 1
      %p125 = scmp.eq.s32.totalorder %s40, 1
      %p126 = scmp.ne.s32.totalorder %s121, %s123
      %p127 = scmp.eq.s32.totalorder %s40, 0
      %p128 = por %p126, %p127
      %p129 = scmp.ne.s32.totalorder %s121, %s123
      %p130 = scmp.eq.s32.totalorder %s45, 1
      %p131 = por %p129, %p130
      %p132 = scmp.ne.s32.totalorder %s123, %s124
      %p133 = scmp.eq.s32.totalorder %s45, 0
      %p134 = por %p132, %p133
      %p135 = scmp.ne.s32.totalorder %s123, %s124
      %p136 = scmp.eq.s32.totalorder %s46, 1
      %p137 = por %p135, %p136
      %p139 = scmp.ne.s32.totalorder %s124, %s138
      %p140 = scmp.eq.s32.totalorder %s46, 0
      %p141 = por %p139, %p140
      %s143 = sadd.s32 %s142, 1
      %p146 = scmp.eq.s32.totalorder %s40, 1
      %p147 = scmp.ne.s32.totalorder %s142, %s144
      %p148 = scmp.eq.s32.totalorder %s40, 0
      %p149 = por %p147, %p148
      %p150 = scmp.ne.s32.totalorder %s142, %s144
      %p151 = scmp.eq.s32.totalorder %s45, 1
      %p152 = por %p150, %p151
      %p153 = scmp.ne.s32.totalorder %s144, %s145
      %p154 = scmp.eq.s32.totalorder %s45, 0
      %p155 = por %p153, %p154
      %p156 = scmp.ne.s32.totalorder %s144, %s145
      %p157 = scmp.eq.s32.totalorder %s46, 1
      %p158 = por %p156, %p157
      %p160 = scmp.ne.s32.totalorder %s145, %s159
      %p161 = scmp.eq.s32.totalorder %s46, 0
      %p162 = por %p160, %p161
      %s164 = sadd.s32 %s163, 1
      %p167 = scmp.eq.s32.totalorder %s40, 1
      %p168 = scmp.ne.s32.totalorder %s163, %s165
      %p169 = scmp.eq.s32.totalorder %s40, 0
      %p170 = por %p168, %p169
      %p171 = scmp.ne.s32.totalorder %s163, %s165
      %p172 = scmp.eq.s32.totalorder %s45, 1
      %p173 = por %p171, %p172
      %p174 = scmp.ne.s32.totalorder %s165, %s166
      %p175 = scmp.eq.s32.totalorder %s45, 0
      %p176 = por %p174, %p175
      %p177 = scmp.ne.s32.totalorder %s165, %s166
      %p178 = scmp.eq.s32.totalorder %s46, 1
      %p179 = por %p177, %p178
      %p181 = scmp.ne.s32.totalorder %s166, %s180
      %p182 = scmp.eq.s32.totalorder %s46, 0
      %p183 = por %p181, %p182
      %s185 = sadd.s32 %s184, 1
      %p188 = scmp.eq.s32.totalorder %s40, 1
      %p189 = scmp.ne.s32.totalorder %s184, %s186
      %p190 = scmp.eq.s32.totalorder %s40, 0
      %p191 = por %p189, %p190
      %p192 = scmp.ne.s32.totalorder %s184, %s186
      %p193 = scmp.eq.s32.totalorder %s45, 1
      %p194 = por %p192, %p193
      %p195 = scmp.ne.s32.totalorder %s186, %s187
      %p196 = scmp.eq.s32.totalorder %s45, 0
      %p197 = por %p195, %p196
      %p198 = scmp.ne.s32.totalorder %s186, %s187
      %p199 = scmp.eq.s32.totalorder %s46, 1
      %p200 = por %p198, %p199
      %p202 = scmp.ne.s32.totalorder %s187, %s201
      %p203 = scmp.eq.s32.totalorder %s46, 0
      %p204 = por %p202, %p203
      %s206 = sadd.s32 %s205, 1
      %p209 = scmp.eq.s32.totalorder %s40, 1
      %p210 = scmp.ne.s32.totalorder %s205, %s207
      %p211 = scmp.eq.s32.totalorder %s40, 0
      %p212 = por %p210, %p211
      %p213 = scmp.ne.s32.totalorder %s205, %s207
      %p214 = scmp.eq.s32.totalorder %s45, 1
      %p215 = por %p213, %p214
      %p216 = scmp.ne.s32.totalorder %s207, %s208
      %p217 = scmp.eq.s32.totalorder %s45, 0
      %p218 = por %p216, %p217
      %p219 = scmp.ne.s32.totalorder %s207, %s208
      %p220 = scmp.eq.s32.totalorder %s46, 1
      %p221 = por %p219, %p220
      %p223 = scmp.ne.s32.totalorder %s208, %s222
      %p224 = scmp.eq.s32.totalorder %s46, 0
      %p225 = por %p223, %p224
      %s227 = sadd.s32 %s226, 1
      %p230 = scmp.eq.s32.totalorder %s40, 1
      %p231 = scmp.ne.s32.totalorder %s226, %s228
      %p232 = scmp.eq.s32.totalorder %s40, 0
      %p233 = por %p231, %p232
      %p234 = scmp.ne.s32.totalorder %s226, %s228
      %p235 = scmp.eq.s32.totalorder %s45, 1
      %p236 = por %p234, %p235
      %p237 = scmp.ne.s32.totalorder %s228, %s229
      %p238 = scmp.eq.s32.totalorder %s45, 0
      %p239 = por %p237, %p238
      %p240 = scmp.ne.s32.totalorder %s228, %s229
      %p241 = scmp.eq.s32.totalorder %s46, 1
      %p242 = por %p240, %p241
      %p244 = scmp.ne.s32.totalorder %s229, %s243
      %p245 = scmp.eq.s32.totalorder %s46, 0
      %p246 = por %p244, %p245
      %s248 = sadd.s32 %s247, 1
      %p251 = scmp.eq.s32.totalorder %s40, 1
      %p252 = scmp.ne.s32.totalorder %s247, %s249
      %p253 = scmp.eq.s32.totalorder %s40, 0
      %p254 = por %p252, %p253
      %p255 = scmp.ne.s32.totalorder %s247, %s249
      %p256 = scmp.eq.s32.totalorder %s45, 1
      %p257 = por %p255, %p256
      %p258 = scmp.ne.s32.totalorder %s249, %s250
      %p259 = scmp.eq.s32.totalorder %s45, 0
      %p260 = por %p258, %p259
      %p261 = scmp.ne.s32.totalorder %s249, %s250
      %p262 = scmp.eq.s32.totalorder %s46, 1
      %p263 = por %p261, %p262
      %p265 = scmp.ne.s32.totalorder %s250, %s264
      %p266 = scmp.eq.s32.totalorder %s46, 0
      %p267 = por %p265, %p266
      %s269 = sadd.s32 %s268, 1
      %p272 = scmp.eq.s32.totalorder %s40, 1
      %p273 = scmp.ne.s32.totalorder %s268, %s270
      %p274 = scmp.eq.s32.totalorder %s40, 0
      %p275 = por %p273, %p274
      %p276 = scmp.ne.s32.totalorder %s268, %s270
      %p277 = scmp.eq.s32.totalorder %s45, 1
      %p278 = por %p276, %p277
      %p279 = scmp.ne.s32.totalorder %s270, %s271
      %p280 = scmp.eq.s32.totalorder %s45, 0
      %p281 = por %p279, %p280
      %p282 = scmp.ne.s32.totalorder %s270, %s271
      %p283 = scmp.eq.s32.totalorder %s46, 1
      %p284 = por %p282, %p283
      %p286 = scmp.ne.s32.totalorder %s271, %s285
      %p287 = scmp.eq.s32.totalorder %s46, 0
      %p288 = por %p286, %p287
      %s290 = sadd.s32 %s289, 1
      %p293 = scmp.eq.s32.totalorder %s40, 1
      %p294 = scmp.ne.s32.totalorder %s289, %s291
      %p295 = scmp.eq.s32.totalorder %s40, 0
      %p296 = por %p294, %p295
      %p297 = scmp.ne.s32.totalorder %s289, %s291
      %p298 = scmp.eq.s32.totalorder %s45, 1
      %p299 = por %p297, %p298
      %p300 = scmp.ne.s32.totalorder %s291, %s292
      %p301 = scmp.eq.s32.totalorder %s45, 0
      %p302 = por %p300, %p301
      %p303 = scmp.ne.s32.totalorder %s291, %s292
      %p304 = scmp.eq.s32.totalorder %s46, 1
      %p305 = por %p303, %p304
      %p307 = scmp.ne.s32.totalorder %s292, %s306
      %p308 = scmp.eq.s32.totalorder %s46, 0
      %p309 = por %p307, %p308
      %s311 = sadd.s32 %s310, 1
      %p314 = scmp.eq.s32.totalorder %s40, 1
      %p315 = scmp.ne.s32.totalorder %s310, %s312
      %p316 = scmp.eq.s32.totalorder %s40, 0
      %p317 = por %p315, %p316
      %p318 = scmp.ne.s32.totalorder %s310, %s312
      %p319 = scmp.eq.s32.totalorder %s45, 1
      %p320 = por %p318, %p319
      %p321 = scmp.ne.s32.totalorder %s312, %s313
      %p322 = scmp.eq.s32.totalorder %s45, 0
      %p323 = por %p321, %p322
      %p324 = scmp.ne.s32.totalorder %s312, %s313
      %p325 = scmp.eq.s32.totalorder %s46, 1
      %p326 = por %p324, %p325
      %p328 = scmp.ne.s32.totalorder %s313, %s327
      %p329 = scmp.eq.s32.totalorder %s46, 0
      %p330 = por %p328, %p329
      %s332 = sadd.s32 %s331, 1
      %p335 = scmp.eq.s32.totalorder %s40, 1
      %p336 = scmp.ne.s32.totalorder %s331, %s333
      %p337 = scmp.eq.s32.totalorder %s40, 0
      %p338 = por %p336, %p337
      %p339 = scmp.ne.s32.totalorder %s331, %s333
      %p340 = scmp.eq.s32.totalorder %s45, 1
      %p341 = por %p339, %p340
      %p342 = scmp.ne.s32.totalorder %s333, %s334
      %p343 = scmp.eq.s32.totalorder %s45, 0
      %p344 = por %p342, %p343
      %p345 = scmp.ne.s32.totalorder %s333, %s334
      %p346 = scmp.eq.s32.totalorder %s46, 1
      %p347 = por %p345, %p346
      %p349 = scmp.ne.s32.totalorder %s334, %s348
      %p350 = scmp.eq.s32.totalorder %s46, 0
      %p351 = por %p349, %p350
      %s353 = sadd.s32 %s352, 1
      %p356 = scmp.eq.s32.totalorder %s40, 1
      %p357 = scmp.ne.s32.totalorder %s352, %s354
      %p358 = scmp.eq.s32.totalorder %s40, 0
      %p359 = por %p357, %p358
      %p360 = scmp.ne.s32.totalorder %s352, %s354
      %p361 = scmp.eq.s32.totalorder %s45, 1
      %p362 = por %p360, %p361
      %p363 = scmp.ne.s32.totalorder %s354, %s355
      %p364 = scmp.eq.s32.totalorder %s45, 0
      %p365 = por %p363, %p364
      %p366 = scmp.ne.s32.totalorder %s354, %s355
      %p367 = scmp.eq.s32.totalorder %s46, 1
      %p368 = por %p366, %p367
      %p370 = scmp.ne.s32.totalorder %s355, %s369
      %p371 = scmp.eq.s32.totalorder %s46, 0
      %p372 = por %p370, %p371
      %s373 = ssub.s32 %s40, %s47
      %p374 = scmp.eq.s32.totalorder %s373, 0
      %s376 = sadd.s32 %s375, 1
      %s377 = scalar_select %p374, %s375, %s376
      %p380 = pneg %p374
      %p381 = scmp.eq.s32.totalorder %s40, 1
      %p382 = por %p380, %p381
      %p383 = scmp.ne.s32.totalorder %s375, %s378
      %p384 = scmp.eq.s32.totalorder %s40, 0
      %p385 = por %p383, %p384
      %p386 = scmp.ne.s32.totalorder %s375, %s378
      %p387 = scmp.eq.s32.totalorder %s45, 1
      %p388 = por %p386, %p387
      %p389 = scmp.ne.s32.totalorder %s378, %s379
      %p390 = scmp.eq.s32.totalorder %s45, 0
      %p391 = por %p389, %p390
      %p392 = scmp.ne.s32.totalorder %s378, %s379
      %p393 = scmp.eq.s32.totalorder %s46, 1
      %p394 = por %p392, %p393
      %p396 = scmp.ne.s32.totalorder %s379, %s395
      %p397 = scmp.eq.s32.totalorder %s46, 0
      %p398 = por %p396, %p397
      %s399 = ssub.s32 %s40, %s47
      %p400 = scmp.eq.s32.totalorder %s399, 0
      %s402 = sadd.s32 %s401, 1
      %s403 = scalar_select %p400, %s401, %s402
      %p406 = pneg %p400
      %p407 = scmp.eq.s32.totalorder %s40, 1
      %p408 = por %p406, %p407
      %p409 = scmp.ne.s32.totalorder %s401, %s404
      %p410 = scmp.eq.s32.totalorder %s40, 0
      %p411 = por %p409, %p410
      %p412 = scmp.ne.s32.totalorder %s401, %s404
      %p413 = scmp.eq.s32.totalorder %s45, 1
      %p414 = por %p412, %p413
      %p415 = scmp.ne.s32.totalorder %s404, %s405
      %p416 = scmp.eq.s32.totalorder %s45, 0
      %p417 = por %p415, %p416
      %p418 = scmp.ne.s32.totalorder %s404, %s405
      %p419 = scmp.eq.s32.totalorder %s46, 1
      %p420 = por %p418, %p419
      %p422 = scmp.ne.s32.totalorder %s405, %s421
      %p423 = scmp.eq.s32.totalorder %s46, 0
      %p424 = por %p422, %p423
      %p425 = scmp.le.s32.totalorder 1, %s40
      %p426 = scmp.lt.s32.totalorder %s40, 3
      %p427 = pnand %p425, %p426
      %p428 = pneg %p427
      // Predicated region
      $region9: #{tpu_custom_call.1} parent=5 // pred_check
        _
      $region10: #{tpu_custom_call.1} parent=5 // pred_check_branch
        %430 = sbr.rel (%p427) target = $region12
      $region11: #{tpu_custom_call.1} parent=5 // pred_region
        %s431 = ssub.s32 %s40, 1
        // Predicated region
        $region13: #{tpu_custom_call.1} parent=11 // pred_check
          %p432 = pneg %p113
        $region14: #{tpu_custom_call.1} parent=11 // pred_check_branch
          %434 = sbr.rel (%p432) target = $region16
        $region15: #{tpu_custom_call.1} parent=11 // pred_region
          %s436 = ssub.s32 192, 192
          %437 = vsyncadd [#allocation11], %s436
          %s438 = sshll.u32 [#allocation10], 4
          %s439 = int_to_ptr.vmem [resolvable:$true] %s438
          %444 = dma.hbm_to_vmem [thread:$0]  %s4, 192, %s439, [#allocation11], 64, 64, 4
        $region16: #{tpu_custom_call.1} parent=11 // pred_fallthru
          _
        // Predicated region
        $region17: #{tpu_custom_call.1} parent=11 // pred_check
          %p445 = pneg %p134
        $region18: #{tpu_custom_call.1} parent=11 // pred_check_branch
          %447 = sbr.rel (%p445) target = $region20
        $region19: #{tpu_custom_call.1} parent=11 // pred_region
          %s449 = ssub.s32 16, 16
          %450 = vsyncadd [#allocation11], %s449
          %s452 = sshll.u32 [#allocation12], 4
          %s453 = int_to_ptr.vmem [resolvable:$true] %s452
          %455 = dma.hbm_to_vmem [thread:$0]  %s5, 16, %s453, [#allocation11]
        $region20: #{tpu_custom_call.1} parent=11 // pred_fallthru
          _
        // Predicated region
        $region21: #{tpu_custom_call.1} parent=11 // pred_check
          %p456 = pneg %p155
        $region22: #{tpu_custom_call.1} parent=11 // pred_check_branch
          %458 = sbr.rel (%p456) target = $region24
        $region23: #{tpu_custom_call.1} parent=11 // pred_region
          %s460 = ssub.s32 16, 16
          %461 = vsyncadd [#allocation14], %s460
          %s463 = sshll.u32 [#allocation13], 4
          %s464 = int_to_ptr.vmem [resolvable:$true] %s463
          %466 = dma.hbm_to_vmem [thread:$0]  %s6, 16, %s464, [#allocation14]
        $region24: #{tpu_custom_call.1} parent=11 // pred_fallthru
          _
        // Predicated region
        $region25: #{tpu_custom_call.1} parent=11 // pred_check
          %p467 = pneg %p176
        $region26: #{tpu_custom_call.1} parent=11 // pred_check_branch
          %469 = sbr.rel (%p467) target = $region28
        $region27: #{tpu_custom_call.1} parent=11 // pred_region
          %s471 = ssub.s32 6144, 6144
          %472 = vsyncadd [#allocation14], %s471
          %s473 = sshll.u32 [#allocation15], 4
          %s474 = int_to_ptr.vmem [resolvable:$true] %s473
          %479 = dma.hbm_to_vmem [thread:$0]  %s7, 6144, %s474, [#allocation14], 128, 128, 8
        $region28: #{tpu_custom_call.1} parent=11 // pred_fallthru
          _
        // Predicated region
        $region29: #{tpu_custom_call.1} parent=11 // pred_check
          %p480 = pneg %p197
        $region30: #{tpu_custom_call.1} parent=11 // pred_check_branch
          %482 = sbr.rel (%p480) target = $region32
        $region31: #{tpu_custom_call.1} parent=11 // pred_region
          %s484 = ssub.s32 16, 16
          %485 = vsyncadd [#allocation17], %s484
          %s487 = sshll.u32 [#allocation16], 4
          %s488 = int_to_ptr.vmem [resolvable:$true] %s487
          %490 = dma.hbm_to_vmem [thread:$0]  %s8, 16, %s488, [#allocation17]
        $region32: #{tpu_custom_call.1} parent=11 // pred_fallthru
          _
        // Predicated region
        $region33: #{tpu_custom_call.1} parent=11 // pred_check
          %p491 = pneg %p218
        $region34: #{tpu_custom_call.1} parent=11 // pred_check_branch
          %493 = sbr.rel (%p491) target = $region36
        $region35: #{tpu_custom_call.1} parent=11 // pred_region
          %s495 = ssub.s32 16, 16
          %496 = vsyncadd [#allocation17], %s495
          %s498 = sshll.u32 [#allocation18], 4
          %s499 = int_to_ptr.vmem [resolvable:$true] %s498
          %501 = dma.hbm_to_vmem [thread:$0]  %s9, 16, %s499, [#allocation17]
        $region36: #{tpu_custom_call.1} parent=11 // pred_fallthru
          _
        // Predicated region
        $region37: #{tpu_custom_call.1} parent=11 // pred_check
          %p502 = pneg %p239
        $region38: #{tpu_custom_call.1} parent=11 // pred_check_branch
          %504 = sbr.rel (%p502) target = $region40
        $region39: #{tpu_custom_call.1} parent=11 // pred_region
          %s506 = ssub.s32 6144, 6144
          %507 = vsyncadd [#allocation20], %s506
          %s508 = sshll.u32 [#allocation19], 4
          %s509 = int_to_ptr.vmem [resolvable:$true] %s508
          %514 = dma.hbm_to_vmem [thread:$0]  %s10, 6144, %s509, [#allocation20], 128, 128, 8
        $region40: #{tpu_custom_call.1} parent=11 // pred_fallthru
          _
        // Predicated region
        $region41: #{tpu_custom_call.1} parent=11 // pred_check
          %p515 = pneg %p260
        $region42: #{tpu_custom_call.1} parent=11 // pred_check_branch
          %517 = sbr.rel (%p515) target = $region44
        $region43: #{tpu_custom_call.1} parent=11 // pred_region
          %s519 = ssub.s32 16, 16
          %520 = vsyncadd [#allocation20], %s519
          %s522 = sshll.u32 [#allocation21], 4
          %s523 = int_to_ptr.vmem [resolvable:$true] %s522
          %525 = dma.hbm_to_vmem [thread:$0]  %s11, 16, %s523, [#allocation20]
        $region44: #{tpu_custom_call.1} parent=11 // pred_fallthru
          _
        // Predicated region
        $region45: #{tpu_custom_call.1} parent=11 // pred_check
          %p526 = pneg %p281
        $region46: #{tpu_custom_call.1} parent=11 // pred_check_branch
          %528 = sbr.rel (%p526) target = $region48
        $region47: #{tpu_custom_call.1} parent=11 // pred_region
          %s530 = ssub.s32 16, 16
          %531 = vsyncadd [#allocation23], %s530
          %s533 = sshll.u32 [#allocation22], 4
          %s534 = int_to_ptr.vmem [resolvable:$true] %s533
          %536 = dma.hbm_to_vmem [thread:$0]  %s12, 16, %s534, [#allocation23]
        $region48: #{tpu_custom_call.1} parent=11 // pred_fallthru
          _
        // Predicated region
        $region49: #{tpu_custom_call.1} parent=11 // pred_check
          %p537 = pneg %p302
        $region50: #{tpu_custom_call.1} parent=11 // pred_check_branch
          %539 = sbr.rel (%p537) target = $region52
        $region51: #{tpu_custom_call.1} parent=11 // pred_region
          %s541 = ssub.s32 32768, 32768
          %542 = vsyncadd [#allocation23], %s541
          %s543 = sshll.u32 [#allocation24], 4
          %s544 = int_to_ptr.vmem [resolvable:$true] %s543
          %549 = dma.hbm_to_vmem [thread:$0]  %s13, 32768, %s544, [#allocation23], 128, 128, 8
        $region52: #{tpu_custom_call.1} parent=11 // pred_fallthru
          _
        // Predicated region
        $region53: #{tpu_custom_call.1} parent=11 // pred_check
          %p550 = pneg %p323
        $region54: #{tpu_custom_call.1} parent=11 // pred_check_branch
          %552 = sbr.rel (%p550) target = $region56
        $region55: #{tpu_custom_call.1} parent=11 // pred_region
          %s554 = ssub.s32 16, 16
          %555 = vsyncadd [#allocation26], %s554
          %s557 = sshll.u32 [#allocation25], 4
          %s558 = int_to_ptr.vmem [resolvable:$true] %s557
          %560 = dma.hbm_to_vmem [thread:$0]  %s14, 16, %s558, [#allocation26]
        $region56: #{tpu_custom_call.1} parent=11 // pred_fallthru
          _
        // Predicated region
        $region57: #{tpu_custom_call.1} parent=11 // pred_check
          %p561 = pneg %p344
        $region58: #{tpu_custom_call.1} parent=11 // pred_check_branch
          %563 = sbr.rel (%p561) target = $region60
        $region59: #{tpu_custom_call.1} parent=11 // pred_region
          %s565 = ssub.s32 2048, 2048
          %566 = vsyncadd [#allocation26], %s565
          %s567 = sshll.u32 [#allocation27], 4
          %s568 = int_to_ptr.vmem [resolvable:$true] %s567
          %573 = dma.hbm_to_vmem [thread:$0]  %s15, 2048, %s568, [#allocation26], 128, 128, 8
        $region60: #{tpu_custom_call.1} parent=11 // pred_fallthru
          _
        // Predicated region
        $region61: #{tpu_custom_call.1} parent=11 // pred_check
          %p574 = pneg %p365
        $region62: #{tpu_custom_call.1} parent=11 // pred_check_branch
          %576 = sbr.rel (%p574) target = $region64
        $region63: #{tpu_custom_call.1} parent=11 // pred_region
          %s578 = ssub.s32 16, 16
          %579 = vsyncadd [#allocation29], %s578
          %s581 = sshll.u32 [#allocation28], 4
          %s582 = int_to_ptr.vmem [resolvable:$true] %s581
          %584 = dma.hbm_to_vmem [thread:$0]  %s16, 16, %s582, [#allocation29]
        $region64: #{tpu_custom_call.1} parent=11 // pred_fallthru
          _
      $region12: #{tpu_custom_call.1} parent=5 // pred_fallthru
        _
      %p585 = scmp.lt.s32.totalorder %s40, 2
      // Predicated region
      $region65: #{tpu_custom_call.1} parent=5 // pred_check
        %p586 = pneg %p585
      $region66: #{tpu_custom_call.1} parent=5 // pred_check_branch
        %588 = sbr.rel (%p586) target = $region68
      $region67: #{tpu_custom_call.1} parent=5 // pred_region
        // Predicated region
        $region69: #{tpu_custom_call.1} parent=67 // pred_check
          %p589 = pneg %p60
        $region70: #{tpu_custom_call.1} parent=67 // pred_check_branch
          %591 = sbr.rel (%p589) target = $region72
        $region71: #{tpu_custom_call.1} parent=67 // pred_region
          %p592 = scmp.lt.s32.totalorder %s40, 1
          %s593 = scalar_select %p592, %s40, 1
          %s594 = smul.addr %s593, 17
          %s595 = smul.addr %s594, 8
          %s596 = scalar_lea.vmem %s0, %s595
        $region72: #{tpu_custom_call.1} parent=67 // pred_fallthru
          _
        // Predicated region
        $region73: #{tpu_custom_call.1} parent=67 // pred_check
          %p597 = pneg %p86
        $region74: #{tpu_custom_call.1} parent=67 // pred_check_branch
          %599 = sbr.rel (%p597) target = $region76
        $region75: #{tpu_custom_call.1} parent=67 // pred_region
          %s600 = sand.u32 %s76, 1
          %s601 = scalar_lea.sflag [#allocation8], %s600
          %s602 = sand.u32 %s76, 1
          %s603 = smul.addr %s602, 128
          %s604 = scalar_lea.vmem [#allocation7], %s603
          %s606 = ssub.s32 2048, 2048
          %607 = vsyncadd %s601, %s606
          %s608 = smul.addr %s40, 16
          %s609 = smul.addr %s608, 128
          %s610 = scalar_lea.hbm %s3, %s609
          %s611 = sshll.u32 %s604, 4
          %s612 = int_to_ptr.vmem [resolvable:$true] %s611
          %617 = dma.hbm_to_vmem [thread:$0]  %s610, 2048, %s612, %s601, 128, 128, 8
        $region76: #{tpu_custom_call.1} parent=67 // pred_fallthru
          _
      $region68: #{tpu_custom_call.1} parent=5 // pred_fallthru
        _
      %p618 = scmp.le.s32.totalorder 1, %s40
      %p619 = scmp.lt.s32.totalorder %s40, 3
      %p620 = pnand %p618, %p619
      %p621 = pneg %p620
      // Predicated region
      $region77: #{tpu_custom_call.1} parent=5 // pred_check
        _
      $region78: #{tpu_custom_call.1} parent=5 // pred_check_branch
        %623 = sbr.rel (%p620) target = $region80
      $region79: #{tpu_custom_call.1} parent=5 // pred_region
        %s624 = ssub.s32 %s40, 1
        %s625 = sand.u32 %s79, 1
        %s626 = scalar_lea.sflag [#allocation8], %s625
        %s627 = sand.u32 %s79, 1
        %s628 = smul.addr %s627, 128
        %s629 = scalar_lea.vmem [#allocation7], %s628
        // Predicated region
        $region81: #{tpu_custom_call.1} parent=79 // pred_check
          %p630 = pneg %p92
        $region82: #{tpu_custom_call.1} parent=79 // pred_check_branch
          %632 = sbr.rel (%p630) target = $region84
        $region83: #{tpu_custom_call.1} parent=79 // pred_region
          %633 = dma.done %s626, 2048
        $region84: #{tpu_custom_call.1} parent=79 // pred_fallthru
          _
        // Predicated region
        $region85: #{tpu_custom_call.1} parent=79 // pred_check
          %p634 = pneg %p113
        $region86: #{tpu_custom_call.1} parent=79 // pred_check_branch
          %636 = sbr.rel (%p634) target = $region88
        $region87: #{tpu_custom_call.1} parent=79 // pred_region
          %637 = dma.done [#allocation11], 192
        $region88: #{tpu_custom_call.1} parent=79 // pred_fallthru
          _
        // Predicated region
        $region89: #{tpu_custom_call.1} parent=79 // pred_check
          %p638 = pneg %p134
        $region90: #{tpu_custom_call.1} parent=79 // pred_check_branch
          %640 = sbr.rel (%p638) target = $region92
        $region91: #{tpu_custom_call.1} parent=79 // pred_region
          %641 = dma.done [#allocation11], 16
        $region92: #{tpu_custom_call.1} parent=79 // pred_fallthru
          _
        // Predicated region
        $region93: #{tpu_custom_call.1} parent=79 // pred_check
          %p642 = pneg %p155
        $region94: #{tpu_custom_call.1} parent=79 // pred_check_branch
          %644 = sbr.rel (%p642) target = $region96
        $region95: #{tpu_custom_call.1} parent=79 // pred_region
          %645 = dma.done [#allocation14], 16
        $region96: #{tpu_custom_call.1} parent=79 // pred_fallthru
          _
        // Predicated region
        $region97: #{tpu_custom_call.1} parent=79 // pred_check
          %p646 = pneg %p176
        $region98: #{tpu_custom_call.1} parent=79 // pred_check_branch
          %648 = sbr.rel (%p646) target = $region100
        $region99: #{tpu_custom_call.1} parent=79 // pred_region
          %649 = dma.done [#allocation14], 6144
        $region100: #{tpu_custom_call.1} parent=79 // pred_fallthru
          _
        // Predicated region
        $region101: #{tpu_custom_call.1} parent=79 // pred_check
          %p650 = pneg %p197
        $region102: #{tpu_custom_call.1} parent=79 // pred_check_branch
          %652 = sbr.rel (%p650) target = $region104
        $region103: #{tpu_custom_call.1} parent=79 // pred_region
          %653 = dma.done [#allocation17], 16
        $region104: #{tpu_custom_call.1} parent=79 // pred_fallthru
          _
        // Predicated region
        $region105: #{tpu_custom_call.1} parent=79 // pred_check
          %p654 = pneg %p218
        $region106: #{tpu_custom_call.1} parent=79 // pred_check_branch
          %656 = sbr.rel (%p654) target = $region108
        $region107: #{tpu_custom_call.1} parent=79 // pred_region
          %657 = dma.done [#allocation17], 16
        $region108: #{tpu_custom_call.1} parent=79 // pred_fallthru
          _
        // Predicated region
        $region109: #{tpu_custom_call.1} parent=79 // pred_check
          %p658 = pneg %p239
        $region110: #{tpu_custom_call.1} parent=79 // pred_check_branch
          %660 = sbr.rel (%p658) target = $region112
        $region111: #{tpu_custom_call.1} parent=79 // pred_region
          %661 = dma.done [#allocation20], 6144
        $region112: #{tpu_custom_call.1} parent=79 // pred_fallthru
          _
        // Predicated region
        $region113: #{tpu_custom_call.1} parent=79 // pred_check
          %p662 = pneg %p260
        $region114: #{tpu_custom_call.1} parent=79 // pred_check_branch
          %664 = sbr.rel (%p662) target = $region116
        $region115: #{tpu_custom_call.1} parent=79 // pred_region
          %665 = dma.done [#allocation20], 16
        $region116: #{tpu_custom_call.1} parent=79 // pred_fallthru
          _
        // Predicated region
        $region117: #{tpu_custom_call.1} parent=79 // pred_check
          %p666 = pneg %p281
        $region118: #{tpu_custom_call.1} parent=79 // pred_check_branch
          %668 = sbr.rel (%p666) target = $region120
        $region119: #{tpu_custom_call.1} parent=79 // pred_region
          %669 = dma.done [#allocation23], 16
        $region120: #{tpu_custom_call.1} parent=79 // pred_fallthru
          _
        // Predicated region
        $region121: #{tpu_custom_call.1} parent=79 // pred_check
          %p670 = pneg %p302
        $region122: #{tpu_custom_call.1} parent=79 // pred_check_branch
          %672 = sbr.rel (%p670) target = $region124
        $region123: #{tpu_custom_call.1} parent=79 // pred_region
          %673 = dma.done [#allocation23], 32768
        $region124: #{tpu_custom_call.1} parent=79 // pred_fallthru
          _
        // Predicated region
        $region125: #{tpu_custom_call.1} parent=79 // pred_check
          %p674 = pneg %p323
        $region126: #{tpu_custom_call.1} parent=79 // pred_check_branch
          %676 = sbr.rel (%p674) target = $region128
        $region127: #{tpu_custom_call.1} parent=79 // pred_region
          %677 = dma.done [#allocation26], 16
        $region128: #{tpu_custom_call.1} parent=79 // pred_fallthru
          _
        // Predicated region
        $region129: #{tpu_custom_call.1} parent=79 // pred_check
          %p678 = pneg %p344
        $region130: #{tpu_custom_call.1} parent=79 // pred_check_branch
          %680 = sbr.rel (%p678) target = $region132
        $region131: #{tpu_custom_call.1} parent=79 // pred_region
          %681 = dma.done [#allocation26], 2048
        $region132: #{tpu_custom_call.1} parent=79 // pred_fallthru
          _
        // Predicated region
        $region133: #{tpu_custom_call.1} parent=79 // pred_check
          %p682 = pneg %p365
        $region134: #{tpu_custom_call.1} parent=79 // pred_check_branch
          %684 = sbr.rel (%p682) target = $region136
        $region135: #{tpu_custom_call.1} parent=79 // pred_region
          %685 = dma.done [#allocation29], 16
        $region136: #{tpu_custom_call.1} parent=79 // pred_fallthru
          _
        %p686 = scmp.lt.s32.totalorder %s45, 1
        %s687 = scalar_select %p686, %s45, 1
        %s688 = smul.addr %s687, 17
        %s689 = smul.addr %s688, 8
        %s690 = scalar_lea.vmem %s0, %s689
        %p691 = pneg %p66
        %p692 = pneg %p63
        %s693 = sand.u32 %s79, 1
        %s694 = scalar_lea.sflag [#allocation8], %s693
        %s695 = sand.u32 %s79, 1
        %s696 = smul.addr %s695, 128
        %s697 = scalar_lea.vmem [#allocation7], %s696
        %p698 = pneg %p92
        %p699 = pneg %p89
        %p700 = pneg %p113
        %p701 = pneg %p110
        %p702 = pneg %p134
        %p703 = pneg %p131
        %p704 = pneg %p155
        %p705 = pneg %p152
        %p706 = pneg %p176
        %p707 = pneg %p173
        %p708 = pneg %p197
        %p709 = pneg %p194
        %p710 = pneg %p218
        %p711 = pneg %p215
        %p712 = pneg %p239
        %p713 = pneg %p236
        %p714 = pneg %p260
        %p715 = pneg %p257
        %p716 = pneg %p281
        %p717 = pneg %p278
        %p718 = pneg %p302
        %p719 = pneg %p299
        %p720 = pneg %p323
        %p721 = pneg %p320
        %p722 = pneg %p344
        %p723 = pneg %p341
        %p724 = pneg %p365
        %p725 = pneg %p362
        %p726 = pneg %p391
        %p727 = pneg %p388
        %p728 = scmp.lt.s32.totalorder %s45, 1
        %s729 = scalar_select %p728, %s45, 1
        %s730 = smul.addr %s729, 3
        %s731 = smul.addr %s730, 8
        %s732 = scalar_lea.vmem %s17, %s731
        %p733 = pneg %p417
        %p734 = pneg %p414
        %s735 = sand.u32 %s404, 1
        %s736 = scalar_lea.sflag [#allocation9], %s735
        %s737 = sand.u32 %s404, 1
        %s738 = smul.addr %s737, 128
        %s739 = scalar_lea.vmem [#allocation30], %s738
        %p740 = scmp.lt.s32.totalorder %s45, 1
        %s741 = scalar_select %p740, %s45, 1
        %s742 = smul.addr %s741, 17
        %s743 = smul.addr %s742, 8
        %s744 = scalar_lea.vmem %s0, %s743
        %p745 = scmp.lt.s32.totalorder %s45, 1
        %s746 = scalar_select %p745, %s45, 1
        %s747 = smul.addr %s746, 3
        %s748 = smul.addr %s747, 8
        %s749 = scalar_lea.vmem %s17, %s748
        %s750 = smul.u32 %s45, 2048
        %s751 = sadd.s32 128, %s750
        %s752 = smul.addr %s751, 16
        %s753 = scalar_lea.hbm %s1, %s752
        %s754 = smul.addr %s750, 16
        %s755 = scalar_lea.hbm %s18, %s754
        %s757 = sshll.u32 1, 14
        %s758 = sxor.u32 4294967295, %s757
        %762 = dma.general %s753, 30720, %s755, [#allocation6], 131072, [#allocation32], 0, 0
        %s763 = smul.u32 %s45, 512
        %s764 = sadd.s32 32, %s763
        %s765 = smul.addr %s764, 16
        %s766 = scalar_lea.hbm %s2, %s765
        %s767 = smul.addr %s763, 16
        %s768 = scalar_lea.hbm %s19, %s767
        %s769 = scalar_lea.sflag [#allocation6], 1
        %s771 = sshll.u32 1, 14
        %s772 = sxor.u32 4294967295, %s771
        %776 = dma.general %s766, 7680, %s768, %s769, 131072, [#allocation34], 0, 0
        %s777 = sadd.s32 2040, %s750
        %s778 = smul.addr %s777, 16
        %s779 = scalar_lea.hbm %s1, %s778
        %s780 = scalar_lea.sflag [#allocation6], 2
        // Predicated region
        $region137: #{tpu_custom_call.1} parent=79 // pred_check
          _
        $region138: #{tpu_custom_call.1} parent=79 // pred_check_branch
          %782 = sbr.rel target = $region140
        $region139: #{tpu_custom_call.1} parent=79 // pred_region
          %783 = sst [smem:[#allocation37]] [#allocation36]
          %784 = sst [smem:[#allocation38]] [#allocation35]
        $region140: #{tpu_custom_call.1} parent=79 // pred_fallthru
          _
        %786 = shalt.err (0)
        %s788 = sshll.u32 [#allocation2], 4
        %s789 = int_to_ptr.vmem [resolvable:$true] %s788
        %791 = dma.hbm_to_vmem [thread:$0]  %s779, 128, %s789, %s780
        %s792 = sadd.s32 504, %s763
        %s793 = smul.addr %s792, 16
        %s794 = scalar_lea.hbm %s2, %s793
        %s795 = scalar_lea.sflag [#allocation6], 3
        // Predicated region
        $region141: #{tpu_custom_call.1} parent=79 // pred_check
          _
        $region142: #{tpu_custom_call.1} parent=79 // pred_check_branch
          %797 = sbr.rel target = $region144
        $region143: #{tpu_custom_call.1} parent=79 // pred_region
          %798 = sst [smem:[#allocation37]] [#allocation40]
          %799 = sst [smem:[#allocation38]] [#allocation39]
        $region144: #{tpu_custom_call.1} parent=79 // pred_fallthru
          _
        %801 = shalt.err (0)
        %s803 = sshll.u32 [#allocation3], 4
        %s804 = int_to_ptr.vmem [resolvable:$true] %s803
        %806 = dma.hbm_to_vmem [thread:$0]  %s794, 128, %s804, %s795
        %v807 = vld [vmem:[%s744] sm:$0xff]
        %v808 = vld [vmem:[%s744 + $0x8] sm:$0xff]
        %v809 = vld [vmem:[%s744 + $0x10] sm:$0xff]
        %v810 = vld [vmem:[%s744 + $0x18] sm:$0xff]
        %v811 = vld [vmem:[%s744 + $0x20] sm:$0xff]
        %v812 = vld [vmem:[%s744 + $0x28] sm:$0xff]
        %v813 = vld [vmem:[%s744 + $0x30] sm:$0xff]
        %v814 = vld [vmem:[%s744 + $0x38] sm:$0xff]
        %v815 = vld [vmem:[%s744 + $0x40] sm:$0xff]
        %v816 = vld [vmem:[%s744 + $0x48] sm:$0xff]
        %v817 = vld [vmem:[%s744 + $0x50] sm:$0xff]
        %v818 = vld [vmem:[%s744 + $0x58] sm:$0xff]
        %v819 = vld [vmem:[%s744 + $0x60] sm:$0xff]
        %v820 = vld [vmem:[%s744 + $0x68] sm:$0xff]
        %v821 = vld [vmem:[%s744 + $0x70] sm:$0xff]
        %v822 = vld [vmem:[%s744 + $0x78] sm:$0xff]
        %v823 = vld [vmem:[%s744 + $0x80] sm:$0xff]
        %v824 = vld [vmem:[#allocation10] sm:$0xf]
        %s825 = scalar_lea.vmem [#allocation10], 4
        %v826 = vld [vmem:[%s825] sm:$0xf]
        %vm827 = vcmask 31744
        %v829 = vsel %vm827, %v808, 0
        %v832 = vsel %vm827, %v809, 0
        %v835 = vsel %vm827, %v810, 0
        %v838 = vsel %vm827, %v811, 0
        %v841 = vsel %vm827, %v812, 0
        %v844 = vsel %vm827, %v813, 0
        %v847 = vsel %vm827, %v814, 0
        %v850 = vsel %vm827, %v815, 0
        %v853 = vsel %vm827, %v816, 0
        %v856 = vsel %vm827, %v817, 0
        %v859 = vsel %vm827, %v818, 0
        %v862 = vsel %vm827, %v819, 0
        %v865 = vsel %vm827, %v820, 0
        %v868 = vsel %vm827, %v821, 0
        %v871 = vsel %vm827, %v822, 0
        %v874 = vsel %vm827, %v823, 0
        %vm876 = vcmask 1043456
        %v878 = vsel %vm876, %v826, 0
        %880 = vmatprep.subr.mxu0 0.0
        %881 = vmatpush1.msra.mxu0 0.0
        %882 = vmatprep.subr.mxu0 0.0
        %883 = vmatpush1.msra.mxu0 0.0
        %884 = vmatprep.subr.mxu0 0.0
        %885 = vmatpush1.msra.mxu0 0.0
        %886 = vmatprep.subr.mxu0 0.0
        %887 = vmatpush1.msra.mxu0 0.0
        %888 = vmatprep.subr.mxu0 0.0
        %889 = vmatpush1.msra.mxu0 0.0
        %890 = vmatprep.subr.mxu0 0.0
        %891 = vmatpush1.msra.mxu0 0.0
        %892 = vmatprep.subr.mxu0 0.0
        %893 = vmatpush1.msra.mxu0 0.0
        %894 = vmatprep.subr.mxu0 0.0
        %895 = vmatpush1.msra.mxu0 0.0
        %896 = vmatprep.subr.mxu0 0.0
        %897 = vmatpush1.msra.mxu0 0.0
        %898 = vmatprep.subr.mxu0 0.0
        %899 = vmatpush1.msra.mxu0 0.0
        %900 = vmatprep.subr.mxu0 0.0
        %901 = vmatpush1.msra.mxu0 0.0
        %902 = vmatprep.subr.mxu0 0.0
        %903 = vmatpush1.msra.mxu0 0.0
        %904 = vmatprep.subr.mxu0 0.0
        %905 = vmatpush1.msra.mxu0 0.0
        %906 = vmatprep.subr.mxu0 0.0
        %907 = vmatpush1.msra.mxu0 0.0
        %908 = vmatprep.subr.mxu0 0.0
        %909 = vmatpush1.msra.mxu0 0.0
        %910 = vmatprep.subr.mxu0 0.0
        %911 = vmatpush1.msra.mxu0 %v878
        %912 = vmatprep.subr.mxu0 0.0
        %913 = vmatpush2.msra.mxu0 0.0
        %914 = vmatprep.subr.mxu0 0.0
        %915 = vmatpush2.msra.mxu0 0.0
        %916 = vmatprep.subr.mxu0 0.0
        %917 = vmatpush2.msra.mxu0 0.0
        %918 = vmatprep.subr.mxu0 0.0
        %919 = vmatpush2.msra.mxu0 0.0
        %920 = vmatprep.subr.mxu0 0.0
        %921 = vmatpush2.msra.mxu0 0.0
        %922 = vmatprep.subr.mxu0 0.0
        %923 = vmatpush2.msra.mxu0 0.0
        %924 = vmatprep.subr.mxu0 0.0
        %925 = vmatpush2.msra.mxu0 0.0
        %926 = vmatprep.subr.mxu0 0.0
        %927 = vmatpush2.msra.mxu0 0.0
        %928 = vmatprep.subr.mxu0 0.0
        %929 = vmatpush2.msra.mxu0 0.0
        %930 = vmatprep.subr.mxu0 0.0
        %931 = vmatpush2.msra.mxu0 0.0
        %932 = vmatprep.subr.mxu0 0.0
        %933 = vmatpush2.msra.mxu0 0.0
        %934 = vmatprep.subr.mxu0 0.0
        %935 = vmatpush2.msra.mxu0 0.0
        %936 = vmatprep.subr.mxu0 0.0
        %937 = vmatpush2.msra.mxu0 0.0
        %938 = vmatprep.subr.mxu0 0.0
        %939 = vmatpush2.msra.mxu0 0.0
        %940 = vmatprep.subr.mxu0 0.0
        %941 = vmatpush2.msra.mxu0 0.0
        %942 = vmatprep.subr.mxu0 0.0
        %943 = vmatpush2.msra.mxu0 0.0
        %944 = vmatprep.mubr.f32.mxu0 0.0
        %945 = vmatmul.mubr.f32.gmra.mxu0 %v829
        %v946 = vpop.f32.mrf.mxu0
        %v947 = vadd.f32 0.0, %v946
        %v948 = vpop.f32.mrf.mxu0
        %949 = vmatprep.mubr.f32.mxu0 0.0
        %950 = vmatmul.mubr.f32.gmra.mxu0 %v832
        %v951 = vpop.f32.mrf.mxu0
        %v952 = vadd.f32 0.0, %v951
        %v953 = vpop.f32.mrf.mxu0
        %954 = vmatprep.mubr.f32.mxu0 0.0
        %955 = vmatmul.mubr.f32.gmra.mxu0 %v835
        %v956 = vpop.f32.mrf.mxu0
        %v957 = vadd.f32 0.0, %v956
        %v958 = vpop.f32.mrf.mxu0
        %959 = vmatprep.mubr.f32.mxu0 0.0
        %960 = vmatmul.mubr.f32.gmra.mxu0 %v838
        %v961 = vpop.f32.mrf.mxu0
        %v962 = vadd.f32 0.0, %v961
        %v963 = vpop.f32.mrf.mxu0
        %964 = vmatprep.mubr.f32.mxu0 0.0
        %965 = vmatmul.mubr.f32.gmra.mxu0 %v841
        %v966 = vpop.f32.mrf.mxu0
        %v967 = vadd.f32 0.0, %v966
        %v968 = vpop.f32.mrf.mxu0
        %969 = vmatprep.mubr.f32.mxu0 0.0
        %970 = vmatmul.mubr.f32.gmra.mxu0 %v844
        %v971 = vpop.f32.mrf.mxu0
        %v972 = vadd.f32 0.0, %v971
        %v973 = vpop.f32.mrf.mxu0
        %974 = vmatprep.mubr.f32.mxu0 0.0
        %975 = vmatmul.mubr.f32.gmra.mxu0 %v847
        %v976 = vpop.f32.mrf.mxu0
        %v977 = vadd.f32 0.0, %v976
        %v978 = vpop.f32.mrf.mxu0
        %979 = vmatprep.mubr.f32.mxu0 0.0
        %980 = vmatmul.mubr.f32.gmra.mxu0 %v850
        %v981 = vpop.f32.mrf.mxu0
        %v982 = vadd.f32 0.0, %v981
        %v983 = vpop.f32.mrf.mxu0
        %984 = vmatprep.mubr.f32.mxu0 0.0
        %985 = vmatmul.mubr.f32.gmra.mxu0 %v853
        %v986 = vpop.f32.mrf.mxu0
        %v987 = vadd.f32 0.0, %v986
        %v988 = vpop.f32.mrf.mxu0
        %989 = vmatprep.mubr.f32.mxu0 0.0
        %990 = vmatmul.mubr.f32.gmra.mxu0 %v856
        %v991 = vpop.f32.mrf.mxu0
        %v992 = vadd.f32 0.0, %v991
        %v993 = vpop.f32.mrf.mxu0
        %994 = vmatprep.mubr.f32.mxu0 0.0
        %995 = vmatmul.mubr.f32.gmra.mxu0 %v859
        %v996 = vpop.f32.mrf.mxu0
        %v997 = vadd.f32 0.0, %v996
        %v998 = vpop.f32.mrf.mxu0
        %999 = vmatprep.mubr.f32.mxu0 0.0
        %1000 = vmatmul.mubr.f32.gmra.mxu0 %v862
        %v1001 = vpop.f32.mrf.mxu0
        %v1002 = vadd.f32 0.0, %v1001
        %v1003 = vpop.f32.mrf.mxu0
        %1004 = vmatprep.mubr.f32.mxu0 0.0
        %1005 = vmatmul.mubr.f32.gmra.mxu0 %v865
        %v1006 = vpop.f32.mrf.mxu0
        %v1007 = vadd.f32 0.0, %v1006
        %v1008 = vpop.f32.mrf.mxu0
        %1009 = vmatprep.mubr.f32.mxu0 0.0
        %1010 = vmatmul.mubr.f32.gmra.mxu0 %v868
        %v1011 = vpop.f32.mrf.mxu0
        %v1012 = vadd.f32 0.0, %v1011
        %v1013 = vpop.f32.mrf.mxu0
        %1014 = vmatprep.mubr.f32.mxu0 0.0
        %1015 = vmatmul.mubr.f32.gmra.mxu0 %v871
        %v1016 = vpop.f32.mrf.mxu0
        %v1017 = vadd.f32 0.0, %v1016
        %v1018 = vpop.f32.mrf.mxu0
        %1019 = vmatprep.mubr.f32.mxu0 0.0
        %1020 = vmatmul.mubr.f32.gmra.mxu0 %v874
        %v1021 = vpop.f32.mrf.mxu0
        %v1022 = vadd.f32 0.0, %v1021
        %v1023 = vpop.f32.mrf.mxu0
        %1024 = vdwg.mxu0
        %vm1026 = vcmask 1040384
        %v1027 = vrot.slane %v807, 7
        %v1028 = vrot.slane %v808, 7
        %v1029 = vsel %vm1026, %v1027, %v1028
        %v1030 = vrot.slane %v809, 7
        %v1031 = vsel %vm1026, %v1028, %v1030
        %v1032 = vrot.slane %v810, 7
        %v1033 = vsel %vm1026, %v1030, %v1032
        %v1034 = vrot.slane %v811, 7
        %v1035 = vsel %vm1026, %v1032, %v1034
        %v1036 = vrot.slane %v812, 7
        %v1037 = vsel %vm1026, %v1034, %v1036
        %v1038 = vrot.slane %v813, 7
        %v1039 = vsel %vm1026, %v1036, %v1038
        %v1040 = vrot.slane %v814, 7
        %v1041 = vsel %vm1026, %v1038, %v1040
        %v1042 = vrot.slane %v815, 7
        %v1043 = vsel %vm1026, %v1040, %v1042
        %v1044 = vrot.slane %v816, 7
        %v1045 = vsel %vm1026, %v1042, %v1044
        %v1046 = vrot.slane %v817, 7
        %v1047 = vsel %vm1026, %v1044, %v1046
        %v1048 = vrot.slane %v818, 7
        %v1049 = vsel %vm1026, %v1046, %v1048
        %v1050 = vrot.slane %v819, 7
        %v1051 = vsel %vm1026, %v1048, %v1050
        %v1052 = vrot.slane %v820, 7
        %v1053 = vsel %vm1026, %v1050, %v1052
        %v1054 = vrot.slane %v821, 7
        %v1055 = vsel %vm1026, %v1052, %v1054
        %v1056 = vrot.slane %v822, 7
        %v1057 = vsel %vm1026, %v1054, %v1056
        %v1058 = vrot.slane %v823, 7
        %v1059 = vsel %vm1026, %v1056, %v1058
        %v1060 = vsel %vm827, %v1029, 0
        %v1062 = vsel %vm827, %v1031, 0
        %v1064 = vsel %vm827, %v1033, 0
        %v1066 = vsel %vm827, %v1035, 0
        %v1068 = vsel %vm827, %v1037, 0
        %v1070 = vsel %vm827, %v1039, 0
        %v1072 = vsel %vm827, %v1041, 0
        %v1074 = vsel %vm827, %v1043, 0
        %v1076 = vsel %vm827, %v1045, 0
        %v1078 = vsel %vm827, %v1047, 0
        %v1080 = vsel %vm827, %v1049, 0
        %v1082 = vsel %vm827, %v1051, 0
        %v1084 = vsel %vm827, %v1053, 0
        %v1086 = vsel %vm827, %v1055, 0
        %v1088 = vsel %vm827, %v1057, 0
        %v1090 = vsel %vm827, %v1059, 0
        %v1093 = vsel %vm876, %v824, 0
        %1095 = vmatprep.subr.mxu0 0.0
        %1096 = vmatpush1.msra.mxu0 0.0
        %1097 = vmatprep.subr.mxu0 0.0
        %1098 = vmatpush1.msra.mxu0 0.0
        %1099 = vmatprep.subr.mxu0 0.0
        %1100 = vmatpush1.msra.mxu0 0.0
        %1101 = vmatprep.subr.mxu0 0.0
        %1102 = vmatpush1.msra.mxu0 0.0
        %1103 = vmatprep.subr.mxu0 0.0
        %1104 = vmatpush1.msra.mxu0 0.0
        %1105 = vmatprep.subr.mxu0 0.0
        %1106 = vmatpush1.msra.mxu0 0.0
        %1107 = vmatprep.subr.mxu0 0.0
        %1108 = vmatpush1.msra.mxu0 0.0
        %1109 = vmatprep.subr.mxu0 0.0
        %1110 = vmatpush1.msra.mxu0 0.0
        %1111 = vmatprep.subr.mxu0 0.0
        %1112 = vmatpush1.msra.mxu0 0.0
        %1113 = vmatprep.subr.mxu0 0.0
        %1114 = vmatpush1.msra.mxu0 0.0
        %1115 = vmatprep.subr.mxu0 0.0
        %1116 = vmatpush1.msra.mxu0 0.0
        %1117 = vmatprep.subr.mxu0 0.0
        %1118 = vmatpush1.msra.mxu0 0.0
        %1119 = vmatprep.subr.mxu0 0.0
        %1120 = vmatpush1.msra.mxu0 0.0
        %1121 = vmatprep.subr.mxu0 0.0
        %1122 = vmatpush1.msra.mxu0 0.0
        %1123 = vmatprep.subr.mxu0 0.0
        %1124 = vmatpush1.msra.mxu0 0.0
        %1125 = vmatprep.subr.mxu0 0.0
        %1126 = vmatpush1.msra.mxu0 %v1093
        %1127 = vmatprep.subr.mxu0 0.0
        %1128 = vmatpush2.msra.mxu0 0.0
        %1129 = vmatprep.subr.mxu0 0.0
        %1130 = vmatpush2.msra.mxu0 0.0
        %1131 = vmatprep.subr.mxu0 0.0
        %1132 = vmatpush2.msra.mxu0 0.0
        %1133 = vmatprep.subr.mxu0 0.0
        %1134 = vmatpush2.msra.mxu0 0.0
        %1135 = vmatprep.subr.mxu0 0.0
        %1136 = vmatpush2.msra.mxu0 0.0
        %1137 = vmatprep.subr.mxu0 0.0
        %1138 = vmatpush2.msra.mxu0 0.0
        %1139 = vmatprep.subr.mxu0 0.0
        %1140 = vmatpush2.msra.mxu0 0.0
        %1141 = vmatprep.subr.mxu0 0.0
        %1142 = vmatpush2.msra.mxu0 0.0
        %1143 = vmatprep.subr.mxu0 0.0
        %1144 = vmatpush2.msra.mxu0 0.0
        %1145 = vmatprep.subr.mxu0 0.0
        %1146 = vmatpush2.msra.mxu0 0.0
        %1147 = vmatprep.subr.mxu0 0.0
        %1148 = vmatpush2.msra.mxu0 0.0
        %1149 = vmatprep.subr.mxu0 0.0
        %1150 = vmatpush2.msra.mxu0 0.0
        %1151 = vmatprep.subr.mxu0 0.0
        %1152 = vmatpush2.msra.mxu0 0.0
        %1153 = vmatprep.subr.mxu0 0.0
        %1154 = vmatpush2.msra.mxu0 0.0
        %1155 = vmatprep.subr.mxu0 0.0
        %1156 = vmatpush2.msra.mxu0 0.0
        %1157 = vmatprep.subr.mxu0 0.0
        %1158 = vmatpush2.msra.mxu0 0.0
        %1159 = vmatprep.mubr.f32.mxu0 0.0
        %1160 = vmatmul.mubr.f32.gmra.mxu0 %v1060
        %v1161 = vpop.f32.mrf.mxu0
        %v1162 = vadd.f32 %v947, %v1161
        %v1163 = vpop.f32.mrf.mxu0
        %1164 = vmatprep.mubr.f32.mxu0 0.0
        %1165 = vmatmul.mubr.f32.gmra.mxu0 %v1062
        %v1166 = vpop.f32.mrf.mxu0
        %v1167 = vadd.f32 %v952, %v1166
        %v1168 = vpop.f32.mrf.mxu0
        %1169 = vmatprep.mubr.f32.mxu0 0.0
        %1170 = vmatmul.mubr.f32.gmra.mxu0 %v1064
        %v1171 = vpop.f32.mrf.mxu0
        %v1172 = vadd.f32 %v957, %v1171
        %v1173 = vpop.f32.mrf.mxu0
        %1174 = vmatprep.mubr.f32.mxu0 0.0
        %1175 = vmatmul.mubr.f32.gmra.mxu0 %v1066
        %v1176 = vpop.f32.mrf.mxu0
        %v1177 = vadd.f32 %v962, %v1176
        %v1178 = vpop.f32.mrf.mxu0
        %1179 = vmatprep.mubr.f32.mxu0 0.0
        %1180 = vmatmul.mubr.f32.gmra.mxu0 %v1068
        %v1181 = vpop.f32.mrf.mxu0
        %v1182 = vadd.f32 %v967, %v1181
        %v1183 = vpop.f32.mrf.mxu0
        %1184 = vmatprep.mubr.f32.mxu0 0.0
        %1185 = vmatmul.mubr.f32.gmra.mxu0 %v1070
        %v1186 = vpop.f32.mrf.mxu0
        %v1187 = vadd.f32 %v972, %v1186
        %v1188 = vpop.f32.mrf.mxu0
        %1189 = vmatprep.mubr.f32.mxu0 0.0
        %1190 = vmatmul.mubr.f32.gmra.mxu0 %v1072
        %v1191 = vpop.f32.mrf.mxu0
        %v1192 = vadd.f32 %v977, %v1191
        %v1193 = vpop.f32.mrf.mxu0
        %1194 = vmatprep.mubr.f32.mxu0 0.0
        %1195 = vmatmul.mubr.f32.gmra.mxu0 %v1074
        %v1196 = vpop.f32.mrf.mxu0
        %v1197 = vadd.f32 %v982, %v1196
        %v1198 = vpop.f32.mrf.mxu0
        %1199 = vmatprep.mubr.f32.mxu0 0.0
        %1200 = vmatmul.mubr.f32.gmra.mxu0 %v1076
        %v1201 = vpop.f32.mrf.mxu0
        %v1202 = vadd.f32 %v987, %v1201
        %v1203 = vpop.f32.mrf.mxu0
        %1204 = vmatprep.mubr.f32.mxu0 0.0
        %1205 = vmatmul.mubr.f32.gmra.mxu0 %v1078
        %v1206 = vpop.f32.mrf.mxu0
        %v1207 = vadd.f32 %v992, %v1206
        %v1208 = vpop.f32.mrf.mxu0
        %1209 = vmatprep.mubr.f32.mxu0 0.0
        %1210 = vmatmul.mubr.f32.gmra.mxu0 %v1080
        %v1211 = vpop.f32.mrf.mxu0
        %v1212 = vadd.f32 %v997, %v1211
        %v1213 = vpop.f32.mrf.mxu0
        %1214 = vmatprep.mubr.f32.mxu0 0.0
        %1215 = vmatmul.mubr.f32.gmra.mxu0 %v1082
        %v1216 = vpop.f32.mrf.mxu0
        %v1217 = vadd.f32 %v1002, %v1216
        %v1218 = vpop.f32.mrf.mxu0
        %1219 = vmatprep.mubr.f32.mxu0 0.0
        %1220 = vmatmul.mubr.f32.gmra.mxu0 %v1084
        %v1221 = vpop.f32.mrf.mxu0
        %v1222 = vadd.f32 %v1007, %v1221
        %v1223 = vpop.f32.mrf.mxu0
        %1224 = vmatprep.mubr.f32.mxu0 0.0
        %1225 = vmatmul.mubr.f32.gmra.mxu0 %v1086
        %v1226 = vpop.f32.mrf.mxu0
        %v1227 = vadd.f32 %v1012, %v1226
        %v1228 = vpop.f32.mrf.mxu0
        %1229 = vmatprep.mubr.f32.mxu0 0.0
        %1230 = vmatmul.mubr.f32.gmra.mxu0 %v1088
        %v1231 = vpop.f32.mrf.mxu0
        %v1232 = vadd.f32 %v1017, %v1231
        %v1233 = vpop.f32.mrf.mxu0
        %1234 = vmatprep.mubr.f32.mxu0 0.0
        %1235 = vmatmul.mubr.f32.gmra.mxu0 %v1090
        %v1236 = vpop.f32.mrf.mxu0
        %v1237 = vadd.f32 %v1022, %v1236
        %v1238 = vpop.f32.mrf.mxu0
        %1239 = vdwg.mxu0
        %s1240 = scalar_lea.vmem [#allocation10], 8
        %v1241 = vld [vmem:[%s1240] sm:$0xf]
        %vm1243 = vcmask 1046528
        %v1244 = vrot.slane %v808, 1
        %v1245 = vrot.slane %v809, 1
        %v1246 = vsel %vm1243, %v1244, %v1245
        %v1247 = vrot.slane %v810, 1
        %v1248 = vsel %vm1243, %v1245, %v1247
        %v1249 = vrot.slane %v811, 1
        %v1250 = vsel %vm1243, %v1247, %v1249
        %v1251 = vrot.slane %v812, 1
        %v1252 = vsel %vm1243, %v1249, %v1251
        %v1253 = vrot.slane %v813, 1
        %v1254 = vsel %vm1243, %v1251, %v1253
        %v1255 = vrot.slane %v814, 1
        %v1256 = vsel %vm1243, %v1253, %v1255
        %v1257 = vrot.slane %v815, 1
        %v1258 = vsel %vm1243, %v1255, %v1257
        %v1259 = vrot.slane %v816, 1
        %v1260 = vsel %vm1243, %v1257, %v1259
        %v1261 = vrot.slane %v817, 1
        %v1262 = vsel %vm1243, %v1259, %v1261
        %v1263 = vrot.slane %v818, 1
        %v1264 = vsel %vm1243, %v1261, %v1263
        %v1265 = vrot.slane %v819, 1
        %v1266 = vsel %vm1243, %v1263, %v1265
        %v1267 = vrot.slane %v820, 1
        %v1268 = vsel %vm1243, %v1265, %v1267
        %v1269 = vrot.slane %v821, 1
        %v1270 = vsel %vm1243, %v1267, %v1269
        %v1271 = vrot.slane %v822, 1
        %v1272 = vsel %vm1243, %v1269, %v1271
        %v1273 = vrot.slane %v823, 1
        %v1274 = vsel %vm1243, %v1271, %v1273
        %v1275 = vrot.slane 0.0, 1
        %v1276 = vsel %vm1243, %v1273, %v1275
        %v1277 = vsel %vm827, %v1246, 0
        %v1279 = vsel %vm827, %v1248, 0
        %v1281 = vsel %vm827, %v1250, 0
        %v1283 = vsel %vm827, %v1252, 0
        %v1285 = vsel %vm827, %v1254, 0
        %v1287 = vsel %vm827, %v1256, 0
        %v1289 = vsel %vm827, %v1258, 0
        %v1291 = vsel %vm827, %v1260, 0
        %v1293 = vsel %vm827, %v1262, 0
        %v1295 = vsel %vm827, %v1264, 0
        %v1297 = vsel %vm827, %v1266, 0
        %v1299 = vsel %vm827, %v1268, 0
        %v1301 = vsel %vm827, %v1270, 0
        %v1303 = vsel %vm827, %v1272, 0
        %v1305 = vsel %vm827, %v1274, 0
        %v1307 = vsel %vm827, %v1276, 0
        %v1310 = vsel %vm876, %v1241, 0
        %1312 = vmatprep.subr.mxu0 0.0
        %1313 = vmatpush1.msra.mxu0 0.0
        %1314 = vmatprep.subr.mxu0 0.0
        %1315 = vmatpush1.msra.mxu0 0.0
        %1316 = vmatprep.subr.mxu0 0.0
        %1317 = vmatpush1.msra.mxu0 0.0
        %1318 = vmatprep.subr.mxu0 0.0
        %1319 = vmatpush1.msra.mxu0 0.0
        %1320 = vmatprep.subr.mxu0 0.0
        %1321 = vmatpush1.msra.mxu0 0.0
        %1322 = vmatprep.subr.mxu0 0.0
        %1323 = vmatpush1.msra.mxu0 0.0
        %1324 = vmatprep.subr.mxu0 0.0
        %1325 = vmatpush1.msra.mxu0 0.0
        %1326 = vmatprep.subr.mxu0 0.0
        %1327 = vmatpush1.msra.mxu0 0.0
        %1328 = vmatprep.subr.mxu0 0.0
        %1329 = vmatpush1.msra.mxu0 0.0
        %1330 = vmatprep.subr.mxu0 0.0
        %1331 = vmatpush1.msra.mxu0 0.0
        %1332 = vmatprep.subr.mxu0 0.0
        %1333 = vmatpush1.msra.mxu0 0.0
        %1334 = vmatprep.subr.mxu0 0.0
        %1335 = vmatpush1.msra.mxu0 0.0
        %1336 = vmatprep.subr.mxu0 0.0
        %1337 = vmatpush1.msra.mxu0 0.0
        %1338 = vmatprep.subr.mxu0 0.0
        %1339 = vmatpush1.msra.mxu0 0.0
        %1340 = vmatprep.subr.mxu0 0.0
        %1341 = vmatpush1.msra.mxu0 0.0
        %1342 = vmatprep.subr.mxu0 0.0
        %1343 = vmatpush1.msra.mxu0 %v1310
        %1344 = vmatprep.subr.mxu0 0.0
        %1345 = vmatpush2.msra.mxu0 0.0
        %1346 = vmatprep.subr.mxu0 0.0
        %1347 = vmatpush2.msra.mxu0 0.0
        %1348 = vmatprep.subr.mxu0 0.0
        %1349 = vmatpush2.msra.mxu0 0.0
        %1350 = vmatprep.subr.mxu0 0.0
        %1351 = vmatpush2.msra.mxu0 0.0
        %1352 = vmatprep.subr.mxu0 0.0
        %1353 = vmatpush2.msra.mxu0 0.0
        %1354 = vmatprep.subr.mxu0 0.0
        %1355 = vmatpush2.msra.mxu0 0.0
        %1356 = vmatprep.subr.mxu0 0.0
        %1357 = vmatpush2.msra.mxu0 0.0
        %1358 = vmatprep.subr.mxu0 0.0
        %1359 = vmatpush2.msra.mxu0 0.0
        %1360 = vmatprep.subr.mxu0 0.0
        %1361 = vmatpush2.msra.mxu0 0.0
        %1362 = vmatprep.subr.mxu0 0.0
        %1363 = vmatpush2.msra.mxu0 0.0
        %1364 = vmatprep.subr.mxu0 0.0
        %1365 = vmatpush2.msra.mxu0 0.0
        %1366 = vmatprep.subr.mxu0 0.0
        %1367 = vmatpush2.msra.mxu0 0.0
        %1368 = vmatprep.subr.mxu0 0.0
        %1369 = vmatpush2.msra.mxu0 0.0
        %1370 = vmatprep.subr.mxu0 0.0
        %1371 = vmatpush2.msra.mxu0 0.0
        %1372 = vmatprep.subr.mxu0 0.0
        %1373 = vmatpush2.msra.mxu0 0.0
        %1374 = vmatprep.subr.mxu0 0.0
        %1375 = vmatpush2.msra.mxu0 0.0
        %1376 = vmatprep.mubr.f32.mxu0 0.0
        %1377 = vmatmul.mubr.f32.gmra.mxu0 %v1277
        %v1378 = vpop.f32.mrf.mxu0
        %v1379 = vadd.f32 0.0, %v1378
        %v1380 = vpop.f32.mrf.mxu0
        %1381 = vmatprep.mubr.f32.mxu0 0.0
        %1382 = vmatmul.mubr.f32.gmra.mxu0 %v1279
        %v1383 = vpop.f32.mrf.mxu0
        %v1384 = vadd.f32 0.0, %v1383
        %v1385 = vpop.f32.mrf.mxu0
        %1386 = vmatprep.mubr.f32.mxu0 0.0
        %1387 = vmatmul.mubr.f32.gmra.mxu0 %v1281
        %v1388 = vpop.f32.mrf.mxu0
        %v1389 = vadd.f32 0.0, %v1388
        %v1390 = vpop.f32.mrf.mxu0
        %1391 = vmatprep.mubr.f32.mxu0 0.0
        %1392 = vmatmul.mubr.f32.gmra.mxu0 %v1283
        %v1393 = vpop.f32.mrf.mxu0
        %v1394 = vadd.f32 0.0, %v1393
        %v1395 = vpop.f32.mrf.mxu0
        %1396 = vmatprep.mubr.f32.mxu0 0.0
        %1397 = vmatmul.mubr.f32.gmra.mxu0 %v1285
        %v1398 = vpop.f32.mrf.mxu0
        %v1399 = vadd.f32 0.0, %v1398
        %v1400 = vpop.f32.mrf.mxu0
        %1401 = vmatprep.mubr.f32.mxu0 0.0
        %1402 = vmatmul.mubr.f32.gmra.mxu0 %v1287
        %v1403 = vpop.f32.mrf.mxu0
        %v1404 = vadd.f32 0.0, %v1403
        %v1405 = vpop.f32.mrf.mxu0
        %1406 = vmatprep.mubr.f32.mxu0 0.0
        %1407 = vmatmul.mubr.f32.gmra.mxu0 %v1289
        %v1408 = vpop.f32.mrf.mxu0
        %v1409 = vadd.f32 0.0, %v1408
        %v1410 = vpop.f32.mrf.mxu0
        %1411 = vmatprep.mubr.f32.mxu0 0.0
        %1412 = vmatmul.mubr.f32.gmra.mxu0 %v1291
        %v1413 = vpop.f32.mrf.mxu0
        %v1414 = vadd.f32 0.0, %v1413
        %v1415 = vpop.f32.mrf.mxu0
        %1416 = vmatprep.mubr.f32.mxu0 0.0
        %1417 = vmatmul.mubr.f32.gmra.mxu0 %v1293
        %v1418 = vpop.f32.mrf.mxu0
        %v1419 = vadd.f32 0.0, %v1418
        %v1420 = vpop.f32.mrf.mxu0
        %1421 = vmatprep.mubr.f32.mxu0 0.0
        %1422 = vmatmul.mubr.f32.gmra.mxu0 %v1295
        %v1423 = vpop.f32.mrf.mxu0
        %v1424 = vadd.f32 0.0, %v1423
        %v1425 = vpop.f32.mrf.mxu0
        %1426 = vmatprep.mubr.f32.mxu0 0.0
        %1427 = vmatmul.mubr.f32.gmra.mxu0 %v1297
        %v1428 = vpop.f32.mrf.mxu0
        %v1429 = vadd.f32 0.0, %v1428
        %v1430 = vpop.f32.mrf.mxu0
        %1431 = vmatprep.mubr.f32.mxu0 0.0
        %1432 = vmatmul.mubr.f32.gmra.mxu0 %v1299
        %v1433 = vpop.f32.mrf.mxu0
        %v1434 = vadd.f32 0.0, %v1433
        %v1435 = vpop.f32.mrf.mxu0
        %1436 = vmatprep.mubr.f32.mxu0 0.0
        %1437 = vmatmul.mubr.f32.gmra.mxu0 %v1301
        %v1438 = vpop.f32.mrf.mxu0
        %v1439 = vadd.f32 0.0, %v1438
        %v1440 = vpop.f32.mrf.mxu0
        %1441 = vmatprep.mubr.f32.mxu0 0.0
        %1442 = vmatmul.mubr.f32.gmra.mxu0 %v1303
        %v1443 = vpop.f32.mrf.mxu0
        %v1444 = vadd.f32 0.0, %v1443
        %v1445 = vpop.f32.mrf.mxu0
        %1446 = vmatprep.mubr.f32.mxu0 0.0
        %1447 = vmatmul.mubr.f32.gmra.mxu0 %v1305
        %v1448 = vpop.f32.mrf.mxu0
        %v1449 = vadd.f32 0.0, %v1448
        %v1450 = vpop.f32.mrf.mxu0
        %1451 = vmatprep.mubr.f32.mxu0 0.0
        %1452 = vmatmul.mubr.f32.gmra.mxu0 %v1307
        %v1453 = vpop.f32.mrf.mxu0
        %v1454 = vadd.f32 0.0, %v1453
        %v1455 = vpop.f32.mrf.mxu0
        %1456 = vdwg.mxu0
        %v1457 = vadd.f32 %v1162, %v1379
        %v1458 = vadd.f32 %v1167, %v1384
        %v1459 = vadd.f32 %v1172, %v1389
        %v1460 = vadd.f32 %v1177, %v1394
        %v1461 = vadd.f32 %v1182, %v1399
        %v1462 = vadd.f32 %v1187, %v1404
        %v1463 = vadd.f32 %v1192, %v1409
        %v1464 = vadd.f32 %v1197, %v1414
        %v1465 = vadd.f32 %v1202, %v1419
        %v1466 = vadd.f32 %v1207, %v1424
        %v1467 = vadd.f32 %v1212, %v1429
        %v1468 = vadd.f32 %v1217, %v1434
        %v1469 = vadd.f32 %v1222, %v1439
        %v1470 = vadd.f32 %v1227, %v1444
        %v1471 = vadd.f32 %v1232, %v1449
        %v1472 = vadd.f32 %v1237, %v1454
        %v1473 = vld [vmem:[#allocation12] sm:$0x1]
        %v1475 = vlaneseq
        %v1476 = vshrl.u32 %v1475, 7
        %v1477 = vsub.s32 0, %v1476
        %v1478 = vrot.slane %v1473, %v1477
        %v1480 = vmul.f32 %v1457, %v1478
        %v1481 = vmul.f32 %v1458, %v1478
        %v1482 = vmul.f32 %v1459, %v1478
        %v1483 = vmul.f32 %v1460, %v1478
        %v1484 = vmul.f32 %v1461, %v1478
        %v1485 = vmul.f32 %v1462, %v1478
        %v1486 = vmul.f32 %v1463, %v1478
        %v1487 = vmul.f32 %v1464, %v1478
        %v1488 = vmul.f32 %v1465, %v1478
        %v1489 = vmul.f32 %v1466, %v1478
        %v1490 = vmul.f32 %v1467, %v1478
        %v1491 = vmul.f32 %v1468, %v1478
        %v1492 = vmul.f32 %v1469, %v1478
        %v1493 = vmul.f32 %v1470, %v1478
        %v1494 = vmul.f32 %v1471, %v1478
        %v1495 = vmul.f32 %v1472, %v1478
        %v1496 = vld [vmem:[#allocation13] sm:$0x1]
        %v1498 = vlaneseq
        %v1499 = vshrl.u32 %v1498, 7
        %v1500 = vsub.s32 0, %v1499
        %v1501 = vrot.slane %v1496, %v1500
        %v1503 = vadd.f32 %v1480, %v1501
        %v1504 = vadd.f32 %v1481, %v1501
        %v1505 = vadd.f32 %v1482, %v1501
        %v1506 = vadd.f32 %v1483, %v1501
        %v1507 = vadd.f32 %v1484, %v1501
        %v1508 = vadd.f32 %v1485, %v1501
        %v1509 = vadd.f32 %v1486, %v1501
        %v1510 = vadd.f32 %v1487, %v1501
        %v1511 = vadd.f32 %v1488, %v1501
        %v1512 = vadd.f32 %v1489, %v1501
        %v1513 = vadd.f32 %v1490, %v1501
        %v1514 = vadd.f32 %v1491, %v1501
        %v1515 = vadd.f32 %v1492, %v1501
        %v1516 = vadd.f32 %v1493, %v1501
        %v1517 = vadd.f32 %v1494, %v1501
        %v1518 = vadd.f32 %v1495, %v1501
        %v1519 = vmax.f32 %v1503, 0.0
        %v1520 = vmax.f32 %v1504, 0.0
        %v1521 = vmax.f32 %v1505, 0.0
        %v1522 = vmax.f32 %v1506, 0.0
        %v1523 = vmax.f32 %v1507, 0.0
        %v1524 = vmax.f32 %v1508, 0.0
        %v1525 = vmax.f32 %v1509, 0.0
        %v1526 = vmax.f32 %v1510, 0.0
        %v1527 = vmax.f32 %v1511, 0.0
        %v1528 = vmax.f32 %v1512, 0.0
        %v1529 = vmax.f32 %v1513, 0.0
        %v1530 = vmax.f32 %v1514, 0.0
        %v1531 = vmax.f32 %v1515, 0.0
        %v1532 = vmax.f32 %v1516, 0.0
        %v1533 = vmax.f32 %v1517, 0.0
        %v1534 = vmax.f32 %v1518, 0.0
        %1535 = vst [vmem:[#allocation4] sm:$0xff] %v1519
        %1536 = vst [vmem:[#allocation4 + $0x8] sm:$0xff] %v1520
        %1537 = vst [vmem:[#allocation4 + $0x10] sm:$0xff] %v1521
        %1538 = vst [vmem:[#allocation4 + $0x18] sm:$0xff] %v1522
        %1539 = vst [vmem:[#allocation4 + $0x20] sm:$0xff] %v1523
        %1540 = vst [vmem:[#allocation4 + $0x28] sm:$0xff] %v1524
        %1541 = vst [vmem:[#allocation4 + $0x30] sm:$0xff] %v1525
        %1542 = vst [vmem:[#allocation4 + $0x38] sm:$0xff] %v1526
        %1543 = vst [vmem:[#allocation4 + $0x40] sm:$0xff] %v1527
        %1544 = vst [vmem:[#allocation4 + $0x48] sm:$0xff] %v1528
        %1545 = vst [vmem:[#allocation4 + $0x50] sm:$0xff] %v1529
        %1546 = vst [vmem:[#allocation4 + $0x58] sm:$0xff] %v1530
        %1547 = vst [vmem:[#allocation4 + $0x60] sm:$0xff] %v1531
        %1548 = vst [vmem:[#allocation4 + $0x68] sm:$0xff] %v1532
        %1549 = vst [vmem:[#allocation4 + $0x70] sm:$0xff] %v1533
        %1550 = vst [vmem:[#allocation4 + $0x78] sm:$0xff] %v1534
        %s1551 = sadd.s32 1920, %s750
        %s1552 = smul.addr %s1551, 16
        %s1553 = scalar_lea.hbm %s18, %s1552
        %s1554 = scalar_lea.sflag [#allocation6], 4
        // Predicated region
        $region145: #{tpu_custom_call.1} parent=79 // pred_check
          _
        $region146: #{tpu_custom_call.1} parent=79 // pred_check_branch
          %1556 = sbr.rel target = $region148
        $region147: #{tpu_custom_call.1} parent=79 // pred_region
          %1557 = sst [smem:[#allocation37]] [#allocation42]
          %1558 = sst [smem:[#allocation38]] [#allocation41]
        $region148: #{tpu_custom_call.1} parent=79 // pred_fallthru
          _
        %1560 = shalt.err (0)
        %s1562 = sshll.u32 [#allocation4], 4
        %s1563 = int_to_ptr.vmem [resolvable:$true] %s1562
        %1565 = dma.vmem_to_hbm [thread:$0]  %s1563, 2048, %s1553, %s1554
        %s1566 = smul.u32 8, 1
        %s1567 = sshll.u32 %s1566, 4
        %1568 = dma.done %s780, %s1567
        %v1569 = vld [vmem:[#allocation2] sm:$0xff]
        %v1587 = vrot.slane %v1569, 1
        %v1588 = vrot.slane %v1519, 1
        %v1589 = vsel %vm1243, %v1587, %v1588
        %v1590 = vrot.slane %v1520, 1
        %v1591 = vsel %vm1243, %v1588, %v1590
        %v1592 = vrot.slane %v1521, 1
        %v1593 = vsel %vm1243, %v1590, %v1592
        %v1594 = vrot.slane %v1522, 1
        %v1595 = vsel %vm1243, %v1592, %v1594
        %v1596 = vrot.slane %v1523, 1
        %v1597 = vsel %vm1243, %v1594, %v1596
        %v1598 = vrot.slane %v1524, 1
        %v1599 = vsel %vm1243, %v1596, %v1598
        %v1600 = vrot.slane %v1525, 1
        %v1601 = vsel %vm1243, %v1598, %v1600
        %v1602 = vrot.slane %v1526, 1
        %v1603 = vsel %vm1243, %v1600, %v1602
        %v1604 = vrot.slane %v1527, 1
        %v1605 = vsel %vm1243, %v1602, %v1604
        %v1606 = vrot.slane %v1528, 1
        %v1607 = vsel %vm1243, %v1604, %v1606
        %v1608 = vrot.slane %v1529, 1
        %v1609 = vsel %vm1243, %v1606, %v1608
        %v1610 = vrot.slane %v1530, 1
        %v1611 = vsel %vm1243, %v1608, %v1610
        %v1612 = vrot.slane %v1531, 1
        %v1613 = vsel %vm1243, %v1610, %v1612
        %v1614 = vrot.slane %v1532, 1
        %v1615 = vsel %vm1243, %v1612, %v1614
        %v1616 = vrot.slane %v1533, 1
        %v1617 = vsel %vm1243, %v1614, %v1616
        %v1618 = vrot.slane %v1534, 1
        %v1619 = vsel %vm1243, %v1616, %v1618
        %v1620 = vsel %vm1243, %v1618, %v1275
        %v1621 = vsel %vm1243, %v1275, %v1275
        %v1640 = vmax.f32 %v1569, %v1589
        %v1641 = vmax.f32 %v1519, %v1591
        %v1642 = vmax.f32 %v1520, %v1593
        %v1643 = vmax.f32 %v1521, %v1595
        %v1644 = vmax.f32 %v1522, %v1597
        %v1645 = vmax.f32 %v1523, %v1599
        %v1646 = vmax.f32 %v1524, %v1601
        %v1647 = vmax.f32 %v1525, %v1603
        %v1648 = vmax.f32 %v1526, %v1605
        %v1649 = vmax.f32 %v1527, %v1607
        %v1650 = vmax.f32 %v1528, %v1609
        %v1651 = vmax.f32 %v1529, %v1611
        %v1652 = vmax.f32 %v1530, %v1613
        %v1653 = vmax.f32 %v1531, %v1615
        %v1654 = vmax.f32 %v1532, %v1617
        %v1655 = vmax.f32 %v1533, %v1619
        %v1656 = vmax.f32 %v1534, %v1620
        %v1657 = vmax.f32 %v1621, 0.0
        %v1659 = vmax.f32 %v1275, 0.0
        %vm1679 = vcmask 1045504
        %v1680 = vrot.slane %v1640, 2
        %v1681 = vrot.slane %v1641, 2
        %v1682 = vsel %vm1679, %v1680, %v1681
        %v1683 = vrot.slane %v1642, 2
        %v1684 = vsel %vm1679, %v1681, %v1683
        %v1685 = vrot.slane %v1643, 2
        %v1686 = vsel %vm1679, %v1683, %v1685
        %v1687 = vrot.slane %v1644, 2
        %v1688 = vsel %vm1679, %v1685, %v1687
        %v1689 = vrot.slane %v1645, 2
        %v1690 = vsel %vm1679, %v1687, %v1689
        %v1691 = vrot.slane %v1646, 2
        %v1692 = vsel %vm1679, %v1689, %v1691
        %v1693 = vrot.slane %v1647, 2
        %v1694 = vsel %vm1679, %v1691, %v1693
        %v1695 = vrot.slane %v1648, 2
        %v1696 = vsel %vm1679, %v1693, %v1695
        %v1697 = vrot.slane %v1649, 2
        %v1698 = vsel %vm1679, %v1695, %v1697
        %v1699 = vrot.slane %v1650, 2
        %v1700 = vsel %vm1679, %v1697, %v1699
        %v1701 = vrot.slane %v1651, 2
        %v1702 = vsel %vm1679, %v1699, %v1701
        %v1703 = vrot.slane %v1652, 2
        %v1704 = vsel %vm1679, %v1701, %v1703
        %v1705 = vrot.slane %v1653, 2
        %v1706 = vsel %vm1679, %v1703, %v1705
        %v1707 = vrot.slane %v1654, 2
        %v1708 = vsel %vm1679, %v1705, %v1707
        %v1709 = vrot.slane %v1655, 2
        %v1710 = vsel %vm1679, %v1707, %v1709
        %v1711 = vrot.slane %v1656, 2
        %v1712 = vsel %vm1679, %v1709, %v1711
        %v1713 = vrot.slane %v1657, 2
        %v1714 = vsel %vm1679, %v1711, %v1713
        %v1715 = vrot.slane %v1659, 2
        %v1716 = vsel %vm1679, %v1713, %v1715
        %v1735 = vmax.f32 %v1640, %v1682
        %v1736 = vmax.f32 %v1641, %v1684
        %v1737 = vmax.f32 %v1642, %v1686
        %v1738 = vmax.f32 %v1643, %v1688
        %v1739 = vmax.f32 %v1644, %v1690
        %v1740 = vmax.f32 %v1645, %v1692
        %v1741 = vmax.f32 %v1646, %v1694
        %v1742 = vmax.f32 %v1647, %v1696
        %v1743 = vmax.f32 %v1648, %v1698
        %v1744 = vmax.f32 %v1649, %v1700
        %v1745 = vmax.f32 %v1650, %v1702
        %v1746 = vmax.f32 %v1651, %v1704
        %v1747 = vmax.f32 %v1652, %v1706
        %v1748 = vmax.f32 %v1653, %v1708
        %v1749 = vmax.f32 %v1654, %v1710
        %v1750 = vmax.f32 %v1655, %v1712
        %v1751 = vmax.f32 %v1656, %v1714
        %v1752 = vmax.f32 %v1657, %v1716
        %v1753 = vlaneseq
        %v1754 = vshrl.u32 %v1753, 7
        %v1755 = vadd.s32 %v1754, 8
        %v1756 = vadd.s32 %v1754, 16
        %v1757 = vadd.s32 %v1754, 24
        %v1758 = vadd.s32 %v1754, 32
        %v1759 = vlaneseq
        %v1760 = vand.u32 %v1759, 127
        %v1761 = vadd.s32 %v1760, 128
        %v1762 = vmul.u32 %v1754, 4
        %v1763 = vmul.u32 %v1755, 4
        %v1764 = vmul.u32 %v1756, 4
        %v1765 = vmul.u32 %v1757, 4
        %v1766 = vmul.u32 %v1758, 4
        %vm1767 = vcmp.eq.s32.totalorder %v1760, %v1762
        %vm1768 = vcmp.eq.s32.totalorder %v1761, %v1762
        %vm1769 = vcmp.eq.s32.totalorder %v1760, %v1763
        %vm1770 = vcmp.eq.s32.totalorder %v1761, %v1763
        %vm1771 = vcmp.eq.s32.totalorder %v1760, %v1764
        %vm1772 = vcmp.eq.s32.totalorder %v1761, %v1764
        %vm1773 = vcmp.eq.s32.totalorder %v1760, %v1765
        %vm1774 = vcmp.eq.s32.totalorder %v1761, %v1765
        %vm1775 = vcmp.eq.s32.totalorder %v1760, %v1766
        %vm1776 = vcmp.eq.s32.totalorder %v1761, %v1766
        %v1777 = vsel %vm1767, 1, 0
        %v1778 = vsel %vm1768, 1, 0
        %v1779 = vsel %vm1769, 1, 0
        %v1780 = vsel %vm1770, 1, 0
        %v1781 = vsel %vm1771, 1, 0
        %v1782 = vsel %vm1772, 1, 0
        %v1783 = vsel %vm1773, 1, 0
        %v1784 = vsel %vm1774, 1, 0
        %v1785 = vsel %vm1775, 1, 0
        %v1786 = vsel %vm1776, 1, 0
        %v1787 = vcvt.s32.f32 %v1777
        %v1788 = vcvt.s32.f32 %v1778
        %v1789 = vcvt.s32.f32 %v1779
        %v1790 = vcvt.s32.f32 %v1780
        %v1791 = vcvt.s32.f32 %v1781
        %v1792 = vcvt.s32.f32 %v1782
        %v1793 = vcvt.s32.f32 %v1783
        %v1794 = vcvt.s32.f32 %v1784
        %v1795 = vcvt.s32.f32 %v1785
        %v1796 = vcvt.s32.f32 %v1786
        %vm1797 = vcmask 130048
        %v1799 = vsel %vm1797, %v1788, 0
        %v1802 = vsel %vm1797, %v1790, 0
        %v1805 = vsel %vm1797, %v1792, 0
        %v1808 = vsel %vm1797, %v1794, 0
        %v1811 = vsel %vm1797, %v1796, 0
        %1813 = vmatprep.subr.mxu0 0.0
        %1814 = vmatpush1.msra.mxu0 %v1750
        %1815 = vmatprep.subr.mxu0 0.0
        %1816 = vmatpush1.msra.mxu0 %v1749
        %1817 = vmatprep.subr.mxu0 0.0
        %1818 = vmatpush1.msra.mxu0 %v1748
        %1819 = vmatprep.subr.mxu0 0.0
        %1820 = vmatpush1.msra.mxu0 %v1747
        %1821 = vmatprep.subr.mxu0 0.0
        %1822 = vmatpush1.msra.mxu0 %v1746
        %1823 = vmatprep.subr.mxu0 0.0
        %1824 = vmatpush1.msra.mxu0 %v1745
        %1825 = vmatprep.subr.mxu0 0.0
        %1826 = vmatpush1.msra.mxu0 %v1744
        %1827 = vmatprep.subr.mxu0 0.0
        %1828 = vmatpush1.msra.mxu0 %v1743
        %1829 = vmatprep.subr.mxu0 0.0
        %1830 = vmatpush1.msra.mxu0 %v1742
        %1831 = vmatprep.subr.mxu0 0.0
        %1832 = vmatpush1.msra.mxu0 %v1741
        %1833 = vmatprep.subr.mxu0 0.0
        %1834 = vmatpush1.msra.mxu0 %v1740
        %1835 = vmatprep.subr.mxu0 0.0
        %1836 = vmatpush1.msra.mxu0 %v1739
        %1837 = vmatprep.subr.mxu0 0.0
        %1838 = vmatpush1.msra.mxu0 %v1738
        %1839 = vmatprep.subr.mxu0 0.0
        %1840 = vmatpush1.msra.mxu0 %v1737
        %1841 = vmatprep.subr.mxu0 0.0
        %1842 = vmatpush1.msra.mxu0 %v1736
        %1843 = vmatprep.subr.mxu0 0.0
        %1844 = vmatpush1.msra.mxu0 %v1735
        %1845 = vmatprep.subr.mxu0 0.0
        %1846 = vmatpush2.msra.mxu0 0.0
        %1847 = vmatprep.subr.mxu0 0.0
        %1848 = vmatpush2.msra.mxu0 0.0
        %1849 = vmatprep.subr.mxu0 0.0
        %1850 = vmatpush2.msra.mxu0 0.0
        %1851 = vmatprep.subr.mxu0 0.0
        %1852 = vmatpush2.msra.mxu0 0.0
        %1853 = vmatprep.subr.mxu0 0.0
        %1854 = vmatpush2.msra.mxu0 0.0
        %1855 = vmatprep.subr.mxu0 0.0
        %1856 = vmatpush2.msra.mxu0 0.0
        %1857 = vmatprep.subr.mxu0 0.0
        %1858 = vmatpush2.msra.mxu0 0.0
        %1859 = vmatprep.subr.mxu0 0.0
        %1860 = vmatpush2.msra.mxu0 0.0
        %1861 = vmatprep.subr.mxu0 0.0
        %1862 = vmatpush2.msra.mxu0 0.0
        %1863 = vmatprep.subr.mxu0 0.0
        %1864 = vmatpush2.msra.mxu0 0.0
        %1865 = vmatprep.subr.mxu0 0.0
        %1866 = vmatpush2.msra.mxu0 0.0
        %1867 = vmatprep.subr.mxu0 0.0
        %1868 = vmatpush2.msra.mxu0 0.0
        %1869 = vmatprep.subr.mxu0 0.0
        %1870 = vmatpush2.msra.mxu0 0.0
        %1871 = vmatprep.subr.mxu0 0.0
        %1872 = vmatpush2.msra.mxu0 0.0
        %1873 = vmatprep.subr.mxu0 0.0
        %1874 = vmatpush2.msra.mxu0 %v1752
        %1875 = vmatprep.subr.mxu0 0.0
        %1876 = vmatpush2.msra.mxu0 %v1751
        %1877 = vmatprep.mubr.f32.mxu0 %v1799
        %1878 = vmatmul.mubr.f32.gmra.mxu0 %v1787
        %v1879 = vpop.f32.mrf.mxu0
        %v1880 = vadd.f32 0.0, %v1879
        %v1881 = vpop.f32.mrf.mxu0
        %1882 = vmatprep.mubr.f32.mxu0 %v1802
        %1883 = vmatmul.mubr.f32.gmra.mxu0 %v1789
        %v1884 = vpop.f32.mrf.mxu0
        %v1885 = vadd.f32 0.0, %v1884
        %v1886 = vpop.f32.mrf.mxu0
        %1887 = vmatprep.mubr.f32.mxu0 %v1805
        %1888 = vmatmul.mubr.f32.gmra.mxu0 %v1791
        %v1889 = vpop.f32.mrf.mxu0
        %v1890 = vadd.f32 0.0, %v1889
        %v1891 = vpop.f32.mrf.mxu0
        %1892 = vmatprep.mubr.f32.mxu0 %v1808
        %1893 = vmatmul.mubr.f32.gmra.mxu0 %v1793
        %v1894 = vpop.f32.mrf.mxu0
        %v1895 = vadd.f32 0.0, %v1894
        %v1896 = vpop.f32.mrf.mxu0
        %1897 = vmatprep.mubr.f32.mxu0 %v1811
        %1898 = vmatmul.mubr.f32.gmra.mxu0 %v1795
        %v1899 = vpop.f32.mrf.mxu0
        %v1900 = vadd.f32 0.0, %v1899
        %v1901 = vpop.f32.mrf.mxu0
        %1902 = vdwg.mxu0
        %v1908 = vrot.slane %v1880, 1
        %v1909 = vrot.slane %v1885, 1
        %v1910 = vsel %vm1243, %v1908, %v1909
        %v1911 = vrot.slane %v1890, 1
        %v1912 = vsel %vm1243, %v1909, %v1911
        %v1913 = vrot.slane %v1895, 1
        %v1914 = vsel %vm1243, %v1911, %v1913
        %v1915 = vrot.slane %v1900, 1
        %v1916 = vsel %vm1243, %v1913, %v1915
        %v1917 = vrot.slane %v1880, 2
        %v1918 = vrot.slane %v1885, 2
        %v1919 = vsel %vm1679, %v1917, %v1918
        %v1920 = vrot.slane %v1890, 2
        %v1921 = vsel %vm1679, %v1918, %v1920
        %v1922 = vrot.slane %v1895, 2
        %v1923 = vsel %vm1679, %v1920, %v1922
        %v1924 = vrot.slane %v1900, 2
        %v1925 = vsel %vm1679, %v1922, %v1924
        %v1926 = vld [vmem:[#allocation15] sm:$0xff]
        %v1927 = vld [vmem:[#allocation15 + $0x8] sm:$0xff]
        %v1928 = vld [vmem:[#allocation15 + $0x10] sm:$0xff]
        %v1929 = vld [vmem:[#allocation15 + $0x18] sm:$0xff]
        %v1930 = vld [vmem:[#allocation15 + $0x20] sm:$0xff]
        %v1931 = vld [vmem:[#allocation15 + $0x28] sm:$0xff]
        %v1932 = vld [vmem:[#allocation15 + $0x30] sm:$0xff]
        %v1933 = vld [vmem:[#allocation15 + $0x38] sm:$0xff]
        %v1934 = vld [vmem:[#allocation15 + $0x40] sm:$0xff]
        %v1935 = vld [vmem:[#allocation15 + $0x48] sm:$0xff]
        %v1936 = vld [vmem:[#allocation15 + $0x50] sm:$0xff]
        %v1937 = vld [vmem:[#allocation15 + $0x58] sm:$0xff]
        %v1938 = vld [vmem:[#allocation15 + $0x60] sm:$0xff]
        %v1939 = vld [vmem:[#allocation15 + $0x68] sm:$0xff]
        %v1940 = vld [vmem:[#allocation15 + $0x70] sm:$0xff]
        %v1941 = vld [vmem:[#allocation15 + $0x78] sm:$0xff]
        %v1942 = vld [vmem:[#allocation15 + $0x80] sm:$0xff]
        %v1943 = vld [vmem:[#allocation15 + $0x88] sm:$0xff]
        %v1944 = vld [vmem:[#allocation15 + $0x90] sm:$0xff]
        %v1945 = vld [vmem:[#allocation15 + $0x98] sm:$0xff]
        %v1946 = vld [vmem:[#allocation15 + $0xa0] sm:$0xff]
        %v1947 = vld [vmem:[#allocation15 + $0xa8] sm:$0xff]
        %v1948 = vld [vmem:[#allocation15 + $0xb0] sm:$0xff]
        %v1949 = vld [vmem:[#allocation15 + $0xb8] sm:$0xff]
        %v1950 = vld [vmem:[#allocation15 + $0xc0] sm:$0xff]
        %v1951 = vld [vmem:[#allocation15 + $0xc8] sm:$0xff]
        %v1952 = vld [vmem:[#allocation15 + $0xd0] sm:$0xff]
        %v1953 = vld [vmem:[#allocation15 + $0xd8] sm:$0xff]
        %v1954 = vld [vmem:[#allocation15 + $0xe0] sm:$0xff]
        %v1955 = vld [vmem:[#allocation15 + $0xe8] sm:$0xff]
        %v1956 = vld [vmem:[#allocation15 + $0xf0] sm:$0xff]
        %v1957 = vld [vmem:[#allocation15 + $0xf8] sm:$0xff]
        %v1958 = vld [vmem:[#allocation15 + $0x100] sm:$0xff]
        %v1959 = vld [vmem:[#allocation15 + $0x108] sm:$0xff]
        %v1960 = vld [vmem:[#allocation15 + $0x110] sm:$0xff]
        %v1961 = vld [vmem:[#allocation15 + $0x118] sm:$0xff]
        %v1962 = vld [vmem:[#allocation15 + $0x120] sm:$0xff]
        %v1963 = vld [vmem:[#allocation15 + $0x128] sm:$0xff]
        %v1964 = vld [vmem:[#allocation15 + $0x130] sm:$0xff]
        %v1965 = vld [vmem:[#allocation15 + $0x138] sm:$0xff]
        %v1966 = vld [vmem:[#allocation15 + $0x140] sm:$0xff]
        %v1967 = vld [vmem:[#allocation15 + $0x148] sm:$0xff]
        %v1968 = vld [vmem:[#allocation15 + $0x150] sm:$0xff]
        %v1969 = vld [vmem:[#allocation15 + $0x158] sm:$0xff]
        %v1970 = vld [vmem:[#allocation15 + $0x160] sm:$0xff]
        %v1971 = vld [vmem:[#allocation15 + $0x168] sm:$0xff]
        %v1972 = vld [vmem:[#allocation15 + $0x170] sm:$0xff]
        %v1973 = vld [vmem:[#allocation15 + $0x178] sm:$0xff]
        %v1974 = vrot.slane %v1910, 1
        %v1975 = vrot.slane %v1912, 1
        %v1976 = vsel %vm1243, %v1974, %v1975
        %v1977 = vrot.slane %v1919, 1
        %v1978 = vrot.slane %v1921, 1
        %v1979 = vsel %vm1243, %v1977, %v1978
        %v1980 = vrot.slane %v1914, 1
        %v1981 = vsel %vm1243, %v1975, %v1980
        %v1982 = vrot.slane %v1923, 1
        %v1983 = vsel %vm1243, %v1978, %v1982
        %v1984 = vrot.slane %v1916, 1
        %v1985 = vsel %vm1243, %v1980, %v1984
        %v1986 = vrot.slane %v1925, 1
        %v1987 = vsel %vm1243, %v1982, %v1986
        %v1988 = vrot.slane %v1915, 1
        %v1989 = vsel %vm1243, %v1984, %v1988
        %v1990 = vrot.slane %v1924, 1
        %v1991 = vsel %vm1243, %v1986, %v1990
        %2004 = vmatprep.subr.mxu0 0.0
        %2005 = vmatpush1.msra.mxu0 %v1941
        %2006 = vmatprep.subr.mxu0 0.0
        %2007 = vmatpush1.msra.mxu0 %v1940
        %2008 = vmatprep.subr.mxu0 0.0
        %2009 = vmatpush1.msra.mxu0 %v1939
        %2010 = vmatprep.subr.mxu0 0.0
        %2011 = vmatpush1.msra.mxu0 %v1938
        %2012 = vmatprep.subr.mxu0 0.0
        %2013 = vmatpush1.msra.mxu0 %v1937
        %2014 = vmatprep.subr.mxu0 0.0
        %2015 = vmatpush1.msra.mxu0 %v1936
        %2016 = vmatprep.subr.mxu0 0.0
        %2017 = vmatpush1.msra.mxu0 %v1935
        %2018 = vmatprep.subr.mxu0 0.0
        %2019 = vmatpush1.msra.mxu0 %v1934
        %2020 = vmatprep.subr.mxu0 0.0
        %2021 = vmatpush1.msra.mxu0 %v1933
        %2022 = vmatprep.subr.mxu0 0.0
        %2023 = vmatpush1.msra.mxu0 %v1932
        %2024 = vmatprep.subr.mxu0 0.0
        %2025 = vmatpush1.msra.mxu0 %v1931
        %2026 = vmatprep.subr.mxu0 0.0
        %2027 = vmatpush1.msra.mxu0 %v1930
        %2028 = vmatprep.subr.mxu0 0.0
        %2029 = vmatpush1.msra.mxu0 %v1929
        %2030 = vmatprep.subr.mxu0 0.0
        %2031 = vmatpush1.msra.mxu0 %v1928
        %2032 = vmatprep.subr.mxu0 0.0
        %2033 = vmatpush1.msra.mxu0 %v1927
        %2034 = vmatprep.subr.mxu0 0.0
        %2035 = vmatpush1.msra.mxu0 %v1926
        %2036 = vmatprep.subr.mxu0 0.0
        %2037 = vmatpush2.msra.mxu0 %v1957
        %2038 = vmatprep.subr.mxu0 0.0
        %2039 = vmatpush2.msra.mxu0 %v1956
        %2040 = vmatprep.subr.mxu0 0.0
        %2041 = vmatpush2.msra.mxu0 %v1955
        %2042 = vmatprep.subr.mxu0 0.0
        %2043 = vmatpush2.msra.mxu0 %v1954
        %2044 = vmatprep.subr.mxu0 0.0
        %2045 = vmatpush2.msra.mxu0 %v1953
        %2046 = vmatprep.subr.mxu0 0.0
        %2047 = vmatpush2.msra.mxu0 %v1952
        %2048 = vmatprep.subr.mxu0 0.0
        %2049 = vmatpush2.msra.mxu0 %v1951
        %2050 = vmatprep.subr.mxu0 0.0
        %2051 = vmatpush2.msra.mxu0 %v1950
        %2052 = vmatprep.subr.mxu0 0.0
        %2053 = vmatpush2.msra.mxu0 %v1949
        %2054 = vmatprep.subr.mxu0 0.0
        %2055 = vmatpush2.msra.mxu0 %v1948
        %2056 = vmatprep.subr.mxu0 0.0
        %2057 = vmatpush2.msra.mxu0 %v1947
        %2058 = vmatprep.subr.mxu0 0.0
        %2059 = vmatpush2.msra.mxu0 %v1946
        %2060 = vmatprep.subr.mxu0 0.0
        %2061 = vmatpush2.msra.mxu0 %v1945
        %2062 = vmatprep.subr.mxu0 0.0
        %2063 = vmatpush2.msra.mxu0 %v1944
        %2064 = vmatprep.subr.mxu0 0.0
        %2065 = vmatpush2.msra.mxu0 %v1943
        %2066 = vmatprep.subr.mxu0 0.0
        %2067 = vmatpush2.msra.mxu0 %v1942
        %2068 = vmatprep.mubr.f32.mxu0 %v1976
        %2069 = vmatmul.mubr.f32.gmra.mxu0 %v1910
        %v2070 = vpop.f32.mrf.mxu0
        %v2071 = vadd.f32 0.0, %v2070
        %v2072 = vpop.f32.mrf.mxu0
        %2073 = vmatprep.mubr.f32.mxu0 %v1981
        %2074 = vmatmul.mubr.f32.gmra.mxu0 %v1912
        %v2075 = vpop.f32.mrf.mxu0
        %v2076 = vadd.f32 0.0, %v2075
        %v2077 = vpop.f32.mrf.mxu0
        %2078 = vmatprep.mubr.f32.mxu0 %v1985
        %2079 = vmatmul.mubr.f32.gmra.mxu0 %v1914
        %v2080 = vpop.f32.mrf.mxu0
        %v2081 = vadd.f32 0.0, %v2080
        %v2082 = vpop.f32.mrf.mxu0
        %2083 = vmatprep.mubr.f32.mxu0 %v1989
        %2084 = vmatmul.mubr.f32.gmra.mxu0 %v1916
        %v2085 = vpop.f32.mrf.mxu0
        %v2086 = vadd.f32 0.0, %v2085
        %v2087 = vpop.f32.mrf.mxu0
        %2088 = vdwg.mxu0
        %2089 = vmatprep.subr.mxu0 0.0
        %2090 = vmatpush1.msra.mxu0 %v1973
        %2091 = vmatprep.subr.mxu0 0.0
        %2092 = vmatpush1.msra.mxu0 %v1972
        %2093 = vmatprep.subr.mxu0 0.0
        %2094 = vmatpush1.msra.mxu0 %v1971
        %2095 = vmatprep.subr.mxu0 0.0
        %2096 = vmatpush1.msra.mxu0 %v1970
        %2097 = vmatprep.subr.mxu0 0.0
        %2098 = vmatpush1.msra.mxu0 %v1969
        %2099 = vmatprep.subr.mxu0 0.0
        %2100 = vmatpush1.msra.mxu0 %v1968
        %2101 = vmatprep.subr.mxu0 0.0
        %2102 = vmatpush1.msra.mxu0 %v1967
        %2103 = vmatprep.subr.mxu0 0.0
        %2104 = vmatpush1.msra.mxu0 %v1966
        %2105 = vmatprep.subr.mxu0 0.0
        %2106 = vmatpush1.msra.mxu0 %v1965
        %2107 = vmatprep.subr.mxu0 0.0
        %2108 = vmatpush1.msra.mxu0 %v1964
        %2109 = vmatprep.subr.mxu0 0.0
        %2110 = vmatpush1.msra.mxu0 %v1963
        %2111 = vmatprep.subr.mxu0 0.0
        %2112 = vmatpush1.msra.mxu0 %v1962
        %2113 = vmatprep.subr.mxu0 0.0
        %2114 = vmatpush1.msra.mxu0 %v1961
        %2115 = vmatprep.subr.mxu0 0.0
        %2116 = vmatpush1.msra.mxu0 %v1960
        %2117 = vmatprep.subr.mxu0 0.0
        %2118 = vmatpush1.msra.mxu0 %v1959
        %2119 = vmatprep.subr.mxu0 0.0
        %2120 = vmatpush1.msra.mxu0 %v1958
        %2121 = vmatprep.subr.mxu0 0.0
        %2122 = vmatpush2.msra.mxu0 0.0
        %2123 = vmatprep.subr.mxu0 0.0
        %2124 = vmatpush2.msra.mxu0 0.0
        %2125 = vmatprep.subr.mxu0 0.0
        %2126 = vmatpush2.msra.mxu0 0.0
        %2127 = vmatprep.subr.mxu0 0.0
        %2128 = vmatpush2.msra.mxu0 0.0
        %2129 = vmatprep.subr.mxu0 0.0
        %2130 = vmatpush2.msra.mxu0 0.0
        %2131 = vmatprep.subr.mxu0 0.0
        %2132 = vmatpush2.msra.mxu0 0.0
        %2133 = vmatprep.subr.mxu0 0.0
        %2134 = vmatpush2.msra.mxu0 0.0
        %2135 = vmatprep.subr.mxu0 0.0
        %2136 = vmatpush2.msra.mxu0 0.0
        %2137 = vmatprep.subr.mxu0 0.0
        %2138 = vmatpush2.msra.mxu0 0.0
        %2139 = vmatprep.subr.mxu0 0.0
        %2140 = vmatpush2.msra.mxu0 0.0
        %2141 = vmatprep.subr.mxu0 0.0
        %2142 = vmatpush2.msra.mxu0 0.0
        %2143 = vmatprep.subr.mxu0 0.0
        %2144 = vmatpush2.msra.mxu0 0.0
        %2145 = vmatprep.subr.mxu0 0.0
        %2146 = vmatpush2.msra.mxu0 0.0
        %2147 = vmatprep.subr.mxu0 0.0
        %2148 = vmatpush2.msra.mxu0 0.0
        %2149 = vmatprep.subr.mxu0 0.0
        %2150 = vmatpush2.msra.mxu0 0.0
        %2151 = vmatprep.subr.mxu0 0.0
        %2152 = vmatpush2.msra.mxu0 0.0
        %2153 = vmatprep.mubr.f32.mxu0 0.0
        %2154 = vmatmul.mubr.f32.gmra.mxu0 %v1979
        %v2155 = vpop.f32.mrf.mxu0
        %v2156 = vadd.f32 %v2071, %v2155
        %v2157 = vpop.f32.mrf.mxu0
        %2158 = vmatprep.mubr.f32.mxu0 0.0
        %2159 = vmatmul.mubr.f32.gmra.mxu0 %v1983
        %v2160 = vpop.f32.mrf.mxu0
        %v2161 = vadd.f32 %v2076, %v2160
        %v2162 = vpop.f32.mrf.mxu0
        %2163 = vmatprep.mubr.f32.mxu0 0.0
        %2164 = vmatmul.mubr.f32.gmra.mxu0 %v1987
        %v2165 = vpop.f32.mrf.mxu0
        %v2166 = vadd.f32 %v2081, %v2165
        %v2167 = vpop.f32.mrf.mxu0
        %2168 = vmatprep.mubr.f32.mxu0 0.0
        %2169 = vmatmul.mubr.f32.gmra.mxu0 %v1991
        %v2170 = vpop.f32.mrf.mxu0
        %v2171 = vadd.f32 %v2086, %v2170
        %v2172 = vpop.f32.mrf.mxu0
        %2173 = vdwg.mxu0
        %v2174 = vld [vmem:[#allocation16] sm:$0x1]
        %v2176 = vlaneseq
        %v2177 = vshrl.u32 %v2176, 7
        %v2178 = vsub.s32 0, %v2177
        %v2179 = vrot.slane %v2174, %v2178
        %v2181 = vmul.f32 %v2156, %v2179
        %v2182 = vmul.f32 %v2161, %v2179
        %v2183 = vmul.f32 %v2166, %v2179
        %v2184 = vmul.f32 %v2171, %v2179
        %v2185 = vld [vmem:[#allocation18] sm:$0x1]
        %v2187 = vlaneseq
        %v2188 = vshrl.u32 %v2187, 7
        %v2189 = vsub.s32 0, %v2188
        %v2190 = vrot.slane %v2185, %v2189
        %v2192 = vadd.f32 %v2181, %v2190
        %v2193 = vadd.f32 %v2182, %v2190
        %v2194 = vadd.f32 %v2183, %v2190
        %v2195 = vadd.f32 %v2184, %v2190
        %v2196 = vmax.f32 %v2192, 0.0
        %v2197 = vmax.f32 %v2193, 0.0
        %v2198 = vmax.f32 %v2194, 0.0
        %v2199 = vmax.f32 %v2195, 0.0
        %2200 = vst [vmem:[#allocation5] sm:$0xff] %v2196
        %2201 = vst [vmem:[#allocation5 + $0x8] sm:$0xff] %v2197
        %2202 = vst [vmem:[#allocation5 + $0x10] sm:$0xff] %v2198
        %2203 = vst [vmem:[#allocation5 + $0x18] sm:$0xff] %v2199
        %s2204 = sadd.s32 480, %s763
        %s2205 = smul.addr %s2204, 16
        %s2206 = scalar_lea.hbm %s19, %s2205
        %s2207 = scalar_lea.sflag [#allocation6], 5
        // Predicated region
        $region149: #{tpu_custom_call.1} parent=79 // pred_check
          _
        $region150: #{tpu_custom_call.1} parent=79 // pred_check_branch
          %2209 = sbr.rel target = $region152
        $region151: #{tpu_custom_call.1} parent=79 // pred_region
          %2210 = sst [smem:[#allocation37]] [#allocation44]
          %2211 = sst [smem:[#allocation38]] [#allocation43]
        $region152: #{tpu_custom_call.1} parent=79 // pred_fallthru
          _
        %2213 = shalt.err (0)
        %s2215 = sshll.u32 [#allocation5], 4
        %s2216 = int_to_ptr.vmem [resolvable:$true] %s2215
        %2218 = dma.vmem_to_hbm [thread:$0]  %s2216, 512, %s2206, %s2207
        %s2219 = sshll.u32 %s1566, 4
        %2220 = dma.done %s795, %s2219
        %v2221 = vld [vmem:[#allocation3] sm:$0xff]
        %v2227 = vrot.slane %v2221, 1
        %v2228 = vrot.slane %v2196, 1
        %v2229 = vsel %vm1243, %v2227, %v2228
        %v2230 = vrot.slane %v2197, 1
        %v2231 = vsel %vm1243, %v2228, %v2230
        %v2232 = vrot.slane %v2198, 1
        %v2233 = vsel %vm1243, %v2230, %v2232
        %v2234 = vrot.slane %v2199, 1
        %v2235 = vsel %vm1243, %v2232, %v2234
        %v2236 = vsel %vm1243, %v2234, %v1275
        %v2242 = vmax.f32 %v2221, %v2229
        %v2243 = vmax.f32 %v2196, %v2231
        %v2244 = vmax.f32 %v2197, %v2233
        %v2245 = vmax.f32 %v2198, %v2235
        %v2246 = vmax.f32 %v2199, %v2236
        %v2252 = vrot.slane %v2242, 2
        %v2253 = vrot.slane %v2243, 2
        %v2254 = vsel %vm1679, %v2252, %v2253
        %v2255 = vrot.slane %v2244, 2
        %v2256 = vsel %vm1679, %v2253, %v2255
        %v2257 = vrot.slane %v2245, 2
        %v2258 = vsel %vm1679, %v2255, %v2257
        %v2259 = vrot.slane %v2246, 2
        %v2260 = vsel %vm1679, %v2257, %v2259
        %v2261 = vsel %vm1679, %v2259, %v1713
        %v2267 = vmax.f32 %v2242, %v2254
        %v2268 = vmax.f32 %v2243, %v2256
        %v2269 = vmax.f32 %v2244, %v2258
        %v2270 = vmax.f32 %v2245, %v2260
        %v2271 = vmax.f32 %v2246, %v2261
        %vm2272 = vcmask 392192
        %v2274 = vsel %vm2272, %v1787, 0
        %v2277 = vsel %vm2272, %v1789, 0
        %2279 = vmatprep.subr.mxu0 0.0
        %2280 = vmatpush1.msra.mxu0 0.0
        %2281 = vmatprep.subr.mxu0 0.0
        %2282 = vmatpush1.msra.mxu0 0.0
        %2283 = vmatprep.subr.mxu0 0.0
        %2284 = vmatpush1.msra.mxu0 0.0
        %2285 = vmatprep.subr.mxu0 0.0
        %2286 = vmatpush1.msra.mxu0 0.0
        %2287 = vmatprep.subr.mxu0 0.0
        %2288 = vmatpush1.msra.mxu0 0.0
        %2289 = vmatprep.subr.mxu0 0.0
        %2290 = vmatpush1.msra.mxu0 0.0
        %2291 = vmatprep.subr.mxu0 0.0
        %2292 = vmatpush1.msra.mxu0 0.0
        %2293 = vmatprep.subr.mxu0 0.0
        %2294 = vmatpush1.msra.mxu0 0.0
        %2295 = vmatprep.subr.mxu0 0.0
        %2296 = vmatpush1.msra.mxu0 0.0
        %2297 = vmatprep.subr.mxu0 0.0
        %2298 = vmatpush1.msra.mxu0 0.0
        %2299 = vmatprep.subr.mxu0 0.0
        %2300 = vmatpush1.msra.mxu0 %v1752
        %2301 = vmatprep.subr.mxu0 0.0
        %2302 = vmatpush1.msra.mxu0 %v2271
        %2303 = vmatprep.subr.mxu0 0.0
        %2304 = vmatpush1.msra.mxu0 %v2270
        %2305 = vmatprep.subr.mxu0 0.0
        %2306 = vmatpush1.msra.mxu0 %v2269
        %2307 = vmatprep.subr.mxu0 0.0
        %2308 = vmatpush1.msra.mxu0 %v2268
        %2309 = vmatprep.subr.mxu0 0.0
        %2310 = vmatpush1.msra.mxu0 %v2267
        %2311 = vmatprep.subr.mxu0 0.0
        %2312 = vmatpush2.msra.mxu0 0.0
        %2313 = vmatprep.subr.mxu0 0.0
        %2314 = vmatpush2.msra.mxu0 0.0
        %2315 = vmatprep.subr.mxu0 0.0
        %2316 = vmatpush2.msra.mxu0 0.0
        %2317 = vmatprep.subr.mxu0 0.0
        %2318 = vmatpush2.msra.mxu0 0.0
        %2319 = vmatprep.subr.mxu0 0.0
        %2320 = vmatpush2.msra.mxu0 0.0
        %2321 = vmatprep.subr.mxu0 0.0
        %2322 = vmatpush2.msra.mxu0 0.0
        %2323 = vmatprep.subr.mxu0 0.0
        %2324 = vmatpush2.msra.mxu0 0.0
        %2325 = vmatprep.subr.mxu0 0.0
        %2326 = vmatpush2.msra.mxu0 0.0
        %2327 = vmatprep.subr.mxu0 0.0
        %2328 = vmatpush2.msra.mxu0 0.0
        %2329 = vmatprep.subr.mxu0 0.0
        %2330 = vmatpush2.msra.mxu0 0.0
        %2331 = vmatprep.subr.mxu0 0.0
        %2332 = vmatpush2.msra.mxu0 0.0
        %2333 = vmatprep.subr.mxu0 0.0
        %2334 = vmatpush2.msra.mxu0 0.0
        %2335 = vmatprep.subr.mxu0 0.0
        %2336 = vmatpush2.msra.mxu0 0.0
        %2337 = vmatprep.subr.mxu0 0.0
        %2338 = vmatpush2.msra.mxu0 0.0
        %2339 = vmatprep.subr.mxu0 0.0
        %2340 = vmatpush2.msra.mxu0 0.0
        %2341 = vmatprep.subr.mxu0 0.0
        %2342 = vmatpush2.msra.mxu0 0.0
        %2343 = vmatprep.mubr.f32.mxu0 0.0
        %2344 = vmatmul.mubr.f32.gmra.mxu0 %v2274
        %v2345 = vpop.f32.mrf.mxu0
        %v2346 = vadd.f32 0.0, %v2345
        %v2347 = vpop.f32.mrf.mxu0
        %2348 = vmatprep.mubr.f32.mxu0 0.0
        %2349 = vmatmul.mubr.f32.gmra.mxu0 %v2277
        %v2350 = vpop.f32.mrf.mxu0
        %v2351 = vadd.f32 0.0, %v2350
        %v2352 = vpop.f32.mrf.mxu0
        %2353 = vdwg.mxu0
        %v2356 = vrot.slane %v2346, 1
        %v2357 = vrot.slane %v2351, 1
        %v2358 = vsel %vm1243, %v2356, %v2357
        %v2359 = vrot.slane %v2346, 2
        %v2360 = vrot.slane %v2351, 2
        %v2361 = vsel %vm1679, %v2359, %v2360
        %v2362 = vld [vmem:[#allocation19] sm:$0xff]
        %v2363 = vld [vmem:[#allocation19 + $0x8] sm:$0xff]
        %v2364 = vld [vmem:[#allocation19 + $0x10] sm:$0xff]
        %v2365 = vld [vmem:[#allocation19 + $0x18] sm:$0xff]
        %v2366 = vld [vmem:[#allocation19 + $0x20] sm:$0xff]
        %v2367 = vld [vmem:[#allocation19 + $0x28] sm:$0xff]
        %v2368 = vld [vmem:[#allocation19 + $0x30] sm:$0xff]
        %v2369 = vld [vmem:[#allocation19 + $0x38] sm:$0xff]
        %v2370 = vld [vmem:[#allocation19 + $0x40] sm:$0xff]
        %v2371 = vld [vmem:[#allocation19 + $0x48] sm:$0xff]
        %v2372 = vld [vmem:[#allocation19 + $0x50] sm:$0xff]
        %v2373 = vld [vmem:[#allocation19 + $0x58] sm:$0xff]
        %v2374 = vld [vmem:[#allocation19 + $0x60] sm:$0xff]
        %v2375 = vld [vmem:[#allocation19 + $0x68] sm:$0xff]
        %v2376 = vld [vmem:[#allocation19 + $0x70] sm:$0xff]
        %v2377 = vld [vmem:[#allocation19 + $0x78] sm:$0xff]
        %v2378 = vld [vmem:[#allocation19 + $0x80] sm:$0xff]
        %v2379 = vld [vmem:[#allocation19 + $0x88] sm:$0xff]
        %v2380 = vld [vmem:[#allocation19 + $0x90] sm:$0xff]
        %v2381 = vld [vmem:[#allocation19 + $0x98] sm:$0xff]
        %v2382 = vld [vmem:[#allocation19 + $0xa0] sm:$0xff]
        %v2383 = vld [vmem:[#allocation19 + $0xa8] sm:$0xff]
        %v2384 = vld [vmem:[#allocation19 + $0xb0] sm:$0xff]
        %v2385 = vld [vmem:[#allocation19 + $0xb8] sm:$0xff]
        %v2386 = vld [vmem:[#allocation19 + $0xc0] sm:$0xff]
        %v2387 = vld [vmem:[#allocation19 + $0xc8] sm:$0xff]
        %v2388 = vld [vmem:[#allocation19 + $0xd0] sm:$0xff]
        %v2389 = vld [vmem:[#allocation19 + $0xd8] sm:$0xff]
        %v2390 = vld [vmem:[#allocation19 + $0xe0] sm:$0xff]
        %v2391 = vld [vmem:[#allocation19 + $0xe8] sm:$0xff]
        %v2392 = vld [vmem:[#allocation19 + $0xf0] sm:$0xff]
        %v2393 = vld [vmem:[#allocation19 + $0xf8] sm:$0xff]
        %v2394 = vld [vmem:[#allocation19 + $0x100] sm:$0xff]
        %v2395 = vld [vmem:[#allocation19 + $0x108] sm:$0xff]
        %v2396 = vld [vmem:[#allocation19 + $0x110] sm:$0xff]
        %v2397 = vld [vmem:[#allocation19 + $0x118] sm:$0xff]
        %v2398 = vld [vmem:[#allocation19 + $0x120] sm:$0xff]
        %v2399 = vld [vmem:[#allocation19 + $0x128] sm:$0xff]
        %v2400 = vld [vmem:[#allocation19 + $0x130] sm:$0xff]
        %v2401 = vld [vmem:[#allocation19 + $0x138] sm:$0xff]
        %v2402 = vld [vmem:[#allocation19 + $0x140] sm:$0xff]
        %v2403 = vld [vmem:[#allocation19 + $0x148] sm:$0xff]
        %v2404 = vld [vmem:[#allocation19 + $0x150] sm:$0xff]
        %v2405 = vld [vmem:[#allocation19 + $0x158] sm:$0xff]
        %v2406 = vld [vmem:[#allocation19 + $0x160] sm:$0xff]
        %v2407 = vld [vmem:[#allocation19 + $0x168] sm:$0xff]
        %v2408 = vld [vmem:[#allocation19 + $0x170] sm:$0xff]
        %v2409 = vld [vmem:[#allocation19 + $0x178] sm:$0xff]
        %v2410 = vrot.slane %v2358, 1
        %v2411 = vrot.slane %v2357, 1
        %v2412 = vsel %vm1243, %v2410, %v2411
        %v2413 = vrot.slane %v2361, 1
        %v2414 = vrot.slane %v2360, 1
        %v2415 = vsel %vm1243, %v2413, %v2414
        %2419 = vmatprep.subr.mxu0 0.0
        %2420 = vmatpush1.msra.mxu0 %v2377
        %2421 = vmatprep.subr.mxu0 0.0
        %2422 = vmatpush1.msra.mxu0 %v2376
        %2423 = vmatprep.subr.mxu0 0.0
        %2424 = vmatpush1.msra.mxu0 %v2375
        %2425 = vmatprep.subr.mxu0 0.0
        %2426 = vmatpush1.msra.mxu0 %v2374
        %2427 = vmatprep.subr.mxu0 0.0
        %2428 = vmatpush1.msra.mxu0 %v2373
        %2429 = vmatprep.subr.mxu0 0.0
        %2430 = vmatpush1.msra.mxu0 %v2372
        %2431 = vmatprep.subr.mxu0 0.0
        %2432 = vmatpush1.msra.mxu0 %v2371
        %2433 = vmatprep.subr.mxu0 0.0
        %2434 = vmatpush1.msra.mxu0 %v2370
        %2435 = vmatprep.subr.mxu0 0.0
        %2436 = vmatpush1.msra.mxu0 %v2369
        %2437 = vmatprep.subr.mxu0 0.0
        %2438 = vmatpush1.msra.mxu0 %v2368
        %2439 = vmatprep.subr.mxu0 0.0
        %2440 = vmatpush1.msra.mxu0 %v2367
        %2441 = vmatprep.subr.mxu0 0.0
        %2442 = vmatpush1.msra.mxu0 %v2366
        %2443 = vmatprep.subr.mxu0 0.0
        %2444 = vmatpush1.msra.mxu0 %v2365
        %2445 = vmatprep.subr.mxu0 0.0
        %2446 = vmatpush1.msra.mxu0 %v2364
        %2447 = vmatprep.subr.mxu0 0.0
        %2448 = vmatpush1.msra.mxu0 %v2363
        %2449 = vmatprep.subr.mxu0 0.0
        %2450 = vmatpush1.msra.mxu0 %v2362
        %2451 = vmatprep.subr.mxu0 0.0
        %2452 = vmatpush2.msra.mxu0 %v2393
        %2453 = vmatprep.subr.mxu0 0.0
        %2454 = vmatpush2.msra.mxu0 %v2392
        %2455 = vmatprep.subr.mxu0 0.0
        %2456 = vmatpush2.msra.mxu0 %v2391
        %2457 = vmatprep.subr.mxu0 0.0
        %2458 = vmatpush2.msra.mxu0 %v2390
        %2459 = vmatprep.subr.mxu0 0.0
        %2460 = vmatpush2.msra.mxu0 %v2389
        %2461 = vmatprep.subr.mxu0 0.0
        %2462 = vmatpush2.msra.mxu0 %v2388
        %2463 = vmatprep.subr.mxu0 0.0
        %2464 = vmatpush2.msra.mxu0 %v2387
        %2465 = vmatprep.subr.mxu0 0.0
        %2466 = vmatpush2.msra.mxu0 %v2386
        %2467 = vmatprep.subr.mxu0 0.0
        %2468 = vmatpush2.msra.mxu0 %v2385
        %2469 = vmatprep.subr.mxu0 0.0
        %2470 = vmatpush2.msra.mxu0 %v2384
        %2471 = vmatprep.subr.mxu0 0.0
        %2472 = vmatpush2.msra.mxu0 %v2383
        %2473 = vmatprep.subr.mxu0 0.0
        %2474 = vmatpush2.msra.mxu0 %v2382
        %2475 = vmatprep.subr.mxu0 0.0
        %2476 = vmatpush2.msra.mxu0 %v2381
        %2477 = vmatprep.subr.mxu0 0.0
        %2478 = vmatpush2.msra.mxu0 %v2380
        %2479 = vmatprep.subr.mxu0 0.0
        %2480 = vmatpush2.msra.mxu0 %v2379
        %2481 = vmatprep.subr.mxu0 0.0
        %2482 = vmatpush2.msra.mxu0 %v2378
        %2483 = vmatprep.mubr.f32.mxu0 %v2412
        %2484 = vmatmul.mubr.f32.gmra.mxu0 %v2358
        %v2485 = vpop.f32.mrf.mxu0
        %v2486 = vadd.f32 0.0, %v2485
        %v2487 = vpop.f32.mrf.mxu0
        %2488 = vdwg.mxu0
        %2489 = vmatprep.subr.mxu0 0.0
        %2490 = vmatpush1.msra.mxu0 %v2409
        %2491 = vmatprep.subr.mxu0 0.0
        %2492 = vmatpush1.msra.mxu0 %v2408
        %2493 = vmatprep.subr.mxu0 0.0
        %2494 = vmatpush1.msra.mxu0 %v2407
        %2495 = vmatprep.subr.mxu0 0.0
        %2496 = vmatpush1.msra.mxu0 %v2406
        %2497 = vmatprep.subr.mxu0 0.0
        %2498 = vmatpush1.msra.mxu0 %v2405
        %2499 = vmatprep.subr.mxu0 0.0
        %2500 = vmatpush1.msra.mxu0 %v2404
        %2501 = vmatprep.subr.mxu0 0.0
        %2502 = vmatpush1.msra.mxu0 %v2403
        %2503 = vmatprep.subr.mxu0 0.0
        %2504 = vmatpush1.msra.mxu0 %v2402
        %2505 = vmatprep.subr.mxu0 0.0
        %2506 = vmatpush1.msra.mxu0 %v2401
        %2507 = vmatprep.subr.mxu0 0.0
        %2508 = vmatpush1.msra.mxu0 %v2400
        %2509 = vmatprep.subr.mxu0 0.0
        %2510 = vmatpush1.msra.mxu0 %v2399
        %2511 = vmatprep.subr.mxu0 0.0
        %2512 = vmatpush1.msra.mxu0 %v2398
        %2513 = vmatprep.subr.mxu0 0.0
        %2514 = vmatpush1.msra.mxu0 %v2397
        %2515 = vmatprep.subr.mxu0 0.0
        %2516 = vmatpush1.msra.mxu0 %v2396
        %2517 = vmatprep.subr.mxu0 0.0
        %2518 = vmatpush1.msra.mxu0 %v2395
        %2519 = vmatprep.subr.mxu0 0.0
        %2520 = vmatpush1.msra.mxu0 %v2394
        %2521 = vmatprep.subr.mxu0 0.0
        %2522 = vmatpush2.msra.mxu0 0.0
        %2523 = vmatprep.subr.mxu0 0.0
        %2524 = vmatpush2.msra.mxu0 0.0
        %2525 = vmatprep.subr.mxu0 0.0
        %2526 = vmatpush2.msra.mxu0 0.0
        %2527 = vmatprep.subr.mxu0 0.0
        %2528 = vmatpush2.msra.mxu0 0.0
        %2529 = vmatprep.subr.mxu0 0.0
        %2530 = vmatpush2.msra.mxu0 0.0
        %2531 = vmatprep.subr.mxu0 0.0
        %2532 = vmatpush2.msra.mxu0 0.0
        %2533 = vmatprep.subr.mxu0 0.0
        %2534 = vmatpush2.msra.mxu0 0.0
        %2535 = vmatprep.subr.mxu0 0.0
        %2536 = vmatpush2.msra.mxu0 0.0
        %2537 = vmatprep.subr.mxu0 0.0
        %2538 = vmatpush2.msra.mxu0 0.0
        %2539 = vmatprep.subr.mxu0 0.0
        %2540 = vmatpush2.msra.mxu0 0.0
        %2541 = vmatprep.subr.mxu0 0.0
        %2542 = vmatpush2.msra.mxu0 0.0
        %2543 = vmatprep.subr.mxu0 0.0
        %2544 = vmatpush2.msra.mxu0 0.0
        %2545 = vmatprep.subr.mxu0 0.0
        %2546 = vmatpush2.msra.mxu0 0.0
        %2547 = vmatprep.subr.mxu0 0.0
        %2548 = vmatpush2.msra.mxu0 0.0
        %2549 = vmatprep.subr.mxu0 0.0
        %2550 = vmatpush2.msra.mxu0 0.0
        %2551 = vmatprep.subr.mxu0 0.0
        %2552 = vmatpush2.msra.mxu0 0.0
        %2553 = vmatprep.mubr.f32.mxu0 0.0
        %2554 = vmatmul.mubr.f32.gmra.mxu0 %v2415
        %v2555 = vpop.f32.mrf.mxu0
        %v2556 = vadd.f32 %v2486, %v2555
        %v2557 = vpop.f32.mrf.mxu0
        %2558 = vdwg.mxu0
        %v2559 = vld [vmem:[#allocation21] sm:$0x1]
        %v2561 = vlaneseq
        %v2562 = vshrl.u32 %v2561, 7
        %v2563 = vsub.s32 0, %v2562
        %v2564 = vrot.slane %v2559, %v2563
        %v2566 = vmul.f32 %v2556, %v2564
        %v2567 = vld [vmem:[#allocation22] sm:$0x1]
        %v2569 = vlaneseq
        %v2570 = vshrl.u32 %v2569, 7
        %v2571 = vsub.s32 0, %v2570
        %v2572 = vrot.slane %v2567, %v2571
        %v2574 = vadd.f32 %v2566, %v2572
        %v2575 = vmax.f32 %v2574, 0.0
        %v2576 = vld [vmem:[%s629 + $0x8] sm:$0xff]
        %v2577 = vld [vmem:[%s629 + $0x10] sm:$0xff]
        %v2578 = vld [vmem:[%s629 + $0x18] sm:$0xff]
        %v2579 = vld [vmem:[%s629 + $0x20] sm:$0xff]
        %v2580 = vld [vmem:[%s629 + $0x28] sm:$0xff]
        %v2581 = vld [vmem:[%s629 + $0x30] sm:$0xff]
        %v2582 = vld [vmem:[%s629 + $0x38] sm:$0xff]
        %v2583 = vld [vmem:[%s629 + $0x40] sm:$0xff]
        %v2584 = vld [vmem:[%s629 + $0x48] sm:$0xff]
        %v2585 = vld [vmem:[%s629 + $0x50] sm:$0xff]
        %v2586 = vld [vmem:[%s629 + $0x58] sm:$0xff]
        %v2587 = vld [vmem:[%s629 + $0x60] sm:$0xff]
        %v2588 = vld [vmem:[%s629 + $0x68] sm:$0xff]
        %v2589 = vld [vmem:[%s629 + $0x70] sm:$0xff]
        %v2590 = vld [vmem:[%s629 + $0x78] sm:$0xff]
        %2591 = vst [vmem:[%s739] sm:$0xff] %v2576
        %2592 = vst [vmem:[%s739 + $0x8] sm:$0xff] %v2577
        %2593 = vst [vmem:[%s739 + $0x10] sm:$0xff] %v2578
        %2594 = vst [vmem:[%s739 + $0x18] sm:$0xff] %v2579
        %2595 = vst [vmem:[%s739 + $0x20] sm:$0xff] %v2580
        %2596 = vst [vmem:[%s739 + $0x28] sm:$0xff] %v2581
        %2597 = vst [vmem:[%s739 + $0x30] sm:$0xff] %v2582
        %2598 = vst [vmem:[%s739 + $0x38] sm:$0xff] %v2583
        %2599 = vst [vmem:[%s739 + $0x40] sm:$0xff] %v2584
        %2600 = vst [vmem:[%s739 + $0x48] sm:$0xff] %v2585
        %2601 = vst [vmem:[%s739 + $0x50] sm:$0xff] %v2586
        %2602 = vst [vmem:[%s739 + $0x58] sm:$0xff] %v2587
        %2603 = vst [vmem:[%s739 + $0x60] sm:$0xff] %v2588
        %2604 = vst [vmem:[%s739 + $0x68] sm:$0xff] %v2589
        %2605 = vst [vmem:[%s739 + $0x70] sm:$0xff] %v2590
        %2606 = vst [vmem:[%s739 + $0x78] sm:$0xff] %v2575
        %v2607 = vld [vmem:[%s739] sm:$0xff]
        %v2608 = vld [vmem:[%s739 + $0x8] sm:$0xff]
        %v2609 = vld [vmem:[%s739 + $0x10] sm:$0xff]
        %v2610 = vld [vmem:[%s739 + $0x18] sm:$0xff]
        %v2611 = vld [vmem:[%s739 + $0x20] sm:$0xff]
        %v2612 = vld [vmem:[%s739 + $0x28] sm:$0xff]
        %v2613 = vld [vmem:[%s739 + $0x30] sm:$0xff]
        %v2614 = vld [vmem:[%s739 + $0x38] sm:$0xff]
        %v2615 = vld [vmem:[%s739 + $0x40] sm:$0xff]
        %v2616 = vld [vmem:[%s739 + $0x48] sm:$0xff]
        %v2617 = vld [vmem:[%s739 + $0x50] sm:$0xff]
        %v2618 = vld [vmem:[%s739 + $0x58] sm:$0xff]
        %v2619 = vld [vmem:[%s739 + $0x60] sm:$0xff]
        %v2620 = vld [vmem:[%s739 + $0x68] sm:$0xff]
        %v2621 = vld [vmem:[%s739 + $0x70] sm:$0xff]
        %v2622 = vld [vmem:[%s739 + $0x78] sm:$0xff]
        %v2639 = vrot.slane %v2607, 1
        %v2640 = vrot.slane %v2608, 1
        %v2641 = vsel %vm1243, %v2639, %v2640
        %v2642 = vrot.slane %v2609, 1
        %v2643 = vsel %vm1243, %v2640, %v2642
        %v2644 = vrot.slane %v2610, 1
        %v2645 = vsel %vm1243, %v2642, %v2644
        %v2646 = vrot.slane %v2611, 1
        %v2647 = vsel %vm1243, %v2644, %v2646
        %v2648 = vrot.slane %v2612, 1
        %v2649 = vsel %vm1243, %v2646, %v2648
        %v2650 = vrot.slane %v2613, 1
        %v2651 = vsel %vm1243, %v2648, %v2650
        %v2652 = vrot.slane %v2614, 1
        %v2653 = vsel %vm1243, %v2650, %v2652
        %v2654 = vrot.slane %v2615, 1
        %v2655 = vsel %vm1243, %v2652, %v2654
        %v2656 = vrot.slane %v2616, 1
        %v2657 = vsel %vm1243, %v2654, %v2656
        %v2658 = vrot.slane %v2617, 1
        %v2659 = vsel %vm1243, %v2656, %v2658
        %v2660 = vrot.slane %v2618, 1
        %v2661 = vsel %vm1243, %v2658, %v2660
        %v2662 = vrot.slane %v2619, 1
        %v2663 = vsel %vm1243, %v2660, %v2662
        %v2664 = vrot.slane %v2620, 1
        %v2665 = vsel %vm1243, %v2662, %v2664
        %v2666 = vrot.slane %v2621, 1
        %v2667 = vsel %vm1243, %v2664, %v2666
        %v2668 = vrot.slane %v2622, 1
        %v2669 = vsel %vm1243, %v2666, %v2668
        %v2670 = vsel %vm1243, %v2668, %v1275
        %v2687 = vmax.f32 %v2607, %v2641
        %v2688 = vmax.f32 %v2608, %v2643
        %v2689 = vmax.f32 %v2609, %v2645
        %v2690 = vmax.f32 %v2610, %v2647
        %v2691 = vmax.f32 %v2611, %v2649
        %v2692 = vmax.f32 %v2612, %v2651
        %v2693 = vmax.f32 %v2613, %v2653
        %v2694 = vmax.f32 %v2614, %v2655
        %v2695 = vmax.f32 %v2615, %v2657
        %v2696 = vmax.f32 %v2616, %v2659
        %v2697 = vmax.f32 %v2617, %v2661
        %v2698 = vmax.f32 %v2618, %v2663
        %v2699 = vmax.f32 %v2619, %v2665
        %v2700 = vmax.f32 %v2620, %v2667
        %v2701 = vmax.f32 %v2621, %v2669
        %v2702 = vmax.f32 %v2622, %v2670
        %v2719 = vrot.slane %v2687, 2
        %v2720 = vrot.slane %v2688, 2
        %v2721 = vsel %vm1679, %v2719, %v2720
        %v2722 = vrot.slane %v2689, 2
        %v2723 = vsel %vm1679, %v2720, %v2722
        %v2724 = vrot.slane %v2690, 2
        %v2725 = vsel %vm1679, %v2722, %v2724
        %v2726 = vrot.slane %v2691, 2
        %v2727 = vsel %vm1679, %v2724, %v2726
        %v2728 = vrot.slane %v2692, 2
        %v2729 = vsel %vm1679, %v2726, %v2728
        %v2730 = vrot.slane %v2693, 2
        %v2731 = vsel %vm1679, %v2728, %v2730
        %v2732 = vrot.slane %v2694, 2
        %v2733 = vsel %vm1679, %v2730, %v2732
        %v2734 = vrot.slane %v2695, 2
        %v2735 = vsel %vm1679, %v2732, %v2734
        %v2736 = vrot.slane %v2696, 2
        %v2737 = vsel %vm1679, %v2734, %v2736
        %v2738 = vrot.slane %v2697, 2
        %v2739 = vsel %vm1679, %v2736, %v2738
        %v2740 = vrot.slane %v2698, 2
        %v2741 = vsel %vm1679, %v2738, %v2740
        %v2742 = vrot.slane %v2699, 2
        %v2743 = vsel %vm1679, %v2740, %v2742
        %v2744 = vrot.slane %v2700, 2
        %v2745 = vsel %vm1679, %v2742, %v2744
        %v2746 = vrot.slane %v2701, 2
        %v2747 = vsel %vm1679, %v2744, %v2746
        %v2748 = vrot.slane %v2702, 2
        %v2749 = vsel %vm1679, %v2746, %v2748
        %v2750 = vsel %vm1679, %v2748, %v1715
        %v2767 = vmax.f32 %v2687, %v2721
        %v2768 = vmax.f32 %v2688, %v2723
        %v2769 = vmax.f32 %v2689, %v2725
        %v2770 = vmax.f32 %v2690, %v2727
        %v2771 = vmax.f32 %v2691, %v2729
        %v2772 = vmax.f32 %v2692, %v2731
        %v2773 = vmax.f32 %v2693, %v2733
        %v2774 = vmax.f32 %v2694, %v2735
        %v2775 = vmax.f32 %v2695, %v2737
        %v2776 = vmax.f32 %v2696, %v2739
        %v2777 = vmax.f32 %v2697, %v2741
        %v2778 = vmax.f32 %v2698, %v2743
        %v2779 = vmax.f32 %v2699, %v2745
        %v2780 = vmax.f32 %v2700, %v2747
        %v2781 = vmax.f32 %v2701, %v2749
        %v2782 = vmax.f32 %v2702, %v2750
        %2783 = vmatprep.subr.mxu0 0.0
        %2784 = vmatpush1.msra.mxu0 %v2782
        %2785 = vmatprep.subr.mxu0 0.0
        %2786 = vmatpush1.msra.mxu0 %v2781
        %2787 = vmatprep.subr.mxu0 0.0
        %2788 = vmatpush1.msra.mxu0 %v2780
        %2789 = vmatprep.subr.mxu0 0.0
        %2790 = vmatpush1.msra.mxu0 %v2779
        %2791 = vmatprep.subr.mxu0 0.0
        %2792 = vmatpush1.msra.mxu0 %v2778
        %2793 = vmatprep.subr.mxu0 0.0
        %2794 = vmatpush1.msra.mxu0 %v2777
        %2795 = vmatprep.subr.mxu0 0.0
        %2796 = vmatpush1.msra.mxu0 %v2776
        %2797 = vmatprep.subr.mxu0 0.0
        %2798 = vmatpush1.msra.mxu0 %v2775
        %2799 = vmatprep.subr.mxu0 0.0
        %2800 = vmatpush1.msra.mxu0 %v2774
        %2801 = vmatprep.subr.mxu0 0.0
        %2802 = vmatpush1.msra.mxu0 %v2773
        %2803 = vmatprep.subr.mxu0 0.0
        %2804 = vmatpush1.msra.mxu0 %v2772
        %2805 = vmatprep.subr.mxu0 0.0
        %2806 = vmatpush1.msra.mxu0 %v2771
        %2807 = vmatprep.subr.mxu0 0.0
        %2808 = vmatpush1.msra.mxu0 %v2770
        %2809 = vmatprep.subr.mxu0 0.0
        %2810 = vmatpush1.msra.mxu0 %v2769
        %2811 = vmatprep.subr.mxu0 0.0
        %2812 = vmatpush1.msra.mxu0 %v2768
        %2813 = vmatprep.subr.mxu0 0.0
        %2814 = vmatpush1.msra.mxu0 %v2767
        %2815 = vmatprep.subr.mxu0 0.0
        %2816 = vmatpush2.msra.mxu0 0.0
        %2817 = vmatprep.subr.mxu0 0.0
        %2818 = vmatpush2.msra.mxu0 0.0
        %2819 = vmatprep.subr.mxu0 0.0
        %2820 = vmatpush2.msra.mxu0 0.0
        %2821 = vmatprep.subr.mxu0 0.0
        %2822 = vmatpush2.msra.mxu0 0.0
        %2823 = vmatprep.subr.mxu0 0.0
        %2824 = vmatpush2.msra.mxu0 0.0
        %2825 = vmatprep.subr.mxu0 0.0
        %2826 = vmatpush2.msra.mxu0 0.0
        %2827 = vmatprep.subr.mxu0 0.0
        %2828 = vmatpush2.msra.mxu0 0.0
        %2829 = vmatprep.subr.mxu0 0.0
        %2830 = vmatpush2.msra.mxu0 0.0
        %2831 = vmatprep.subr.mxu0 0.0
        %2832 = vmatpush2.msra.mxu0 0.0
        %2833 = vmatprep.subr.mxu0 0.0
        %2834 = vmatpush2.msra.mxu0 0.0
        %2835 = vmatprep.subr.mxu0 0.0
        %2836 = vmatpush2.msra.mxu0 0.0
        %2837 = vmatprep.subr.mxu0 0.0
        %2838 = vmatpush2.msra.mxu0 0.0
        %2839 = vmatprep.subr.mxu0 0.0
        %2840 = vmatpush2.msra.mxu0 0.0
        %2841 = vmatprep.subr.mxu0 0.0
        %2842 = vmatpush2.msra.mxu0 0.0
        %2843 = vmatprep.subr.mxu0 0.0
        %2844 = vmatpush2.msra.mxu0 0.0
        %2845 = vmatprep.subr.mxu0 0.0
        %2846 = vmatpush2.msra.mxu0 0.0
        %2847 = vmatprep.mubr.f32.mxu0 0.0
        %2848 = vmatmul.mubr.f32.gmra.mxu0 %v1787
        %v2849 = vpop.f32.mrf.mxu0
        %v2850 = vadd.f32 0.0, %v2849
        %v2851 = vpop.f32.mrf.mxu0
        %2852 = vmatprep.mubr.f32.mxu0 0.0
        %2853 = vmatmul.mubr.f32.gmra.mxu0 %v1789
        %v2854 = vpop.f32.mrf.mxu0
        %v2855 = vadd.f32 0.0, %v2854
        %v2856 = vpop.f32.mrf.mxu0
        %2857 = vmatprep.mubr.f32.mxu0 0.0
        %2858 = vmatmul.mubr.f32.gmra.mxu0 %v1791
        %v2859 = vpop.f32.mrf.mxu0
        %v2860 = vadd.f32 0.0, %v2859
        %v2861 = vpop.f32.mrf.mxu0
        %2862 = vmatprep.mubr.f32.mxu0 0.0
        %2863 = vmatmul.mubr.f32.gmra.mxu0 %v1793
        %v2864 = vpop.f32.mrf.mxu0
        %v2865 = vadd.f32 0.0, %v2864
        %v2866 = vpop.f32.mrf.mxu0
        %2867 = vdwg.mxu0
        %v2871 = vrot.slane %v2850, 1
        %v2872 = vrot.slane %v2855, 1
        %v2873 = vsel %vm1243, %v2871, %v2872
        %v2874 = vrot.slane %v2860, 1
        %v2875 = vsel %vm1243, %v2872, %v2874
        %v2879 = vrot.slane %v2850, 2
        %v2880 = vrot.slane %v2855, 2
        %v2881 = vsel %vm1679, %v2879, %v2880
        %v2882 = vrot.slane %v2860, 2
        %v2883 = vsel %vm1679, %v2880, %v2882
        %vm2887 = vcmask 1044480
        %v2888 = vrot.slane %v2850, 3
        %v2889 = vrot.slane %v2855, 3
        %v2890 = vsel %vm2887, %v2888, %v2889
        %v2891 = vrot.slane %v2860, 3
        %v2892 = vsel %vm2887, %v2889, %v2891
        %v2896 = vrot.slane %v2850, 4
        %v2897 = vrot.slane %v2855, 4
        %v2898 = vsel %vm876, %v2896, %v2897
        %v2899 = vrot.slane %v2860, 4
        %v2900 = vsel %vm876, %v2897, %v2899
        %vm2904 = vcmask 1042432
        %v2905 = vrot.slane %v2850, 5
        %v2906 = vrot.slane %v2855, 5
        %v2907 = vsel %vm2904, %v2905, %v2906
        %v2908 = vrot.slane %v2860, 5
        %v2909 = vsel %vm2904, %v2906, %v2908
        %vm2913 = vcmask 1041408
        %v2914 = vrot.slane %v2850, 6
        %v2915 = vrot.slane %v2855, 6
        %v2916 = vsel %vm2913, %v2914, %v2915
        %v2917 = vrot.slane %v2860, 6
        %v2918 = vsel %vm2913, %v2915, %v2917
        %v2922 = vrot.slane %v2850, 7
        %v2923 = vrot.slane %v2855, 7
        %v2924 = vsel %vm1026, %v2922, %v2923
        %v2925 = vrot.slane %v2860, 7
        %v2926 = vsel %vm1026, %v2923, %v2925
        %v2931 = vrot.slane %v2865, 1
        %v2932 = vsel %vm1243, %v2874, %v2931
        %v2935 = vrot.slane %v2865, 2
        %v2936 = vsel %vm1679, %v2882, %v2935
        %v2939 = vrot.slane %v2865, 3
        %v2940 = vsel %vm2887, %v2891, %v2939
        %v2943 = vrot.slane %v2865, 4
        %v2944 = vsel %vm876, %v2899, %v2943
        %v2947 = vrot.slane %v2865, 5
        %v2948 = vsel %vm2904, %v2908, %v2947
        %v2951 = vrot.slane %v2865, 6
        %v2952 = vsel %vm2913, %v2917, %v2951
        %v2955 = vrot.slane %v2865, 7
        %v2956 = vsel %vm1026, %v2925, %v2955
        %v2959 = vld [vmem:[#allocation24] sm:$0xff]
        %v2960 = vld [vmem:[#allocation24 + $0x8] sm:$0xff]
        %v2961 = vld [vmem:[#allocation24 + $0x10] sm:$0xff]
        %v2962 = vld [vmem:[#allocation24 + $0x18] sm:$0xff]
        %v2963 = vld [vmem:[#allocation24 + $0x20] sm:$0xff]
        %v2964 = vld [vmem:[#allocation24 + $0x28] sm:$0xff]
        %v2965 = vld [vmem:[#allocation24 + $0x30] sm:$0xff]
        %v2966 = vld [vmem:[#allocation24 + $0x38] sm:$0xff]
        %v2967 = vld [vmem:[#allocation24 + $0x40] sm:$0xff]
        %v2968 = vld [vmem:[#allocation24 + $0x48] sm:$0xff]
        %v2969 = vld [vmem:[#allocation24 + $0x50] sm:$0xff]
        %v2970 = vld [vmem:[#allocation24 + $0x58] sm:$0xff]
        %v2971 = vld [vmem:[#allocation24 + $0x60] sm:$0xff]
        %v2972 = vld [vmem:[#allocation24 + $0x68] sm:$0xff]
        %v2973 = vld [vmem:[#allocation24 + $0x70] sm:$0xff]
        %v2974 = vld [vmem:[#allocation24 + $0x78] sm:$0xff]
        %v2975 = vld [vmem:[#allocation24 + $0x80] sm:$0xff]
        %v2976 = vld [vmem:[#allocation24 + $0x88] sm:$0xff]
        %v2977 = vld [vmem:[#allocation24 + $0x90] sm:$0xff]
        %v2978 = vld [vmem:[#allocation24 + $0x98] sm:$0xff]
        %v2979 = vld [vmem:[#allocation24 + $0xa0] sm:$0xff]
        %v2980 = vld [vmem:[#allocation24 + $0xa8] sm:$0xff]
        %v2981 = vld [vmem:[#allocation24 + $0xb0] sm:$0xff]
        %v2982 = vld [vmem:[#allocation24 + $0xb8] sm:$0xff]
        %v2983 = vld [vmem:[#allocation24 + $0xc0] sm:$0xff]
        %v2984 = vld [vmem:[#allocation24 + $0xc8] sm:$0xff]
        %v2985 = vld [vmem:[#allocation24 + $0xd0] sm:$0xff]
        %v2986 = vld [vmem:[#allocation24 + $0xd8] sm:$0xff]
        %v2987 = vld [vmem:[#allocation24 + $0xe0] sm:$0xff]
        %v2988 = vld [vmem:[#allocation24 + $0xe8] sm:$0xff]
        %v2989 = vld [vmem:[#allocation24 + $0xf0] sm:$0xff]
        %v2990 = vld [vmem:[#allocation24 + $0xf8] sm:$0xff]
        %v2991 = vld [vmem:[#allocation24 + $0x100] sm:$0xff]
        %v2992 = vld [vmem:[#allocation24 + $0x108] sm:$0xff]
        %v2993 = vld [vmem:[#allocation24 + $0x110] sm:$0xff]
        %v2994 = vld [vmem:[#allocation24 + $0x118] sm:$0xff]
        %v2995 = vld [vmem:[#allocation24 + $0x120] sm:$0xff]
        %v2996 = vld [vmem:[#allocation24 + $0x128] sm:$0xff]
        %v2997 = vld [vmem:[#allocation24 + $0x130] sm:$0xff]
        %v2998 = vld [vmem:[#allocation24 + $0x138] sm:$0xff]
        %v2999 = vld [vmem:[#allocation24 + $0x140] sm:$0xff]
        %v3000 = vld [vmem:[#allocation24 + $0x148] sm:$0xff]
        %v3001 = vld [vmem:[#allocation24 + $0x150] sm:$0xff]
        %v3002 = vld [vmem:[#allocation24 + $0x158] sm:$0xff]
        %v3003 = vld [vmem:[#allocation24 + $0x160] sm:$0xff]
        %v3004 = vld [vmem:[#allocation24 + $0x168] sm:$0xff]
        %v3005 = vld [vmem:[#allocation24 + $0x170] sm:$0xff]
        %v3006 = vld [vmem:[#allocation24 + $0x178] sm:$0xff]
        %v3007 = vld [vmem:[#allocation24 + $0x180] sm:$0xff]
        %v3008 = vld [vmem:[#allocation24 + $0x188] sm:$0xff]
        %v3009 = vld [vmem:[#allocation24 + $0x190] sm:$0xff]
        %v3010 = vld [vmem:[#allocation24 + $0x198] sm:$0xff]
        %v3011 = vld [vmem:[#allocation24 + $0x1a0] sm:$0xff]
        %v3012 = vld [vmem:[#allocation24 + $0x1a8] sm:$0xff]
        %v3013 = vld [vmem:[#allocation24 + $0x1b0] sm:$0xff]
        %v3014 = vld [vmem:[#allocation24 + $0x1b8] sm:$0xff]
        %v3015 = vld [vmem:[#allocation24 + $0x1c0] sm:$0xff]
        %v3016 = vld [vmem:[#allocation24 + $0x1c8] sm:$0xff]
        %v3017 = vld [vmem:[#allocation24 + $0x1d0] sm:$0xff]
        %v3018 = vld [vmem:[#allocation24 + $0x1d8] sm:$0xff]
        %v3019 = vld [vmem:[#allocation24 + $0x1e0] sm:$0xff]
        %v3020 = vld [vmem:[#allocation24 + $0x1e8] sm:$0xff]
        %v3021 = vld [vmem:[#allocation24 + $0x1f0] sm:$0xff]
        %v3022 = vld [vmem:[#allocation24 + $0x1f8] sm:$0xff]
        %v3023 = vld [vmem:[#allocation24 + $0x200] sm:$0xff]
        %v3024 = vld [vmem:[#allocation24 + $0x208] sm:$0xff]
        %v3025 = vld [vmem:[#allocation24 + $0x210] sm:$0xff]
        %v3026 = vld [vmem:[#allocation24 + $0x218] sm:$0xff]
        %v3027 = vld [vmem:[#allocation24 + $0x220] sm:$0xff]
        %v3028 = vld [vmem:[#allocation24 + $0x228] sm:$0xff]
        %v3029 = vld [vmem:[#allocation24 + $0x230] sm:$0xff]
        %v3030 = vld [vmem:[#allocation24 + $0x238] sm:$0xff]
        %v3031 = vld [vmem:[#allocation24 + $0x240] sm:$0xff]
        %v3032 = vld [vmem:[#allocation24 + $0x248] sm:$0xff]
        %v3033 = vld [vmem:[#allocation24 + $0x250] sm:$0xff]
        %v3034 = vld [vmem:[#allocation24 + $0x258] sm:$0xff]
        %v3035 = vld [vmem:[#allocation24 + $0x260] sm:$0xff]
        %v3036 = vld [vmem:[#allocation24 + $0x268] sm:$0xff]
        %v3037 = vld [vmem:[#allocation24 + $0x270] sm:$0xff]
        %v3038 = vld [vmem:[#allocation24 + $0x278] sm:$0xff]
        %v3039 = vld [vmem:[#allocation24 + $0x280] sm:$0xff]
        %v3040 = vld [vmem:[#allocation24 + $0x288] sm:$0xff]
        %v3041 = vld [vmem:[#allocation24 + $0x290] sm:$0xff]
        %v3042 = vld [vmem:[#allocation24 + $0x298] sm:$0xff]
        %v3043 = vld [vmem:[#allocation24 + $0x2a0] sm:$0xff]
        %v3044 = vld [vmem:[#allocation24 + $0x2a8] sm:$0xff]
        %v3045 = vld [vmem:[#allocation24 + $0x2b0] sm:$0xff]
        %v3046 = vld [vmem:[#allocation24 + $0x2b8] sm:$0xff]
        %v3047 = vld [vmem:[#allocation24 + $0x2c0] sm:$0xff]
        %v3048 = vld [vmem:[#allocation24 + $0x2c8] sm:$0xff]
        %v3049 = vld [vmem:[#allocation24 + $0x2d0] sm:$0xff]
        %v3050 = vld [vmem:[#allocation24 + $0x2d8] sm:$0xff]
        %v3051 = vld [vmem:[#allocation24 + $0x2e0] sm:$0xff]
        %v3052 = vld [vmem:[#allocation24 + $0x2e8] sm:$0xff]
        %v3053 = vld [vmem:[#allocation24 + $0x2f0] sm:$0xff]
        %v3054 = vld [vmem:[#allocation24 + $0x2f8] sm:$0xff]
        %v3055 = vld [vmem:[#allocation24 + $0x300] sm:$0xff]
        %v3056 = vld [vmem:[#allocation24 + $0x308] sm:$0xff]
        %v3057 = vld [vmem:[#allocation24 + $0x310] sm:$0xff]
        %v3058 = vld [vmem:[#allocation24 + $0x318] sm:$0xff]
        %v3059 = vld [vmem:[#allocation24 + $0x320] sm:$0xff]
        %v3060 = vld [vmem:[#allocation24 + $0x328] sm:$0xff]
        %v3061 = vld [vmem:[#allocation24 + $0x330] sm:$0xff]
        %v3062 = vld [vmem:[#allocation24 + $0x338] sm:$0xff]
        %v3063 = vld [vmem:[#allocation24 + $0x340] sm:$0xff]
        %v3064 = vld [vmem:[#allocation24 + $0x348] sm:$0xff]
        %v3065 = vld [vmem:[#allocation24 + $0x350] sm:$0xff]
        %v3066 = vld [vmem:[#allocation24 + $0x358] sm:$0xff]
        %v3067 = vld [vmem:[#allocation24 + $0x360] sm:$0xff]
        %v3068 = vld [vmem:[#allocation24 + $0x368] sm:$0xff]
        %v3069 = vld [vmem:[#allocation24 + $0x370] sm:$0xff]
        %v3070 = vld [vmem:[#allocation24 + $0x378] sm:$0xff]
        %v3071 = vld [vmem:[#allocation24 + $0x380] sm:$0xff]
        %v3072 = vld [vmem:[#allocation24 + $0x388] sm:$0xff]
        %v3073 = vld [vmem:[#allocation24 + $0x390] sm:$0xff]
        %v3074 = vld [vmem:[#allocation24 + $0x398] sm:$0xff]
        %v3075 = vld [vmem:[#allocation24 + $0x3a0] sm:$0xff]
        %v3076 = vld [vmem:[#allocation24 + $0x3a8] sm:$0xff]
        %v3077 = vld [vmem:[#allocation24 + $0x3b0] sm:$0xff]
        %v3078 = vld [vmem:[#allocation24 + $0x3b8] sm:$0xff]
        %v3079 = vld [vmem:[#allocation24 + $0x3c0] sm:$0xff]
        %v3080 = vld [vmem:[#allocation24 + $0x3c8] sm:$0xff]
        %v3081 = vld [vmem:[#allocation24 + $0x3d0] sm:$0xff]
        %v3082 = vld [vmem:[#allocation24 + $0x3d8] sm:$0xff]
        %v3083 = vld [vmem:[#allocation24 + $0x3e0] sm:$0xff]
        %v3084 = vld [vmem:[#allocation24 + $0x3e8] sm:$0xff]
        %v3085 = vld [vmem:[#allocation24 + $0x3f0] sm:$0xff]
        %v3086 = vld [vmem:[#allocation24 + $0x3f8] sm:$0xff]
        %v3087 = vld [vmem:[#allocation24 + $0x400] sm:$0xff]
        %v3088 = vld [vmem:[#allocation24 + $0x408] sm:$0xff]
        %v3089 = vld [vmem:[#allocation24 + $0x410] sm:$0xff]
        %v3090 = vld [vmem:[#allocation24 + $0x418] sm:$0xff]
        %v3091 = vld [vmem:[#allocation24 + $0x420] sm:$0xff]
        %v3092 = vld [vmem:[#allocation24 + $0x428] sm:$0xff]
        %v3093 = vld [vmem:[#allocation24 + $0x430] sm:$0xff]
        %v3094 = vld [vmem:[#allocation24 + $0x438] sm:$0xff]
        %v3095 = vld [vmem:[#allocation24 + $0x440] sm:$0xff]
        %v3096 = vld [vmem:[#allocation24 + $0x448] sm:$0xff]
        %v3097 = vld [vmem:[#allocation24 + $0x450] sm:$0xff]
        %v3098 = vld [vmem:[#allocation24 + $0x458] sm:$0xff]
        %v3099 = vld [vmem:[#allocation24 + $0x460] sm:$0xff]
        %v3100 = vld [vmem:[#allocation24 + $0x468] sm:$0xff]
        %v3101 = vld [vmem:[#allocation24 + $0x470] sm:$0xff]
        %v3102 = vld [vmem:[#allocation24 + $0x478] sm:$0xff]
        %v3103 = vld [vmem:[#allocation24 + $0x480] sm:$0xff]
        %v3104 = vld [vmem:[#allocation24 + $0x488] sm:$0xff]
        %v3105 = vld [vmem:[#allocation24 + $0x490] sm:$0xff]
        %v3106 = vld [vmem:[#allocation24 + $0x498] sm:$0xff]
        %v3107 = vld [vmem:[#allocation24 + $0x4a0] sm:$0xff]
        %v3108 = vld [vmem:[#allocation24 + $0x4a8] sm:$0xff]
        %v3109 = vld [vmem:[#allocation24 + $0x4b0] sm:$0xff]
        %v3110 = vld [vmem:[#allocation24 + $0x4b8] sm:$0xff]
        %v3111 = vld [vmem:[#allocation24 + $0x4c0] sm:$0xff]
        %v3112 = vld [vmem:[#allocation24 + $0x4c8] sm:$0xff]
        %v3113 = vld [vmem:[#allocation24 + $0x4d0] sm:$0xff]
        %v3114 = vld [vmem:[#allocation24 + $0x4d8] sm:$0xff]
        %v3115 = vld [vmem:[#allocation24 + $0x4e0] sm:$0xff]
        %v3116 = vld [vmem:[#allocation24 + $0x4e8] sm:$0xff]
        %v3117 = vld [vmem:[#allocation24 + $0x4f0] sm:$0xff]
        %v3118 = vld [vmem:[#allocation24 + $0x4f8] sm:$0xff]
        %v3119 = vld [vmem:[#allocation24 + $0x500] sm:$0xff]
        %v3120 = vld [vmem:[#allocation24 + $0x508] sm:$0xff]
        %v3121 = vld [vmem:[#allocation24 + $0x510] sm:$0xff]
        %v3122 = vld [vmem:[#allocation24 + $0x518] sm:$0xff]
        %v3123 = vld [vmem:[#allocation24 + $0x520] sm:$0xff]
        %v3124 = vld [vmem:[#allocation24 + $0x528] sm:$0xff]
        %v3125 = vld [vmem:[#allocation24 + $0x530] sm:$0xff]
        %v3126 = vld [vmem:[#allocation24 + $0x538] sm:$0xff]
        %v3127 = vld [vmem:[#allocation24 + $0x540] sm:$0xff]
        %v3128 = vld [vmem:[#allocation24 + $0x548] sm:$0xff]
        %v3129 = vld [vmem:[#allocation24 + $0x550] sm:$0xff]
        %v3130 = vld [vmem:[#allocation24 + $0x558] sm:$0xff]
        %v3131 = vld [vmem:[#allocation24 + $0x560] sm:$0xff]
        %v3132 = vld [vmem:[#allocation24 + $0x568] sm:$0xff]
        %v3133 = vld [vmem:[#allocation24 + $0x570] sm:$0xff]
        %v3134 = vld [vmem:[#allocation24 + $0x578] sm:$0xff]
        %v3135 = vld [vmem:[#allocation24 + $0x580] sm:$0xff]
        %v3136 = vld [vmem:[#allocation24 + $0x588] sm:$0xff]
        %v3137 = vld [vmem:[#allocation24 + $0x590] sm:$0xff]
        %v3138 = vld [vmem:[#allocation24 + $0x598] sm:$0xff]
        %v3139 = vld [vmem:[#allocation24 + $0x5a0] sm:$0xff]
        %v3140 = vld [vmem:[#allocation24 + $0x5a8] sm:$0xff]
        %v3141 = vld [vmem:[#allocation24 + $0x5b0] sm:$0xff]
        %v3142 = vld [vmem:[#allocation24 + $0x5b8] sm:$0xff]
        %v3143 = vld [vmem:[#allocation24 + $0x5c0] sm:$0xff]
        %v3144 = vld [vmem:[#allocation24 + $0x5c8] sm:$0xff]
        %v3145 = vld [vmem:[#allocation24 + $0x5d0] sm:$0xff]
        %v3146 = vld [vmem:[#allocation24 + $0x5d8] sm:$0xff]
        %v3147 = vld [vmem:[#allocation24 + $0x5e0] sm:$0xff]
        %v3148 = vld [vmem:[#allocation24 + $0x5e8] sm:$0xff]
        %v3149 = vld [vmem:[#allocation24 + $0x5f0] sm:$0xff]
        %v3150 = vld [vmem:[#allocation24 + $0x5f8] sm:$0xff]
        %v3151 = vld [vmem:[#allocation24 + $0x600] sm:$0xff]
        %v3152 = vld [vmem:[#allocation24 + $0x608] sm:$0xff]
        %v3153 = vld [vmem:[#allocation24 + $0x610] sm:$0xff]
        %v3154 = vld [vmem:[#allocation24 + $0x618] sm:$0xff]
        %v3155 = vld [vmem:[#allocation24 + $0x620] sm:$0xff]
        %v3156 = vld [vmem:[#allocation24 + $0x628] sm:$0xff]
        %v3157 = vld [vmem:[#allocation24 + $0x630] sm:$0xff]
        %v3158 = vld [vmem:[#allocation24 + $0x638] sm:$0xff]
        %v3159 = vld [vmem:[#allocation24 + $0x640] sm:$0xff]
        %v3160 = vld [vmem:[#allocation24 + $0x648] sm:$0xff]
        %v3161 = vld [vmem:[#allocation24 + $0x650] sm:$0xff]
        %v3162 = vld [vmem:[#allocation24 + $0x658] sm:$0xff]
        %v3163 = vld [vmem:[#allocation24 + $0x660] sm:$0xff]
        %v3164 = vld [vmem:[#allocation24 + $0x668] sm:$0xff]
        %v3165 = vld [vmem:[#allocation24 + $0x670] sm:$0xff]
        %v3166 = vld [vmem:[#allocation24 + $0x678] sm:$0xff]
        %v3167 = vld [vmem:[#allocation24 + $0x680] sm:$0xff]
        %v3168 = vld [vmem:[#allocation24 + $0x688] sm:$0xff]
        %v3169 = vld [vmem:[#allocation24 + $0x690] sm:$0xff]
        %v3170 = vld [vmem:[#allocation24 + $0x698] sm:$0xff]
        %v3171 = vld [vmem:[#allocation24 + $0x6a0] sm:$0xff]
        %v3172 = vld [vmem:[#allocation24 + $0x6a8] sm:$0xff]
        %v3173 = vld [vmem:[#allocation24 + $0x6b0] sm:$0xff]
        %v3174 = vld [vmem:[#allocation24 + $0x6b8] sm:$0xff]
        %v3175 = vld [vmem:[#allocation24 + $0x6c0] sm:$0xff]
        %v3176 = vld [vmem:[#allocation24 + $0x6c8] sm:$0xff]
        %v3177 = vld [vmem:[#allocation24 + $0x6d0] sm:$0xff]
        %v3178 = vld [vmem:[#allocation24 + $0x6d8] sm:$0xff]
        %v3179 = vld [vmem:[#allocation24 + $0x6e0] sm:$0xff]
        %v3180 = vld [vmem:[#allocation24 + $0x6e8] sm:$0xff]
        %v3181 = vld [vmem:[#allocation24 + $0x6f0] sm:$0xff]
        %v3182 = vld [vmem:[#allocation24 + $0x6f8] sm:$0xff]
        %v3183 = vld [vmem:[#allocation24 + $0x700] sm:$0xff]
        %v3184 = vld [vmem:[#allocation24 + $0x708] sm:$0xff]
        %v3185 = vld [vmem:[#allocation24 + $0x710] sm:$0xff]
        %v3186 = vld [vmem:[#allocation24 + $0x718] sm:$0xff]
        %v3187 = vld [vmem:[#allocation24 + $0x720] sm:$0xff]
        %v3188 = vld [vmem:[#allocation24 + $0x728] sm:$0xff]
        %v3189 = vld [vmem:[#allocation24 + $0x730] sm:$0xff]
        %v3190 = vld [vmem:[#allocation24 + $0x738] sm:$0xff]
        %v3191 = vld [vmem:[#allocation24 + $0x740] sm:$0xff]
        %v3192 = vld [vmem:[#allocation24 + $0x748] sm:$0xff]
        %v3193 = vld [vmem:[#allocation24 + $0x750] sm:$0xff]
        %v3194 = vld [vmem:[#allocation24 + $0x758] sm:$0xff]
        %v3195 = vld [vmem:[#allocation24 + $0x760] sm:$0xff]
        %v3196 = vld [vmem:[#allocation24 + $0x768] sm:$0xff]
        %v3197 = vld [vmem:[#allocation24 + $0x770] sm:$0xff]
        %v3198 = vld [vmem:[#allocation24 + $0x778] sm:$0xff]
        %v3199 = vld [vmem:[#allocation24 + $0x780] sm:$0xff]
        %v3200 = vld [vmem:[#allocation24 + $0x788] sm:$0xff]
        %v3201 = vld [vmem:[#allocation24 + $0x790] sm:$0xff]
        %v3202 = vld [vmem:[#allocation24 + $0x798] sm:$0xff]
        %v3203 = vld [vmem:[#allocation24 + $0x7a0] sm:$0xff]
        %v3204 = vld [vmem:[#allocation24 + $0x7a8] sm:$0xff]
        %v3205 = vld [vmem:[#allocation24 + $0x7b0] sm:$0xff]
        %v3206 = vld [vmem:[#allocation24 + $0x7b8] sm:$0xff]
        %v3207 = vld [vmem:[#allocation24 + $0x7c0] sm:$0xff]
        %v3208 = vld [vmem:[#allocation24 + $0x7c8] sm:$0xff]
        %v3209 = vld [vmem:[#allocation24 + $0x7d0] sm:$0xff]
        %v3210 = vld [vmem:[#allocation24 + $0x7d8] sm:$0xff]
        %v3211 = vld [vmem:[#allocation24 + $0x7e0] sm:$0xff]
        %v3212 = vld [vmem:[#allocation24 + $0x7e8] sm:$0xff]
        %v3213 = vld [vmem:[#allocation24 + $0x7f0] sm:$0xff]
        %v3214 = vld [vmem:[#allocation24 + $0x7f8] sm:$0xff]
        %v3215 = vld [vmem:[#allocation25] sm:$0x1]
        %v3217 = vlaneseq
        %v3218 = vshrl.u32 %v3217, 7
        %v3219 = vsub.s32 0, %v3218
        %v3220 = vrot.slane %v3215, %v3219
        %3222 = vmatprep.subr.mxu0 0.0
        %3223 = vmatpush1.msra.mxu0 %v2974
        %3224 = vmatprep.subr.mxu0 0.0
        %3225 = vmatpush1.msra.mxu0 %v2973
        %3226 = vmatprep.subr.mxu0 0.0
        %3227 = vmatpush1.msra.mxu0 %v2972
        %3228 = vmatprep.subr.mxu0 0.0
        %3229 = vmatpush1.msra.mxu0 %v2971
        %3230 = vmatprep.subr.mxu0 0.0
        %3231 = vmatpush1.msra.mxu0 %v2970
        %3232 = vmatprep.subr.mxu0 0.0
        %3233 = vmatpush1.msra.mxu0 %v2969
        %3234 = vmatprep.subr.mxu0 0.0
        %3235 = vmatpush1.msra.mxu0 %v2968
        %3236 = vmatprep.subr.mxu0 0.0
        %3237 = vmatpush1.msra.mxu0 %v2967
        %3238 = vmatprep.subr.mxu0 0.0
        %3239 = vmatpush1.msra.mxu0 %v2966
        %3240 = vmatprep.subr.mxu0 0.0
        %3241 = vmatpush1.msra.mxu0 %v2965
        %3242 = vmatprep.subr.mxu0 0.0
        %3243 = vmatpush1.msra.mxu0 %v2964
        %3244 = vmatprep.subr.mxu0 0.0
        %3245 = vmatpush1.msra.mxu0 %v2963
        %3246 = vmatprep.subr.mxu0 0.0
        %3247 = vmatpush1.msra.mxu0 %v2962
        %3248 = vmatprep.subr.mxu0 0.0
        %3249 = vmatpush1.msra.mxu0 %v2961
        %3250 = vmatprep.subr.mxu0 0.0
        %3251 = vmatpush1.msra.mxu0 %v2960
        %3252 = vmatprep.subr.mxu0 0.0
        %3253 = vmatpush1.msra.mxu0 %v2959
        %3254 = vmatprep.subr.mxu0 0.0
        %3255 = vmatpush2.msra.mxu0 %v2990
        %3256 = vmatprep.subr.mxu0 0.0
        %3257 = vmatpush2.msra.mxu0 %v2989
        %3258 = vmatprep.subr.mxu0 0.0
        %3259 = vmatpush2.msra.mxu0 %v2988
        %3260 = vmatprep.subr.mxu0 0.0
        %3261 = vmatpush2.msra.mxu0 %v2987
        %3262 = vmatprep.subr.mxu0 0.0
        %3263 = vmatpush2.msra.mxu0 %v2986
        %3264 = vmatprep.subr.mxu0 0.0
        %3265 = vmatpush2.msra.mxu0 %v2985
        %3266 = vmatprep.subr.mxu0 0.0
        %3267 = vmatpush2.msra.mxu0 %v2984
        %3268 = vmatprep.subr.mxu0 0.0
        %3269 = vmatpush2.msra.mxu0 %v2983
        %3270 = vmatprep.subr.mxu0 0.0
        %3271 = vmatpush2.msra.mxu0 %v2982
        %3272 = vmatprep.subr.mxu0 0.0
        %3273 = vmatpush2.msra.mxu0 %v2981
        %3274 = vmatprep.subr.mxu0 0.0
        %3275 = vmatpush2.msra.mxu0 %v2980
        %3276 = vmatprep.subr.mxu0 0.0
        %3277 = vmatpush2.msra.mxu0 %v2979
        %3278 = vmatprep.subr.mxu0 0.0
        %3279 = vmatpush2.msra.mxu0 %v2978
        %3280 = vmatprep.subr.mxu0 0.0
        %3281 = vmatpush2.msra.mxu0 %v2977
        %3282 = vmatprep.subr.mxu0 0.0
        %3283 = vmatpush2.msra.mxu0 %v2976
        %3284 = vmatprep.subr.mxu0 0.0
        %3285 = vmatpush2.msra.mxu0 %v2975
        %3286 = vmatprep.mubr.f32.mxu0 %v2873
        %3287 = vmatmul.mubr.f32.gmra.mxu0 %v2850
        %v3288 = vpop.f32.mrf.mxu0
        %v3289 = vadd.f32 %v3220, %v3288
        %v3290 = vpop.f32.mrf.mxu0
        %3291 = vmatprep.mubr.f32.mxu0 %v2875
        %3292 = vmatmul.mubr.f32.gmra.mxu0 %v2855
        %v3293 = vpop.f32.mrf.mxu0
        %v3294 = vadd.f32 %v3220, %v3293
        %v3295 = vpop.f32.mrf.mxu0
        %3296 = vmatprep.mubr.f32.mxu0 %v2874
        %3297 = vmatmul.mubr.f32.gmra.mxu0 %v2860
        %v3298 = vpop.f32.mrf.mxu0
        %v3299 = vadd.f32 %v3220, %v3298
        %v3300 = vpop.f32.mrf.mxu0
        %3301 = vdwg.mxu0
        %3302 = vmatprep.subr.mxu0 0.0
        %3303 = vmatpush1.msra.mxu0 %v3006
        %3304 = vmatprep.subr.mxu0 0.0
        %3305 = vmatpush1.msra.mxu0 %v3005
        %3306 = vmatprep.subr.mxu0 0.0
        %3307 = vmatpush1.msra.mxu0 %v3004
        %3308 = vmatprep.subr.mxu0 0.0
        %3309 = vmatpush1.msra.mxu0 %v3003
        %3310 = vmatprep.subr.mxu0 0.0
        %3311 = vmatpush1.msra.mxu0 %v3002
        %3312 = vmatprep.subr.mxu0 0.0
        %3313 = vmatpush1.msra.mxu0 %v3001
        %3314 = vmatprep.subr.mxu0 0.0
        %3315 = vmatpush1.msra.mxu0 %v3000
        %3316 = vmatprep.subr.mxu0 0.0
        %3317 = vmatpush1.msra.mxu0 %v2999
        %3318 = vmatprep.subr.mxu0 0.0
        %3319 = vmatpush1.msra.mxu0 %v2998
        %3320 = vmatprep.subr.mxu0 0.0
        %3321 = vmatpush1.msra.mxu0 %v2997
        %3322 = vmatprep.subr.mxu0 0.0
        %3323 = vmatpush1.msra.mxu0 %v2996
        %3324 = vmatprep.subr.mxu0 0.0
        %3325 = vmatpush1.msra.mxu0 %v2995
        %3326 = vmatprep.subr.mxu0 0.0
        %3327 = vmatpush1.msra.mxu0 %v2994
        %3328 = vmatprep.subr.mxu0 0.0
        %3329 = vmatpush1.msra.mxu0 %v2993
        %3330 = vmatprep.subr.mxu0 0.0
        %3331 = vmatpush1.msra.mxu0 %v2992
        %3332 = vmatprep.subr.mxu0 0.0
        %3333 = vmatpush1.msra.mxu0 %v2991
        %3334 = vmatprep.subr.mxu0 0.0
        %3335 = vmatpush2.msra.mxu0 %v3022
        %3336 = vmatprep.subr.mxu0 0.0
        %3337 = vmatpush2.msra.mxu0 %v3021
        %3338 = vmatprep.subr.mxu0 0.0
        %3339 = vmatpush2.msra.mxu0 %v3020
        %3340 = vmatprep.subr.mxu0 0.0
        %3341 = vmatpush2.msra.mxu0 %v3019
        %3342 = vmatprep.subr.mxu0 0.0
        %3343 = vmatpush2.msra.mxu0 %v3018
        %3344 = vmatprep.subr.mxu0 0.0
        %3345 = vmatpush2.msra.mxu0 %v3017
        %3346 = vmatprep.subr.mxu0 0.0
        %3347 = vmatpush2.msra.mxu0 %v3016
        %3348 = vmatprep.subr.mxu0 0.0
        %3349 = vmatpush2.msra.mxu0 %v3015
        %3350 = vmatprep.subr.mxu0 0.0
        %3351 = vmatpush2.msra.mxu0 %v3014
        %3352 = vmatprep.subr.mxu0 0.0
        %3353 = vmatpush2.msra.mxu0 %v3013
        %3354 = vmatprep.subr.mxu0 0.0
        %3355 = vmatpush2.msra.mxu0 %v3012
        %3356 = vmatprep.subr.mxu0 0.0
        %3357 = vmatpush2.msra.mxu0 %v3011
        %3358 = vmatprep.subr.mxu0 0.0
        %3359 = vmatpush2.msra.mxu0 %v3010
        %3360 = vmatprep.subr.mxu0 0.0
        %3361 = vmatpush2.msra.mxu0 %v3009
        %3362 = vmatprep.subr.mxu0 0.0
        %3363 = vmatpush2.msra.mxu0 %v3008
        %3364 = vmatprep.subr.mxu0 0.0
        %3365 = vmatpush2.msra.mxu0 %v3007
        %3366 = vmatprep.mubr.f32.mxu0 %v2890
        %3367 = vmatmul.mubr.f32.gmra.mxu0 %v2881
        %v3368 = vpop.f32.mrf.mxu0
        %v3369 = vadd.f32 %v3289, %v3368
        %v3370 = vpop.f32.mrf.mxu0
        %3371 = vmatprep.mubr.f32.mxu0 %v2892
        %3372 = vmatmul.mubr.f32.gmra.mxu0 %v2883
        %v3373 = vpop.f32.mrf.mxu0
        %v3374 = vadd.f32 %v3294, %v3373
        %v3375 = vpop.f32.mrf.mxu0
        %3376 = vmatprep.mubr.f32.mxu0 %v2891
        %3377 = vmatmul.mubr.f32.gmra.mxu0 %v2882
        %v3378 = vpop.f32.mrf.mxu0
        %v3379 = vadd.f32 %v3299, %v3378
        %v3380 = vpop.f32.mrf.mxu0
        %3381 = vdwg.mxu0
        %3382 = vmatprep.subr.mxu0 0.0
        %3383 = vmatpush1.msra.mxu0 %v3038
        %3384 = vmatprep.subr.mxu0 0.0
        %3385 = vmatpush1.msra.mxu0 %v3037
        %3386 = vmatprep.subr.mxu0 0.0
        %3387 = vmatpush1.msra.mxu0 %v3036
        %3388 = vmatprep.subr.mxu0 0.0
        %3389 = vmatpush1.msra.mxu0 %v3035
        %3390 = vmatprep.subr.mxu0 0.0
        %3391 = vmatpush1.msra.mxu0 %v3034
        %3392 = vmatprep.subr.mxu0 0.0
        %3393 = vmatpush1.msra.mxu0 %v3033
        %3394 = vmatprep.subr.mxu0 0.0
        %3395 = vmatpush1.msra.mxu0 %v3032
        %3396 = vmatprep.subr.mxu0 0.0
        %3397 = vmatpush1.msra.mxu0 %v3031
        %3398 = vmatprep.subr.mxu0 0.0
        %3399 = vmatpush1.msra.mxu0 %v3030
        %3400 = vmatprep.subr.mxu0 0.0
        %3401 = vmatpush1.msra.mxu0 %v3029
        %3402 = vmatprep.subr.mxu0 0.0
        %3403 = vmatpush1.msra.mxu0 %v3028
        %3404 = vmatprep.subr.mxu0 0.0
        %3405 = vmatpush1.msra.mxu0 %v3027
        %3406 = vmatprep.subr.mxu0 0.0
        %3407 = vmatpush1.msra.mxu0 %v3026
        %3408 = vmatprep.subr.mxu0 0.0
        %3409 = vmatpush1.msra.mxu0 %v3025
        %3410 = vmatprep.subr.mxu0 0.0
        %3411 = vmatpush1.msra.mxu0 %v3024
        %3412 = vmatprep.subr.mxu0 0.0
        %3413 = vmatpush1.msra.mxu0 %v3023
        %3414 = vmatprep.subr.mxu0 0.0
        %3415 = vmatpush2.msra.mxu0 %v3054
        %3416 = vmatprep.subr.mxu0 0.0
        %3417 = vmatpush2.msra.mxu0 %v3053
        %3418 = vmatprep.subr.mxu0 0.0
        %3419 = vmatpush2.msra.mxu0 %v3052
        %3420 = vmatprep.subr.mxu0 0.0
        %3421 = vmatpush2.msra.mxu0 %v3051
        %3422 = vmatprep.subr.mxu0 0.0
        %3423 = vmatpush2.msra.mxu0 %v3050
        %3424 = vmatprep.subr.mxu0 0.0
        %3425 = vmatpush2.msra.mxu0 %v3049
        %3426 = vmatprep.subr.mxu0 0.0
        %3427 = vmatpush2.msra.mxu0 %v3048
        %3428 = vmatprep.subr.mxu0 0.0
        %3429 = vmatpush2.msra.mxu0 %v3047
        %3430 = vmatprep.subr.mxu0 0.0
        %3431 = vmatpush2.msra.mxu0 %v3046
        %3432 = vmatprep.subr.mxu0 0.0
        %3433 = vmatpush2.msra.mxu0 %v3045
        %3434 = vmatprep.subr.mxu0 0.0
        %3435 = vmatpush2.msra.mxu0 %v3044
        %3436 = vmatprep.subr.mxu0 0.0
        %3437 = vmatpush2.msra.mxu0 %v3043
        %3438 = vmatprep.subr.mxu0 0.0
        %3439 = vmatpush2.msra.mxu0 %v3042
        %3440 = vmatprep.subr.mxu0 0.0
        %3441 = vmatpush2.msra.mxu0 %v3041
        %3442 = vmatprep.subr.mxu0 0.0
        %3443 = vmatpush2.msra.mxu0 %v3040
        %3444 = vmatprep.subr.mxu0 0.0
        %3445 = vmatpush2.msra.mxu0 %v3039
        %3446 = vmatprep.mubr.f32.mxu0 %v2907
        %3447 = vmatmul.mubr.f32.gmra.mxu0 %v2898
        %v3448 = vpop.f32.mrf.mxu0
        %v3449 = vadd.f32 %v3369, %v3448
        %v3450 = vpop.f32.mrf.mxu0
        %3451 = vmatprep.mubr.f32.mxu0 %v2909
        %3452 = vmatmul.mubr.f32.gmra.mxu0 %v2900
        %v3453 = vpop.f32.mrf.mxu0
        %v3454 = vadd.f32 %v3374, %v3453
        %v3455 = vpop.f32.mrf.mxu0
        %3456 = vmatprep.mubr.f32.mxu0 %v2908
        %3457 = vmatmul.mubr.f32.gmra.mxu0 %v2899
        %v3458 = vpop.f32.mrf.mxu0
        %v3459 = vadd.f32 %v3379, %v3458
        %v3460 = vpop.f32.mrf.mxu0
        %3461 = vdwg.mxu0
        %3462 = vmatprep.subr.mxu0 0.0
        %3463 = vmatpush1.msra.mxu0 %v3070
        %3464 = vmatprep.subr.mxu0 0.0
        %3465 = vmatpush1.msra.mxu0 %v3069
        %3466 = vmatprep.subr.mxu0 0.0
        %3467 = vmatpush1.msra.mxu0 %v3068
        %3468 = vmatprep.subr.mxu0 0.0
        %3469 = vmatpush1.msra.mxu0 %v3067
        %3470 = vmatprep.subr.mxu0 0.0
        %3471 = vmatpush1.msra.mxu0 %v3066
        %3472 = vmatprep.subr.mxu0 0.0
        %3473 = vmatpush1.msra.mxu0 %v3065
        %3474 = vmatprep.subr.mxu0 0.0
        %3475 = vmatpush1.msra.mxu0 %v3064
        %3476 = vmatprep.subr.mxu0 0.0
        %3477 = vmatpush1.msra.mxu0 %v3063
        %3478 = vmatprep.subr.mxu0 0.0
        %3479 = vmatpush1.msra.mxu0 %v3062
        %3480 = vmatprep.subr.mxu0 0.0
        %3481 = vmatpush1.msra.mxu0 %v3061
        %3482 = vmatprep.subr.mxu0 0.0
        %3483 = vmatpush1.msra.mxu0 %v3060
        %3484 = vmatprep.subr.mxu0 0.0
        %3485 = vmatpush1.msra.mxu0 %v3059
        %3486 = vmatprep.subr.mxu0 0.0
        %3487 = vmatpush1.msra.mxu0 %v3058
        %3488 = vmatprep.subr.mxu0 0.0
        %3489 = vmatpush1.msra.mxu0 %v3057
        %3490 = vmatprep.subr.mxu0 0.0
        %3491 = vmatpush1.msra.mxu0 %v3056
        %3492 = vmatprep.subr.mxu0 0.0
        %3493 = vmatpush1.msra.mxu0 %v3055
        %3494 = vmatprep.subr.mxu0 0.0
        %3495 = vmatpush2.msra.mxu0 %v3086
        %3496 = vmatprep.subr.mxu0 0.0
        %3497 = vmatpush2.msra.mxu0 %v3085
        %3498 = vmatprep.subr.mxu0 0.0
        %3499 = vmatpush2.msra.mxu0 %v3084
        %3500 = vmatprep.subr.mxu0 0.0
        %3501 = vmatpush2.msra.mxu0 %v3083
        %3502 = vmatprep.subr.mxu0 0.0
        %3503 = vmatpush2.msra.mxu0 %v3082
        %3504 = vmatprep.subr.mxu0 0.0
        %3505 = vmatpush2.msra.mxu0 %v3081
        %3506 = vmatprep.subr.mxu0 0.0
        %3507 = vmatpush2.msra.mxu0 %v3080
        %3508 = vmatprep.subr.mxu0 0.0
        %3509 = vmatpush2.msra.mxu0 %v3079
        %3510 = vmatprep.subr.mxu0 0.0
        %3511 = vmatpush2.msra.mxu0 %v3078
        %3512 = vmatprep.subr.mxu0 0.0
        %3513 = vmatpush2.msra.mxu0 %v3077
        %3514 = vmatprep.subr.mxu0 0.0
        %3515 = vmatpush2.msra.mxu0 %v3076
        %3516 = vmatprep.subr.mxu0 0.0
        %3517 = vmatpush2.msra.mxu0 %v3075
        %3518 = vmatprep.subr.mxu0 0.0
        %3519 = vmatpush2.msra.mxu0 %v3074
        %3520 = vmatprep.subr.mxu0 0.0
        %3521 = vmatpush2.msra.mxu0 %v3073
        %3522 = vmatprep.subr.mxu0 0.0
        %3523 = vmatpush2.msra.mxu0 %v3072
        %3524 = vmatprep.subr.mxu0 0.0
        %3525 = vmatpush2.msra.mxu0 %v3071
        %3526 = vmatprep.mubr.f32.mxu0 %v2924
        %3527 = vmatmul.mubr.f32.gmra.mxu0 %v2916
        %v3528 = vpop.f32.mrf.mxu0
        %v3529 = vadd.f32 %v3449, %v3528
        %v3530 = vpop.f32.mrf.mxu0
        %3531 = vmatprep.mubr.f32.mxu0 %v2926
        %3532 = vmatmul.mubr.f32.gmra.mxu0 %v2918
        %v3533 = vpop.f32.mrf.mxu0
        %v3534 = vadd.f32 %v3454, %v3533
        %v3535 = vpop.f32.mrf.mxu0
        %3536 = vmatprep.mubr.f32.mxu0 %v2925
        %3537 = vmatmul.mubr.f32.gmra.mxu0 %v2917
        %v3538 = vpop.f32.mrf.mxu0
        %v3539 = vadd.f32 %v3459, %v3538
        %v3540 = vpop.f32.mrf.mxu0
        %3541 = vdwg.mxu0
        %3542 = vmatprep.subr.mxu0 0.0
        %3543 = vmatpush1.msra.mxu0 %v3102
        %3544 = vmatprep.subr.mxu0 0.0
        %3545 = vmatpush1.msra.mxu0 %v3101
        %3546 = vmatprep.subr.mxu0 0.0
        %3547 = vmatpush1.msra.mxu0 %v3100
        %3548 = vmatprep.subr.mxu0 0.0
        %3549 = vmatpush1.msra.mxu0 %v3099
        %3550 = vmatprep.subr.mxu0 0.0
        %3551 = vmatpush1.msra.mxu0 %v3098
        %3552 = vmatprep.subr.mxu0 0.0
        %3553 = vmatpush1.msra.mxu0 %v3097
        %3554 = vmatprep.subr.mxu0 0.0
        %3555 = vmatpush1.msra.mxu0 %v3096
        %3556 = vmatprep.subr.mxu0 0.0
        %3557 = vmatpush1.msra.mxu0 %v3095
        %3558 = vmatprep.subr.mxu0 0.0
        %3559 = vmatpush1.msra.mxu0 %v3094
        %3560 = vmatprep.subr.mxu0 0.0
        %3561 = vmatpush1.msra.mxu0 %v3093
        %3562 = vmatprep.subr.mxu0 0.0
        %3563 = vmatpush1.msra.mxu0 %v3092
        %3564 = vmatprep.subr.mxu0 0.0
        %3565 = vmatpush1.msra.mxu0 %v3091
        %3566 = vmatprep.subr.mxu0 0.0
        %3567 = vmatpush1.msra.mxu0 %v3090
        %3568 = vmatprep.subr.mxu0 0.0
        %3569 = vmatpush1.msra.mxu0 %v3089
        %3570 = vmatprep.subr.mxu0 0.0
        %3571 = vmatpush1.msra.mxu0 %v3088
        %3572 = vmatprep.subr.mxu0 0.0
        %3573 = vmatpush1.msra.mxu0 %v3087
        %3574 = vmatprep.subr.mxu0 0.0
        %3575 = vmatpush2.msra.mxu0 %v3118
        %3576 = vmatprep.subr.mxu0 0.0
        %3577 = vmatpush2.msra.mxu0 %v3117
        %3578 = vmatprep.subr.mxu0 0.0
        %3579 = vmatpush2.msra.mxu0 %v3116
        %3580 = vmatprep.subr.mxu0 0.0
        %3581 = vmatpush2.msra.mxu0 %v3115
        %3582 = vmatprep.subr.mxu0 0.0
        %3583 = vmatpush2.msra.mxu0 %v3114
        %3584 = vmatprep.subr.mxu0 0.0
        %3585 = vmatpush2.msra.mxu0 %v3113
        %3586 = vmatprep.subr.mxu0 0.0
        %3587 = vmatpush2.msra.mxu0 %v3112
        %3588 = vmatprep.subr.mxu0 0.0
        %3589 = vmatpush2.msra.mxu0 %v3111
        %3590 = vmatprep.subr.mxu0 0.0
        %3591 = vmatpush2.msra.mxu0 %v3110
        %3592 = vmatprep.subr.mxu0 0.0
        %3593 = vmatpush2.msra.mxu0 %v3109
        %3594 = vmatprep.subr.mxu0 0.0
        %3595 = vmatpush2.msra.mxu0 %v3108
        %3596 = vmatprep.subr.mxu0 0.0
        %3597 = vmatpush2.msra.mxu0 %v3107
        %3598 = vmatprep.subr.mxu0 0.0
        %3599 = vmatpush2.msra.mxu0 %v3106
        %3600 = vmatprep.subr.mxu0 0.0
        %3601 = vmatpush2.msra.mxu0 %v3105
        %3602 = vmatprep.subr.mxu0 0.0
        %3603 = vmatpush2.msra.mxu0 %v3104
        %3604 = vmatprep.subr.mxu0 0.0
        %3605 = vmatpush2.msra.mxu0 %v3103
        %3606 = vmatprep.mubr.f32.mxu0 %v2875
        %3607 = vmatmul.mubr.f32.gmra.mxu0 %v2855
        %v3608 = vpop.f32.mrf.mxu0
        %v3609 = vadd.f32 %v3529, %v3608
        %v3610 = vpop.f32.mrf.mxu0
        %3611 = vmatprep.mubr.f32.mxu0 %v2932
        %3612 = vmatmul.mubr.f32.gmra.mxu0 %v2860
        %v3613 = vpop.f32.mrf.mxu0
        %v3614 = vadd.f32 %v3534, %v3613
        %v3615 = vpop.f32.mrf.mxu0
        %3616 = vmatprep.mubr.f32.mxu0 %v2931
        %3617 = vmatmul.mubr.f32.gmra.mxu0 %v2865
        %v3618 = vpop.f32.mrf.mxu0
        %v3619 = vadd.f32 %v3539, %v3618
        %v3620 = vpop.f32.mrf.mxu0
        %3621 = vdwg.mxu0
        %3622 = vmatprep.subr.mxu0 0.0
        %3623 = vmatpush1.msra.mxu0 %v3134
        %3624 = vmatprep.subr.mxu0 0.0
        %3625 = vmatpush1.msra.mxu0 %v3133
        %3626 = vmatprep.subr.mxu0 0.0
        %3627 = vmatpush1.msra.mxu0 %v3132
        %3628 = vmatprep.subr.mxu0 0.0
        %3629 = vmatpush1.msra.mxu0 %v3131
        %3630 = vmatprep.subr.mxu0 0.0
        %3631 = vmatpush1.msra.mxu0 %v3130
        %3632 = vmatprep.subr.mxu0 0.0
        %3633 = vmatpush1.msra.mxu0 %v3129
        %3634 = vmatprep.subr.mxu0 0.0
        %3635 = vmatpush1.msra.mxu0 %v3128
        %3636 = vmatprep.subr.mxu0 0.0
        %3637 = vmatpush1.msra.mxu0 %v3127
        %3638 = vmatprep.subr.mxu0 0.0
        %3639 = vmatpush1.msra.mxu0 %v3126
        %3640 = vmatprep.subr.mxu0 0.0
        %3641 = vmatpush1.msra.mxu0 %v3125
        %3642 = vmatprep.subr.mxu0 0.0
        %3643 = vmatpush1.msra.mxu0 %v3124
        %3644 = vmatprep.subr.mxu0 0.0
        %3645 = vmatpush1.msra.mxu0 %v3123
        %3646 = vmatprep.subr.mxu0 0.0
        %3647 = vmatpush1.msra.mxu0 %v3122
        %3648 = vmatprep.subr.mxu0 0.0
        %3649 = vmatpush1.msra.mxu0 %v3121
        %3650 = vmatprep.subr.mxu0 0.0
        %3651 = vmatpush1.msra.mxu0 %v3120
        %3652 = vmatprep.subr.mxu0 0.0
        %3653 = vmatpush1.msra.mxu0 %v3119
        %3654 = vmatprep.subr.mxu0 0.0
        %3655 = vmatpush2.msra.mxu0 %v3150
        %3656 = vmatprep.subr.mxu0 0.0
        %3657 = vmatpush2.msra.mxu0 %v3149
        %3658 = vmatprep.subr.mxu0 0.0
        %3659 = vmatpush2.msra.mxu0 %v3148
        %3660 = vmatprep.subr.mxu0 0.0
        %3661 = vmatpush2.msra.mxu0 %v3147
        %3662 = vmatprep.subr.mxu0 0.0
        %3663 = vmatpush2.msra.mxu0 %v3146
        %3664 = vmatprep.subr.mxu0 0.0
        %3665 = vmatpush2.msra.mxu0 %v3145
        %3666 = vmatprep.subr.mxu0 0.0
        %3667 = vmatpush2.msra.mxu0 %v3144
        %3668 = vmatprep.subr.mxu0 0.0
        %3669 = vmatpush2.msra.mxu0 %v3143
        %3670 = vmatprep.subr.mxu0 0.0
        %3671 = vmatpush2.msra.mxu0 %v3142
        %3672 = vmatprep.subr.mxu0 0.0
        %3673 = vmatpush2.msra.mxu0 %v3141
        %3674 = vmatprep.subr.mxu0 0.0
        %3675 = vmatpush2.msra.mxu0 %v3140
        %3676 = vmatprep.subr.mxu0 0.0
        %3677 = vmatpush2.msra.mxu0 %v3139
        %3678 = vmatprep.subr.mxu0 0.0
        %3679 = vmatpush2.msra.mxu0 %v3138
        %3680 = vmatprep.subr.mxu0 0.0
        %3681 = vmatpush2.msra.mxu0 %v3137
        %3682 = vmatprep.subr.mxu0 0.0
        %3683 = vmatpush2.msra.mxu0 %v3136
        %3684 = vmatprep.subr.mxu0 0.0
        %3685 = vmatpush2.msra.mxu0 %v3135
        %3686 = vmatprep.mubr.f32.mxu0 %v2892
        %3687 = vmatmul.mubr.f32.gmra.mxu0 %v2883
        %v3688 = vpop.f32.mrf.mxu0
        %v3689 = vadd.f32 %v3609, %v3688
        %v3690 = vpop.f32.mrf.mxu0
        %3691 = vmatprep.mubr.f32.mxu0 %v2940
        %3692 = vmatmul.mubr.f32.gmra.mxu0 %v2936
        %v3693 = vpop.f32.mrf.mxu0
        %v3694 = vadd.f32 %v3614, %v3693
        %v3695 = vpop.f32.mrf.mxu0
        %3696 = vmatprep.mubr.f32.mxu0 %v2939
        %3697 = vmatmul.mubr.f32.gmra.mxu0 %v2935
        %v3698 = vpop.f32.mrf.mxu0
        %v3699 = vadd.f32 %v3619, %v3698
        %v3700 = vpop.f32.mrf.mxu0
        %3701 = vdwg.mxu0
        %3702 = vmatprep.subr.mxu0 0.0
        %3703 = vmatpush1.msra.mxu0 %v3166
        %3704 = vmatprep.subr.mxu0 0.0
        %3705 = vmatpush1.msra.mxu0 %v3165
        %3706 = vmatprep.subr.mxu0 0.0
        %3707 = vmatpush1.msra.mxu0 %v3164
        %3708 = vmatprep.subr.mxu0 0.0
        %3709 = vmatpush1.msra.mxu0 %v3163
        %3710 = vmatprep.subr.mxu0 0.0
        %3711 = vmatpush1.msra.mxu0 %v3162
        %3712 = vmatprep.subr.mxu0 0.0
        %3713 = vmatpush1.msra.mxu0 %v3161
        %3714 = vmatprep.subr.mxu0 0.0
        %3715 = vmatpush1.msra.mxu0 %v3160
        %3716 = vmatprep.subr.mxu0 0.0
        %3717 = vmatpush1.msra.mxu0 %v3159
        %3718 = vmatprep.subr.mxu0 0.0
        %3719 = vmatpush1.msra.mxu0 %v3158
        %3720 = vmatprep.subr.mxu0 0.0
        %3721 = vmatpush1.msra.mxu0 %v3157
        %3722 = vmatprep.subr.mxu0 0.0
        %3723 = vmatpush1.msra.mxu0 %v3156
        %3724 = vmatprep.subr.mxu0 0.0
        %3725 = vmatpush1.msra.mxu0 %v3155
        %3726 = vmatprep.subr.mxu0 0.0
        %3727 = vmatpush1.msra.mxu0 %v3154
        %3728 = vmatprep.subr.mxu0 0.0
        %3729 = vmatpush1.msra.mxu0 %v3153
        %3730 = vmatprep.subr.mxu0 0.0
        %3731 = vmatpush1.msra.mxu0 %v3152
        %3732 = vmatprep.subr.mxu0 0.0
        %3733 = vmatpush1.msra.mxu0 %v3151
        %3734 = vmatprep.subr.mxu0 0.0
        %3735 = vmatpush2.msra.mxu0 %v3182
        %3736 = vmatprep.subr.mxu0 0.0
        %3737 = vmatpush2.msra.mxu0 %v3181
        %3738 = vmatprep.subr.mxu0 0.0
        %3739 = vmatpush2.msra.mxu0 %v3180
        %3740 = vmatprep.subr.mxu0 0.0
        %3741 = vmatpush2.msra.mxu0 %v3179
        %3742 = vmatprep.subr.mxu0 0.0
        %3743 = vmatpush2.msra.mxu0 %v3178
        %3744 = vmatprep.subr.mxu0 0.0
        %3745 = vmatpush2.msra.mxu0 %v3177
        %3746 = vmatprep.subr.mxu0 0.0
        %3747 = vmatpush2.msra.mxu0 %v3176
        %3748 = vmatprep.subr.mxu0 0.0
        %3749 = vmatpush2.msra.mxu0 %v3175
        %3750 = vmatprep.subr.mxu0 0.0
        %3751 = vmatpush2.msra.mxu0 %v3174
        %3752 = vmatprep.subr.mxu0 0.0
        %3753 = vmatpush2.msra.mxu0 %v3173
        %3754 = vmatprep.subr.mxu0 0.0
        %3755 = vmatpush2.msra.mxu0 %v3172
        %3756 = vmatprep.subr.mxu0 0.0
        %3757 = vmatpush2.msra.mxu0 %v3171
        %3758 = vmatprep.subr.mxu0 0.0
        %3759 = vmatpush2.msra.mxu0 %v3170
        %3760 = vmatprep.subr.mxu0 0.0
        %3761 = vmatpush2.msra.mxu0 %v3169
        %3762 = vmatprep.subr.mxu0 0.0
        %3763 = vmatpush2.msra.mxu0 %v3168
        %3764 = vmatprep.subr.mxu0 0.0
        %3765 = vmatpush2.msra.mxu0 %v3167
        %3766 = vmatprep.mubr.f32.mxu0 %v2909
        %3767 = vmatmul.mubr.f32.gmra.mxu0 %v2900
        %v3768 = vpop.f32.mrf.mxu0
        %v3769 = vadd.f32 %v3689, %v3768
        %v3770 = vpop.f32.mrf.mxu0
        %3771 = vmatprep.mubr.f32.mxu0 %v2948
        %3772 = vmatmul.mubr.f32.gmra.mxu0 %v2944
        %v3773 = vpop.f32.mrf.mxu0
        %v3774 = vadd.f32 %v3694, %v3773
        %v3775 = vpop.f32.mrf.mxu0
        %3776 = vmatprep.mubr.f32.mxu0 %v2947
        %3777 = vmatmul.mubr.f32.gmra.mxu0 %v2943
        %v3778 = vpop.f32.mrf.mxu0
        %v3779 = vadd.f32 %v3699, %v3778
        %v3780 = vpop.f32.mrf.mxu0
        %3781 = vdwg.mxu0
        %3782 = vmatprep.subr.mxu0 0.0
        %3783 = vmatpush1.msra.mxu0 %v3198
        %3784 = vmatprep.subr.mxu0 0.0
        %3785 = vmatpush1.msra.mxu0 %v3197
        %3786 = vmatprep.subr.mxu0 0.0
        %3787 = vmatpush1.msra.mxu0 %v3196
        %3788 = vmatprep.subr.mxu0 0.0
        %3789 = vmatpush1.msra.mxu0 %v3195
        %3790 = vmatprep.subr.mxu0 0.0
        %3791 = vmatpush1.msra.mxu0 %v3194
        %3792 = vmatprep.subr.mxu0 0.0
        %3793 = vmatpush1.msra.mxu0 %v3193
        %3794 = vmatprep.subr.mxu0 0.0
        %3795 = vmatpush1.msra.mxu0 %v3192
        %3796 = vmatprep.subr.mxu0 0.0
        %3797 = vmatpush1.msra.mxu0 %v3191
        %3798 = vmatprep.subr.mxu0 0.0
        %3799 = vmatpush1.msra.mxu0 %v3190
        %3800 = vmatprep.subr.mxu0 0.0
        %3801 = vmatpush1.msra.mxu0 %v3189
        %3802 = vmatprep.subr.mxu0 0.0
        %3803 = vmatpush1.msra.mxu0 %v3188
        %3804 = vmatprep.subr.mxu0 0.0
        %3805 = vmatpush1.msra.mxu0 %v3187
        %3806 = vmatprep.subr.mxu0 0.0
        %3807 = vmatpush1.msra.mxu0 %v3186
        %3808 = vmatprep.subr.mxu0 0.0
        %3809 = vmatpush1.msra.mxu0 %v3185
        %3810 = vmatprep.subr.mxu0 0.0
        %3811 = vmatpush1.msra.mxu0 %v3184
        %3812 = vmatprep.subr.mxu0 0.0
        %3813 = vmatpush1.msra.mxu0 %v3183
        %3814 = vmatprep.subr.mxu0 0.0
        %3815 = vmatpush2.msra.mxu0 %v3214
        %3816 = vmatprep.subr.mxu0 0.0
        %3817 = vmatpush2.msra.mxu0 %v3213
        %3818 = vmatprep.subr.mxu0 0.0
        %3819 = vmatpush2.msra.mxu0 %v3212
        %3820 = vmatprep.subr.mxu0 0.0
        %3821 = vmatpush2.msra.mxu0 %v3211
        %3822 = vmatprep.subr.mxu0 0.0
        %3823 = vmatpush2.msra.mxu0 %v3210
        %3824 = vmatprep.subr.mxu0 0.0
        %3825 = vmatpush2.msra.mxu0 %v3209
        %3826 = vmatprep.subr.mxu0 0.0
        %3827 = vmatpush2.msra.mxu0 %v3208
        %3828 = vmatprep.subr.mxu0 0.0
        %3829 = vmatpush2.msra.mxu0 %v3207
        %3830 = vmatprep.subr.mxu0 0.0
        %3831 = vmatpush2.msra.mxu0 %v3206
        %3832 = vmatprep.subr.mxu0 0.0
        %3833 = vmatpush2.msra.mxu0 %v3205
        %3834 = vmatprep.subr.mxu0 0.0
        %3835 = vmatpush2.msra.mxu0 %v3204
        %3836 = vmatprep.subr.mxu0 0.0
        %3837 = vmatpush2.msra.mxu0 %v3203
        %3838 = vmatprep.subr.mxu0 0.0
        %3839 = vmatpush2.msra.mxu0 %v3202
        %3840 = vmatprep.subr.mxu0 0.0
        %3841 = vmatpush2.msra.mxu0 %v3201
        %3842 = vmatprep.subr.mxu0 0.0
        %3843 = vmatpush2.msra.mxu0 %v3200
        %3844 = vmatprep.subr.mxu0 0.0
        %3845 = vmatpush2.msra.mxu0 %v3199
        %3846 = vmatprep.mubr.f32.mxu0 %v2926
        %3847 = vmatmul.mubr.f32.gmra.mxu0 %v2918
        %v3848 = vpop.f32.mrf.mxu0
        %v3849 = vadd.f32 %v3769, %v3848
        %v3850 = vpop.f32.mrf.mxu0
        %3851 = vmatprep.mubr.f32.mxu0 %v2956
        %3852 = vmatmul.mubr.f32.gmra.mxu0 %v2952
        %v3853 = vpop.f32.mrf.mxu0
        %v3854 = vadd.f32 %v3774, %v3853
        %v3855 = vpop.f32.mrf.mxu0
        %3856 = vmatprep.mubr.f32.mxu0 %v2955
        %3857 = vmatmul.mubr.f32.gmra.mxu0 %v2951
        %v3858 = vpop.f32.mrf.mxu0
        %v3859 = vadd.f32 %v3779, %v3858
        %v3860 = vpop.f32.mrf.mxu0
        %3861 = vdwg.mxu0
        %v3862 = vld [vmem:[#allocation27] sm:$0xff]
        %v3863 = vld [vmem:[#allocation27 + $0x8] sm:$0xff]
        %v3864 = vld [vmem:[#allocation27 + $0x10] sm:$0xff]
        %v3865 = vld [vmem:[#allocation27 + $0x18] sm:$0xff]
        %v3866 = vld [vmem:[#allocation27 + $0x20] sm:$0xff]
        %v3867 = vld [vmem:[#allocation27 + $0x28] sm:$0xff]
        %v3868 = vld [vmem:[#allocation27 + $0x30] sm:$0xff]
        %v3869 = vld [vmem:[#allocation27 + $0x38] sm:$0xff]
        %v3870 = vld [vmem:[#allocation27 + $0x40] sm:$0xff]
        %v3871 = vld [vmem:[#allocation27 + $0x48] sm:$0xff]
        %v3872 = vld [vmem:[#allocation27 + $0x50] sm:$0xff]
        %v3873 = vld [vmem:[#allocation27 + $0x58] sm:$0xff]
        %v3874 = vld [vmem:[#allocation27 + $0x60] sm:$0xff]
        %v3875 = vld [vmem:[#allocation27 + $0x68] sm:$0xff]
        %v3876 = vld [vmem:[#allocation27 + $0x70] sm:$0xff]
        %v3877 = vld [vmem:[#allocation27 + $0x78] sm:$0xff]
        %v3878 = vld [vmem:[#allocation28] sm:$0x1]
        %v3880 = vlaneseq
        %v3881 = vshrl.u32 %v3880, 7
        %v3882 = vsub.s32 0, %v3881
        %v3883 = vrot.slane %v3878, %v3882
        %3885 = vmatprep.subr.mxu0 0.0
        %3886 = vmatpush1.msra.mxu0 %v3877
        %3887 = vmatprep.subr.mxu0 0.0
        %3888 = vmatpush1.msra.mxu0 %v3876
        %3889 = vmatprep.subr.mxu0 0.0
        %3890 = vmatpush1.msra.mxu0 %v3875
        %3891 = vmatprep.subr.mxu0 0.0
        %3892 = vmatpush1.msra.mxu0 %v3874
        %3893 = vmatprep.subr.mxu0 0.0
        %3894 = vmatpush1.msra.mxu0 %v3873
        %3895 = vmatprep.subr.mxu0 0.0
        %3896 = vmatpush1.msra.mxu0 %v3872
        %3897 = vmatprep.subr.mxu0 0.0
        %3898 = vmatpush1.msra.mxu0 %v3871
        %3899 = vmatprep.subr.mxu0 0.0
        %3900 = vmatpush1.msra.mxu0 %v3870
        %3901 = vmatprep.subr.mxu0 0.0
        %3902 = vmatpush1.msra.mxu0 %v3869
        %3903 = vmatprep.subr.mxu0 0.0
        %3904 = vmatpush1.msra.mxu0 %v3868
        %3905 = vmatprep.subr.mxu0 0.0
        %3906 = vmatpush1.msra.mxu0 %v3867
        %3907 = vmatprep.subr.mxu0 0.0
        %3908 = vmatpush1.msra.mxu0 %v3866
        %3909 = vmatprep.subr.mxu0 0.0
        %3910 = vmatpush1.msra.mxu0 %v3865
        %3911 = vmatprep.subr.mxu0 0.0
        %3912 = vmatpush1.msra.mxu0 %v3864
        %3913 = vmatprep.subr.mxu0 0.0
        %3914 = vmatpush1.msra.mxu0 %v3863
        %3915 = vmatprep.subr.mxu0 0.0
        %3916 = vmatpush1.msra.mxu0 %v3862
        %3917 = vmatprep.subr.mxu0 0.0
        %3918 = vmatpush2.msra.mxu0 0.0
        %3919 = vmatprep.subr.mxu0 0.0
        %3920 = vmatpush2.msra.mxu0 0.0
        %3921 = vmatprep.subr.mxu0 0.0
        %3922 = vmatpush2.msra.mxu0 0.0
        %3923 = vmatprep.subr.mxu0 0.0
        %3924 = vmatpush2.msra.mxu0 0.0
        %3925 = vmatprep.subr.mxu0 0.0
        %3926 = vmatpush2.msra.mxu0 0.0
        %3927 = vmatprep.subr.mxu0 0.0
        %3928 = vmatpush2.msra.mxu0 0.0
        %3929 = vmatprep.subr.mxu0 0.0
        %3930 = vmatpush2.msra.mxu0 0.0
        %3931 = vmatprep.subr.mxu0 0.0
        %3932 = vmatpush2.msra.mxu0 0.0
        %3933 = vmatprep.subr.mxu0 0.0
        %3934 = vmatpush2.msra.mxu0 0.0
        %3935 = vmatprep.subr.mxu0 0.0
        %3936 = vmatpush2.msra.mxu0 0.0
        %3937 = vmatprep.subr.mxu0 0.0
        %3938 = vmatpush2.msra.mxu0 0.0
        %3939 = vmatprep.subr.mxu0 0.0
        %3940 = vmatpush2.msra.mxu0 0.0
        %3941 = vmatprep.subr.mxu0 0.0
        %3942 = vmatpush2.msra.mxu0 0.0
        %3943 = vmatprep.subr.mxu0 0.0
        %3944 = vmatpush2.msra.mxu0 0.0
        %3945 = vmatprep.subr.mxu0 0.0
        %3946 = vmatpush2.msra.mxu0 0.0
        %3947 = vmatprep.subr.mxu0 0.0
        %3948 = vmatpush2.msra.mxu0 0.0
        %3949 = vmatprep.mubr.f32.mxu0 0.0
        %3950 = vmatmul.mubr.f32.gmra.mxu0 %v3849
        %v3951 = vpop.f32.mrf.mxu0
        %v3952 = vadd.f32 %v3883, %v3951
        %v3953 = vpop.f32.mrf.mxu0
        %3954 = vmatprep.mubr.f32.mxu0 0.0
        %3955 = vmatmul.mubr.f32.gmra.mxu0 %v3854
        %v3956 = vpop.f32.mrf.mxu0
        %v3957 = vadd.f32 %v3883, %v3956
        %v3958 = vpop.f32.mrf.mxu0
        %3959 = vmatprep.mubr.f32.mxu0 0.0
        %3960 = vmatmul.mubr.f32.gmra.mxu0 %v3859
        %v3961 = vpop.f32.mrf.mxu0
        %v3962 = vadd.f32 %v3883, %v3961
        %v3963 = vpop.f32.mrf.mxu0
        %3964 = vdwg.mxu0
        %3965 = vst [vmem:[%s749] sm:$0xff] %v3952
        %3966 = vst [vmem:[%s749 + $0x8] sm:$0xff] %v3957
        %3967 = vst [vmem:[%s749 + $0x10] sm:$0x1] %v3962
        %s3968 = smul.u32 1920, 1
        %s3969 = sshll.u32 %s3968, 4
        %3970 = dma.done [#allocation6], %s3969
        %s3971 = smul.u32 480, 1
        %s3972 = sshll.u32 %s3971, 4
        %3973 = dma.done %s769, %s3972
        %s3974 = smul.u32 128, 1
        %s3975 = sshll.u32 %s3974, 4
        %3976 = dma.done %s1554, %s3975
        %s3977 = smul.u32 32, 1
        %s3978 = sshll.u32 %s3977, 4
        %3979 = dma.done %s2207, %s3978
        %p3980 = scmp.lt.s32.totalorder %s45, 1
        %s3981 = scalar_select %p3980, %s45, 1
        %s3982 = smul.addr %s3981, 3
        %s3983 = smul.addr %s3982, 8
        %s3984 = scalar_lea.vmem %s17, %s3983
        %s3985 = sand.u32 %s404, 1
        %s3986 = scalar_lea.sflag [#allocation9], %s3985
        %s3987 = sand.u32 %s404, 1
        %s3988 = smul.addr %s3987, 128
        %s3989 = scalar_lea.vmem [#allocation30], %s3988
        // Predicated region
        $region153: #{tpu_custom_call.1} parent=79 // pred_check
          %p3990 = pneg %p388
        $region154: #{tpu_custom_call.1} parent=79 // pred_check_branch
          %3992 = sbr.rel (%p3990) target = $region156
        $region155: #{tpu_custom_call.1} parent=79 // pred_region
          _
        $region156: #{tpu_custom_call.1} parent=79 // pred_fallthru
          _
        // Predicated region
        $region157: #{tpu_custom_call.1} parent=79 // pred_check
          %p3993 = pneg %p414
        $region158: #{tpu_custom_call.1} parent=79 // pred_check_branch
          %3995 = sbr.rel (%p3993) target = $region160
        $region159: #{tpu_custom_call.1} parent=79 // pred_region
          %s3997 = ssub.s32 2048, 2048
          %3998 = vsyncadd %s3986, %s3997
          %s3999 = smul.addr %s45, 16
          %s4000 = smul.addr %s3999, 128
          %s4001 = scalar_lea.hbm %s20, %s4000
          %s4002 = sshll.u32 %s3989, 4
          %s4003 = int_to_ptr.vmem [resolvable:$true] %s4002
          %4008 = dma.vmem_to_hbm [thread:$0]  %s4003, 2048, %s4001, %s3986, 128, 128, 8
        $region160: #{tpu_custom_call.1} parent=79 // pred_fallthru
          _
      $region80: #{tpu_custom_call.1} parent=5 // pred_fallthru
        _
      %p4009 = scmp.le.s32.totalorder 2, %s40
      // Predicated region
      $region161: #{tpu_custom_call.1} parent=5 // pred_check
        %p4010 = pneg %p4009
      $region162: #{tpu_custom_call.1} parent=5 // pred_check_branch
        %4012 = sbr.rel (%p4010) target = $region164
      $region163: #{tpu_custom_call.1} parent=5 // pred_region
        %s4013 = ssub.s32 %s40, 2
        // Predicated region
        $region165: #{tpu_custom_call.1} parent=163 // pred_check
          %p4014 = pneg %p394
        $region166: #{tpu_custom_call.1} parent=163 // pred_check_branch
          %4016 = sbr.rel (%p4014) target = $region168
        $region167: #{tpu_custom_call.1} parent=163 // pred_region
          %p4017 = scmp.lt.s32.totalorder %s46, 1
          %s4018 = scalar_select %p4017, %s46, 1
          %s4019 = smul.addr %s4018, 3
          %s4020 = smul.addr %s4019, 8
          %s4021 = scalar_lea.vmem %s17, %s4020
        $region168: #{tpu_custom_call.1} parent=163 // pred_fallthru
          _
        // Predicated region
        $region169: #{tpu_custom_call.1} parent=163 // pred_check
          %p4022 = pneg %p420
        $region170: #{tpu_custom_call.1} parent=163 // pred_check_branch
          %4024 = sbr.rel (%p4022) target = $region172
        $region171: #{tpu_custom_call.1} parent=163 // pred_region
          %s4025 = sand.u32 %s405, 1
          %s4026 = scalar_lea.sflag [#allocation9], %s4025
          %s4027 = sand.u32 %s405, 1
          %s4028 = smul.addr %s4027, 128
          %s4029 = scalar_lea.vmem [#allocation30], %s4028
          %4030 = dma.done %s4026, 2048
        $region172: #{tpu_custom_call.1} parent=163 // pred_fallthru
          _
      $region164: #{tpu_custom_call.1} parent=5 // pred_fallthru
        _
    $region6: #{tpu_custom_call.1} parent=1 // loop_footer
      %s44 = sadd.s32 1, %s40
    $region7: #{tpu_custom_call.1} parent=1 // loop_footer_branch
      %39 = sbr.rel target = $region3
    $region8: #{tpu_custom_call.1} parent=1 // loop_exit
      _
    %4031 = vsyncpa [#allocation8], 1
    %s4032 = scalar_lea.sflag [#allocation8], 1
    %4033 = vsyncpa %s4032, 1
    %4034 = vsyncpa [#allocation11], 1
    %4035 = vsyncpa [#allocation14], 1
    %4036 = vsyncpa [#allocation17], 1
    %4037 = vsyncpa [#allocation20], 1
    %4038 = vsyncpa [#allocation23], 1
    %4039 = vsyncpa [#allocation26], 1
    %4040 = vsyncpa [#allocation29], 1
    %4041 = vsyncpa [#allocation9], 1
    %s4042 = scalar_lea.sflag [#allocation9], 1
    %4043 = vsyncpa %s4042, 1
  %4044 = vsyncmov [#allocation6]
  %s4045 = vpop.sfrf %4044
  %p4046 = scmp.eq.s32.totalorder %s4045, 0
  %p4047 = pneg %p4046
  %4049 = shalt.err (%p4047)
  %s4050 = scalar_lea.sflag [#allocation6], 1
  %4051 = vsyncmov %s4050
  %s4052 = vpop.sfrf %4051
  %p4053 = scmp.eq.s32.totalorder %s4052, 0
  %p4054 = pneg %p4053
  %4056 = shalt.err (%p4054)
  %s4057 = scalar_lea.sflag [#allocation6], 2
  %4058 = vsyncmov %s4057
  %s4059 = vpop.sfrf %4058
  %p4060 = scmp.eq.s32.totalorder %s4059, 0
  %p4061 = pneg %p4060
  %4063 = shalt.err (%p4061)
  %s4064 = scalar_lea.sflag [#allocation6], 3
  %4065 = vsyncmov %s4064
  %s4066 = vpop.sfrf %4065
  %p4067 = scmp.eq.s32.totalorder %s4066, 0
  %p4068 = pneg %p4067
  %4070 = shalt.err (%p4068)
  %s4071 = scalar_lea.sflag [#allocation6], 4
  %4072 = vsyncmov %s4071
  %s4073 = vpop.sfrf %4072
  %p4074 = scmp.eq.s32.totalorder %s4073, 0
  %p4075 = pneg %p4074
  %4077 = shalt.err (%p4075)
  %s4078 = scalar_lea.sflag [#allocation6], 5
  %4079 = vsyncmov %s4078
  %s4080 = vpop.sfrf %4079
  %p4081 = scmp.eq.s32.totalorder %s4080, 0
  %p4082 = pneg %p4081
  %4084 = shalt.err (%p4082)

</llo_original>
